<compile_context>
chip_gen: v7x
topology: tpu7x:2x2x1
jax: 0.10.0
libtpu: 0.0.40
codegen_flags: <defaults>
</compile_context>

<pallas_src>
import functools
import math

import numpy as np
import jax
import jax.numpy as jnp
from jax.experimental import pallas as pl
from jax.experimental.pallas import tpu as pltpu


# ----------------------------------------------------------------------------- #
# B-spline bases
# ----------------------------------------------------------------------------- #
def _bspline_basis_recursive(x, knots, k, order):
    """Reference Cox-de Boor recursion (used only by the pure-JAX reference)."""
    n = len(knots)
    if order == 0:
        if k + 1 >= n:
            return jnp.zeros_like(x)
        return jnp.logical_and(knots[k] <= x, x < knots[k + 1]).astype(x.dtype)
    left = 0.0
    right = 0.0
    if k + order < n and knots[k + order] != knots[k]:
        left = (x - knots[k]) / (knots[k + order] - knots[k]) * \
            _bspline_basis_recursive(x, knots, k, order - 1)
    if k + order + 1 < n and knots[k + order + 1] != knots[k + 1]:
        right = (knots[k + order + 1] - x) / (knots[k + order + 1] - knots[k + 1]) * \
            _bspline_basis_recursive(x, knots, k + 1, order - 1)
    return left + right


def _bspline_final_bases(x, knots, spline_order, num_final):
    """Iterative de Boor table: returns [B_{k,spline_order}(x) for k < num_final].

    Shares all intermediate bases (vs. the exponential recursion) and folds the
    knot-difference reciprocals into trace-time Python constants.  Boundary
    guards match the reference recursion exactly.
    """
    n_knots = len(knots)
    zero = jnp.zeros_like(x)

    # Order-0 indicator bases.
    table = []
    for k in range(num_final + spline_order):
        if k + 1 >= n_knots:
            table.append(zero)
        else:
            table.append(
                jnp.logical_and(knots[k] <= x, x < knots[k + 1]).astype(x.dtype))

    # Raise the order level by level, sharing lower-order bases.
    for o in range(1, spline_order + 1):
        nxt = []
        for k in range(num_final + spline_order - o):
            acc = None
            if k + o < n_knots and knots[k + o] != knots[k]:
                c = 1.0 / (knots[k + o] - knots[k])
                acc = (x - knots[k]) * c * table[k]
            if k + o + 1 < n_knots and knots[k + o + 1] != knots[k + 1]:
                c = 1.0 / (knots[k + o + 1] - knots[k + 1])
                t = (knots[k + o + 1] - x) * c * table[k + 1]
                acc = t if acc is None else acc + t
            nxt.append(acc if acc is not None else zero)
        table = nxt
    return table


# ----------------------------------------------------------------------------- #
# In-kernel building blocks
# ----------------------------------------------------------------------------- #
def _layernorm(x, g, b, eps=1e-5):
    mu = jnp.mean(x, axis=-1, keepdims=True)
    xc = x - mu
    var = jnp.mean(xc * xc, axis=-1, keepdims=True)
    return xc * jax.lax.rsqrt(var + eps) * g + b


def _kan(z, inner_t, outer_t, *, knots, spline_order, num_knots):
    """KANLayer.forward: tanh -> B-spline inner functions -> outer linear mix."""
    x = jnp.tanh(z)                                            # (N, D) f32
    num_final = num_knots - spline_order                       # only these are used
    bases = _bspline_final_bases(x, knots, spline_order, num_final)
    inner = bases[0] * inner_t[0:1, :]
    for k in range(1, num_final):
        inner = inner + bases[k] * inner_t[k:k + 1, :]
    return jnp.dot(inner.astype(jnp.bfloat16), outer_t,
                   preferred_element_type=jnp.float32)


# ----------------------------------------------------------------------------- #
# Fused Decoder kernel: grid = (batch_chunks, layers); one layer per grid step,
# residual stream carried in the revisited output block.
# ----------------------------------------------------------------------------- #
def _decoder_kernel(trg_ref, src_ref, tmask_ref, smask_ref,
                    ln_w_ref, ln_b_ref,
                    w_sa_ref, b_sa_ref, wo_sa_ref, bo_sa_ref,
                    w_eaq_ref, b_eaq_ref, w_eak_ref, b_eak_ref,
                    wo_ea_ref, bo_ea_ref,
                    kan_in_ref, kan_out_ref,
                    out_ref,
                    *, H, dh, knots, spline_order, num_knots):
    layer = pl.program_id(1)
    BB, S, D = trg_ref.shape
    Ssrc = src_ref.shape[1]
    N = BB * S
    Hdh = H * dh

    # Residual stream lives in the (revisited) output block across the layer
    # axis; initialize it from trg on the first layer step.
    @pl.when(layer == 0)
    def _():
        out_ref[...] = trg_ref[...]

    x = out_ref[...].reshape(N, D)                                 # (N, D) f32
    src_bf = src_ref[...].reshape(BB * Ssrc, D).astype(jnp.bfloat16)

    # Additive mask biases, built once per grid step and replicated over heads
    # (head-major batch ordering matches to_heads()).  Not bit-identical to
    # masked_fill(-1e10): masked logits become (logit - 1e10), which after the
    # max-subtract + exp underflows to 0 identically for realistic magnitudes.
    tbias = jnp.where(tmask_ref[...] != 0.0, 0.0, -1e10).astype(jnp.float32)
    sbias = jnp.where(smask_ref[...] != 0.0, 0.0, -1e10).astype(jnp.float32)
    tbias_h = jnp.concatenate([tbias] * H, axis=0)                 # (H*BB, S, S)
    sbias_h = jnp.concatenate([sbias] * H, axis=0)                 # (H*BB, S, Ssrc)

    g = ln_w_ref[0]                                                # (4, D) f32
    be = ln_b_ref[0]

    def to_heads(flat, S_):
        """(BB*S_, H*dh) -> (H*BB, S_, dh); batch axis ordered (head, batch)."""
        cols = [flat[:, h * dh:(h + 1) * dh].reshape(BB, S_, dh) for h in range(H)]
        return jnp.stack(cols, axis=0).reshape(H * BB, S_, dh)

    def attention(q_f, r_f, k_f, v_f, bias_h, wo3, bo, Sq, Sk):
        """SelfAttention.forward with the W_r gate; q/k/v/r are (rows, Hdh) f32."""
        q3 = to_heads(q_f, Sq).astype(jnp.bfloat16)                # (H*BB, Sq, dh)
        k3 = to_heads(k_f, Sk).astype(jnp.bfloat16)
        v3 = to_heads(v_f, Sk).astype(jnp.bfloat16)
        s = jnp.einsum('bqd,bkd->bqk', q3, k3,
                       preferred_element_type=jnp.float32) + bias_h
        s = s - jnp.max(s, axis=-1, keepdims=True)
        p = jnp.exp(s)
        p = p * pl.reciprocal(jnp.sum(p, axis=-1, keepdims=True), approx=True)
        c3 = jnp.einsum('bqk,bkd->bqd', p.astype(jnp.bfloat16), v3,
                        preferred_element_type=jnp.float32)        # (H*BB, Sq, dh)
        gated = (c3 * to_heads(r_f, Sq)).reshape(H, BB * Sq, dh)   # leading regroup
        # Output projection without any lane-axis concat: W_o is packed (H,dh,D)
        # so per-head (dh,D) matmuls accumulate in f32.
        acc = jnp.dot(gated[0].astype(jnp.bfloat16), wo3[0],
                      preferred_element_type=jnp.float32)
        for h in range(1, H):
            acc = acc + jnp.dot(gated[h].astype(jnp.bfloat16), wo3[h],
                                preferred_element_type=jnp.float32)
        return acc + bo                                            # (BB*Sq, D)

    # ---- sublayer 1: masked self-attention (ONE fused 128-lane QRKV matmul) ----
    z = _layernorm(x, g[0:1, :], be[0:1, :]).astype(jnp.bfloat16)
    qrkv = jnp.dot(z, w_sa_ref[0], preferred_element_type=jnp.float32) + b_sa_ref[0]
    x = x + attention(qrkv[:, 0:Hdh], qrkv[:, Hdh:2 * Hdh],
                      qrkv[:, 2 * Hdh:3 * Hdh], qrkv[:, 3 * Hdh:4 * Hdh],
                      tbias_h, wo_sa_ref[0], bo_sa_ref[0], S, S)

    # ---- sublayer 2: encoder-decoder attention ----
    z = _layernorm(x, g[1:2, :], be[1:2, :]).astype(jnp.bfloat16)
    qr = jnp.dot(z, w_eaq_ref[0], preferred_element_type=jnp.float32) + b_eaq_ref[0]
    kv = jnp.dot(src_bf, w_eak_ref[0], preferred_element_type=jnp.float32) + b_eak_ref[0]
    x = x + attention(qr[:, :Hdh], qr[:, Hdh:], kv[:, :Hdh], kv[:, Hdh:],
                      sbias_h, wo_ea_ref[0], bo_ea_ref[0], S, Ssrc)

    # ---- sublayer 3: KAN dense filter ----
    z = _layernorm(x, g[2:3, :], be[2:3, :])
    x = x + _kan(z, kan_in_ref[0], kan_out_ref[0],
                 knots=knots, spline_order=spline_order, num_knots=num_knots)

    # ---- final LN of the layer; write the carried residual back ----
    x = _layernorm(x, g[3:4, :], be[3:4, :])
    out_ref[...] = x.reshape(BB, S, D)


# ----------------------------------------------------------------------------- #
# Wrapper
# ----------------------------------------------------------------------------- #
def _num_tensorcores():
    """Best-effort TensorCore count; the batch grid split only pays on >=2 cores."""
    try:
        info = pltpu.get_tpu_info()
        for name in ("num_cores", "core_count", "num_tensorcores", "tensor_core_count"):
            v = getattr(info, name, None)
            if isinstance(v, int) and v >= 1:
                return v
    except Exception:
        pass
    return 1


def decoder_forward(trg, src, trg_mask, src_mask, packed, cfg):
    B, S, D = trg.shape
    Ssrc = src.shape[1]
    n_L, H, dh = cfg['n_L'], cfg['n_I'], cfg['d_q']
    Hdh = H * dh

    # Batch split only when the chip reports >= 2 TensorCores (v7x); on
    # single-core v5e/v6e a split just adds per-grid-step overhead and halves
    # the matmul row count.
    cores = _num_tensorcores()
    NB = 2 if (cores >= 2 and B >= 2 and B % 2 == 0) else 1
    BB = B // NB

    kernel = functools.partial(
        _decoder_kernel, H=H, dh=dh, knots=cfg['knots'],
        spline_order=cfg['spline_order'], num_knots=cfg['num_knots'])

    weight_order = ['ln_w', 'ln_b',
                    'w_sa_qrkv', 'b_sa_qrkv', 'w_sa_o', 'b_sa_o',
                    'w_ea_qr', 'b_ea_qr', 'w_ea_kv', 'b_ea_kv', 'w_ea_o', 'b_ea_o',
                    'kan_inner', 'kan_outer']
    weights = [packed[name] for name in weight_order]

    def layer_spec(a):  # stream ONE layer's slice of the stacked weight per step
        nd = a.ndim
        return pl.BlockSpec((1,) + a.shape[1:],
                            lambda b, l, _nd=nd: (l,) + (0,) * (_nd - 1))

    in_specs = [
        pl.BlockSpec((BB, S, D), lambda b, l: (b, 0, 0)),
        pl.BlockSpec((BB, Ssrc, D), lambda b, l: (b, 0, 0)),
        pl.BlockSpec((BB, S, S), lambda b, l: (b, 0, 0)),
        pl.BlockSpec((BB, S, Ssrc), lambda b, l: (b, 0, 0)),
    ] + [layer_spec(w) for w in weights]

    # Advisory cost estimate so XLA schedules the surrounding graph sensibly.
    N = B * S
    Nsrc = B * Ssrc
    flops_layer = (2 * N * D * 4 * Hdh            # fused self-attn QRKV
                   + 2 * N * D * 2 * Hdh          # enc-attn QR
                   + 2 * Nsrc * D * 2 * Hdh       # enc-attn KV
                   + 4 * B * H * S * S * dh       # self scores + context
                   + 4 * B * H * S * Ssrc * dh    # enc scores + context
                   + 2 * 2 * N * Hdh * D          # two output projections
                   + 2 * N * D * D)               # KAN outer mix
    transcendentals = n_L * (N * D + B * H * S * (S + Ssrc) + 4 * N)
    bytes_accessed = (sum(int(np.prod(a.shape)) * a.dtype.itemsize
                          for a in [trg, src, trg_mask, src_mask] + weights)
                      + B * S * D * 4)

    return pl.pallas_call(
        kernel,
        out_shape=jax.ShapeDtypeStruct((B, S, D), jnp.float32),
        grid=(NB, n_L),
        in_specs=in_specs,
        out_specs=pl.BlockSpec((BB, S, D), lambda b, l: (b, 0, 0)),
        compiler_params=pltpu.CompilerParams(
            dimension_semantics=("parallel", "arbitrary")),
        cost_estimate=pl.CostEstimate(
            flops=int(n_L * flops_layer),
            transcendentals=int(transcendentals),
            bytes_accessed=int(bytes_accessed)),
    )(trg, src, trg_mask, src_mask, *weights)


# ----------------------------------------------------------------------------- #
# Parameter construction (shapes follow the module __init__) + kernel packing
# ----------------------------------------------------------------------------- #
def init_decoder_params(key, cfg):
    D, H, dh = cfg['d_x'], cfg['n_I'], cfg['d_q']

    def linear(k, fan_in, fan_out):
        lim = 1.0 / math.sqrt(fan_in)
        kw, kb = jax.random.split(k)
        w = jax.random.uniform(kw, (fan_in, fan_out), jnp.float32, -lim, lim)
        b = jax.random.uniform(kb, (1, fan_out), jnp.float32, -lim, lim)
        return w, b

    params = []
    for _ in range(cfg['n_L']):
        key, *ks = jax.random.split(key, 13)
        lp = {'ln_w': jnp.ones((4, D), jnp.float32),     # LayerNorm default init
              'ln_b': jnp.zeros((4, D), jnp.float32)}
        for prefix, kk in (('sa', ks[0:5]), ('ea', ks[5:10])):
            for nm, kx in zip(('q', 'r', 'k', 'v'), kk[:4]):
                w, b = linear(kx, D, H * dh)
                lp[f'{prefix}_w{nm}'] = w
                lp[f'{prefix}_b{nm}'] = b
            lp[f'{prefix}_wo'], lp[f'{prefix}_bo'] = linear(kk[4], H * dh, D)
        inner = 0.1 * jax.random.normal(ks[10], (D, cfg['num_knots']), jnp.float32)
        outer = 0.1 * jax.random.normal(ks[11], (D, D), jnp.float32)
        lp['kan_inner_T'] = inner.T        # (num_knots, D)
        lp['kan_outer_T'] = outer.T        # (in_dim, out_dim)
        params.append(lp)
    return params


def pack_decoder_params(params, cfg):
    """Stack per-layer params, fuse QRKV / QR / KV projections, fold 1/sqrt(d_k)
    into W_q, pack W_o head-major (H, dh, D), and cast matmul weights to bf16
    (biases / LN / inner coeffs stay f32)."""
    D, H, dh = cfg['d_x'], cfg['n_I'], cfg['d_q']
    scale = 1.0 / math.sqrt(cfg['d_k'])

    def stk(fn):
        return jnp.stack([fn(lp) for lp in params])

    packed = {
        'ln_w': stk(lambda lp: lp['ln_w']),                                # (L,4,D)
        'ln_b': stk(lambda lp: lp['ln_b']),
        'w_sa_qrkv': stk(lambda lp: jnp.concatenate(
            [lp['sa_wq'] * scale, lp['sa_wr'], lp['sa_wk'], lp['sa_wv']],
            axis=1)).astype(jnp.bfloat16),                                 # (L,D,4Hdh)
        'b_sa_qrkv': stk(lambda lp: jnp.concatenate(
            [lp['sa_bq'] * scale, lp['sa_br'], lp['sa_bk'], lp['sa_bv']], axis=1)),
        'w_sa_o': stk(lambda lp: lp['sa_wo'].reshape(H, dh, D)).astype(jnp.bfloat16),
        'b_sa_o': stk(lambda lp: lp['sa_bo']),
        'w_ea_qr': stk(lambda lp: jnp.concatenate(
            [lp['ea_wq'] * scale, lp['ea_wr']], axis=1)).astype(jnp.bfloat16),
        'b_ea_qr': stk(lambda lp: jnp.concatenate(
            [lp['ea_bq'] * scale, lp['ea_br']], axis=1)),
        'w_ea_kv': stk(lambda lp: jnp.concatenate(
            [lp['ea_wk'], lp['ea_wv']], axis=1)).astype(jnp.bfloat16),
        'b_ea_kv': stk(lambda lp: jnp.concatenate(
            [lp['ea_bk'], lp['ea_bv']], axis=1)),
        'w_ea_o': stk(lambda lp: lp['ea_wo'].reshape(H, dh, D)).astype(jnp.bfloat16),
        'b_ea_o': stk(lambda lp: lp['ea_bo']),
        'kan_inner': stk(lambda lp: lp['kan_inner_T']),                    # (L,K,D)
        'kan_outer': stk(lambda lp: lp['kan_outer_T']).astype(jnp.bfloat16),
    }
    return packed


# ----------------------------------------------------------------------------- #
# Pure-JAX f32 reference (mirrors the PyTorch math) for a correctness check
# ----------------------------------------------------------------------------- #
def _ref_ln(x, g, b, eps=1e-5):
    mu = x.mean(-1, keepdims=True)
    v = ((x - mu) ** 2).mean(-1, keepdims=True)
    return (x - mu) / jnp.sqrt(v + eps) * g + b


def _ref_attn(zq, zkv, mask, lp, prefix, H, dh, dk):
    B, Sq, _ = zq.shape
    Sk = zkv.shape[1]

    def proj(z, nm, S_):
        y = z @ lp[f'{prefix}_w{nm}'] + lp[f'{prefix}_b{nm}']
        return jnp.transpose(y.reshape(B, S_, H, dh), (0, 2, 1, 3))

    Q = proj(zq, 'q', Sq)
    R = proj(zq, 'r', Sq)
    K = proj(zkv, 'k', Sk)
    V = proj(zkv, 'v', Sk)
    dot = jnp.einsum('bhid,bhjd->bhij', Q, K) / math.sqrt(dk)
    dot = jnp.where(mask[:, None, :, :] == 0, -1e10, dot)
    attn = jax.nn.softmax(dot, axis=-1)
    vbar = jnp.einsum('bhjd,bhij->bhid', V, attn)
    newv = jnp.transpose(vbar * R, (0, 2, 1, 3)).reshape(B, Sq, H * dh)
    return newv @ lp[f'{prefix}_wo'] + lp[f'{prefix}_bo']


def _ref_kan(z, inner_t, outer_t, knots, num_knots, spline_order):
    x = jnp.tanh(z)
    inner = jnp.zeros_like(x)
    for k in range(num_knots - spline_order):
        inner = inner + _bspline_basis_recursive(x, knots, k, spline_order) * inner_t[k]
    return inner @ outer_t


def ref_decoder(trg, src, tmask, smask, params, cfg):
    H, dh, dk = cfg['n_I'], cfg['d_q'], cfg['d_k']
    for lp in params:
        z = _ref_ln(trg, lp['ln_w'][0], lp['ln_b'][0])
        trg = trg + _ref_attn(z, z, tmask, lp, 'sa', H, dh, dk)
        z = _ref_ln(trg, lp['ln_w'][1], lp['ln_b'][1])
        trg = trg + _ref_attn(z, src, smask, lp, 'ea', H, dh, dk)
        z = _ref_ln(trg, lp['ln_w'][2], lp['ln_b'][2])
        trg = trg + _ref_kan(z, lp['kan_inner_T'], lp['kan_outer_T'],
                             cfg['knots'], cfg['num_knots'], cfg['spline_order'])
        trg = _ref_ln(trg, lp['ln_w'][3], lp['ln_b'][3])
    return trg


# ----------------------------------------------------------------------------- #
if __name__ == "__main__":
    cfg = dict(d_x=32, n_I=4, d_q=8, d_k=8, d_v=8, d_r=8, n_L=2,
               num_knots=5, spline_order=3, dropout=0.0)
    cfg['knots'] = tuple(
        np.linspace(-1.0, 1.0, cfg['num_knots'] + cfg['spline_order']).tolist())

    B, S, Ssrc, D = 2, 8, 8, cfg['d_x']
    key = jax.random.PRNGKey(0)
    k_trg, k_src, k_par = jax.random.split(key, 3)

    trg = jax.random.normal(k_trg, (B, S, D), jnp.float32)
    src = jax.random.normal(k_src, (B, Ssrc, D), jnp.float32)
    trg_mask = jnp.broadcast_to(jnp.tril(jnp.ones((S, S), jnp.float32)), (B, S, S))
    src_mask = jnp.ones((B, S, Ssrc), jnp.float32)

    params = init_decoder_params(k_par, cfg)
    packed = pack_decoder_params(params, cfg)

    out = decoder_forward(trg, src, trg_mask, src_mask, packed, cfg)
    out = jax.block_until_ready(out)

    ref = ref_decoder(trg, src, trg_mask, src_mask, params, cfg)
    np.testing.assert_allclose(np.asarray(out), np.asarray(ref), atol=5e-2, rtol=5e-2)

    print("KERNEL_OK")
</pallas_src>

<mosaic_0001>
module attributes {stable_mosaic.version = 11 : i64} {
  func.func @_decoder_kernel(%arg0: i32, %arg1: i32, %arg2: memref<2x8x32xf32, #tpu.memory_space<vmem>>, %arg3: memref<2x8x32xf32, #tpu.memory_space<vmem>>, %arg4: memref<2x8x8xf32, #tpu.memory_space<vmem>>, %arg5: memref<2x8x8xf32, #tpu.memory_space<vmem>>, %arg6: memref<1x4x32xf32, #tpu.memory_space<vmem>>, %arg7: memref<1x4x32xf32, #tpu.memory_space<vmem>>, %arg8: memref<1x32x128xbf16, #tpu.memory_space<vmem>>, %arg9: memref<1x1x128xf32, #tpu.memory_space<vmem>>, %arg10: memref<1x4x8x32xbf16, #tpu.memory_space<vmem>>, %arg11: memref<1x1x32xf32, #tpu.memory_space<vmem>>, %arg12: memref<1x32x64xbf16, #tpu.memory_space<vmem>>, %arg13: memref<1x1x64xf32, #tpu.memory_space<vmem>>, %arg14: memref<1x32x64xbf16, #tpu.memory_space<vmem>>, %arg15: memref<1x1x64xf32, #tpu.memory_space<vmem>>, %arg16: memref<1x4x8x32xbf16, #tpu.memory_space<vmem>>, %arg17: memref<1x1x32xf32, #tpu.memory_space<vmem>>, %arg18: memref<1x5x32xf32, #tpu.memory_space<vmem>>, %arg19: memref<1x32x32xbf16, #tpu.memory_space<vmem>>, %arg20: memref<2x8x32xf32, #tpu.memory_space<vmem>>) attributes {dimension_semantics = [#tpu.dimension_semantics<parallel>, #tpu.dimension_semantics<arbitrary>], iteration_bounds = array<i64: 1, 2>, scalar_prefetch = 0 : i64, scratch_operands = 0 : i64, tpu.core_type = #tpu.core_type<tc>, window_params = [{transform_indices = @transform_0, window_bounds = array<i64: 2, 8, 32>}, {transform_indices = @transform_1, window_bounds = array<i64: 2, 8, 32>}, {transform_indices = @transform_2, window_bounds = array<i64: 2, 8, 8>}, {transform_indices = @transform_3, window_bounds = array<i64: 2, 8, 8>}, {transform_indices = @transform_4, window_bounds = array<i64: 1, 4, 32>}, {transform_indices = @transform_5, window_bounds = array<i64: 1, 4, 32>}, {transform_indices = @transform_6, window_bounds = array<i64: 1, 32, 128>}, {transform_indices = @transform_7, window_bounds = array<i64: 1, 1, 128>}, {transform_indices = @transform_8, window_bounds = array<i64: 1, 4, 8, 32>}, {transform_indices = @transform_9, window_bounds = array<i64: 1, 1, 32>}, {transform_indices = @transform_10, window_bounds = array<i64: 1, 32, 64>}, {transform_indices = @transform_11, window_bounds = array<i64: 1, 1, 64>}, {transform_indices = @transform_12, window_bounds = array<i64: 1, 32, 64>}, {transform_indices = @transform_13, window_bounds = array<i64: 1, 1, 64>}, {transform_indices = @transform_14, window_bounds = array<i64: 1, 4, 8, 32>}, {transform_indices = @transform_15, window_bounds = array<i64: 1, 1, 32>}, {transform_indices = @transform_16, window_bounds = array<i64: 1, 5, 32>}, {transform_indices = @transform_17, window_bounds = array<i64: 1, 32, 32>}, {transform_indices = @transform_18, window_bounds = array<i64: 2, 8, 32>}]} {
    %c0_i32 = arith.constant 0 : i32
    %0 = arith.cmpi eq, %arg1, %c0_i32 : i32
    %1 = arith.extui %0 : i1 to i32
    %c0_i32_0 = arith.constant 0 : i32
    %2 = arith.cmpi ne, %1, %c0_i32_0 : i32
    scf.if %2 {
      %c0_150 = arith.constant 0 : index
      %c0_151 = arith.constant 0 : index
      %c0_152 = arith.constant 0 : index
      %514 = vector.load %arg2[%c0_150, %c0_151, %c0_152] : memref<2x8x32xf32, #tpu.memory_space<vmem>>, vector<2x8x32xf32>
      %c0_153 = arith.constant 0 : index
      %c0_154 = arith.constant 0 : index
      %c0_155 = arith.constant 0 : index
      %515 = vector.load %arg20[%c0_153, %c0_154, %c0_155] : memref<2x8x32xf32, #tpu.memory_space<vmem>>, vector<2x8x32xf32>
      tpu.vector_store %arg20[%c0_153, %c0_154, %c0_155], %514 {strides = array<i32>} : memref<2x8x32xf32, #tpu.memory_space<vmem>>, vector<2x8x32xf32>,
    } else {
    }
    %c0 = arith.constant 0 : index
    %c0_1 = arith.constant 0 : index
    %c0_2 = arith.constant 0 : index
    %3 = vector.load %arg20[%c0, %c0_1, %c0_2] : memref<2x8x32xf32, #tpu.memory_space<vmem>>, vector<2x8x32xf32>
    %4 = vector.shape_cast %3 : vector<2x8x32xf32> to vector<16x32xf32>
    %c0_3 = arith.constant 0 : index
    %c0_4 = arith.constant 0 : index
    %c0_5 = arith.constant 0 : index
    %5 = vector.load %arg3[%c0_3, %c0_4, %c0_5] : memref<2x8x32xf32, #tpu.memory_space<vmem>>, vector<2x8x32xf32>
    %6 = vector.shape_cast %5 : vector<2x8x32xf32> to vector<16x32xf32>
    %7 = arith.truncf %6 : vector<16x32xf32> to vector<16x32xbf16>
    %c0_6 = arith.constant 0 : index
    %c0_7 = arith.constant 0 : index
    %c0_8 = arith.constant 0 : index
    %8 = vector.load %arg4[%c0_6, %c0_7, %c0_8] : memref<2x8x8xf32, #tpu.memory_space<vmem>>, vector<2x8x8xf32>
    %cst = arith.constant 0.000000e+00 : f32
    %9 = vector.broadcast %cst : f32 to vector<2x8x8xf32>
    %10 = arith.cmpf one, %8, %9 : vector<2x8x8xf32>
    %cst_9 = arith.constant 0.000000e+00 : f32
    %cst_10 = arith.constant -1.000000e+10 : f32
    %11 = vector.broadcast %cst_9 : f32 to vector<2x8x8xf32>
    %12 = vector.broadcast %cst_10 : f32 to vector<2x8x8xf32>
    %13 = arith.select %10, %11, %12 : vector<2x8x8xi1>, vector<2x8x8xf32>
    %c0_11 = arith.constant 0 : index
    %c0_12 = arith.constant 0 : index
    %c0_13 = arith.constant 0 : index
    %14 = vector.load %arg5[%c0_11, %c0_12, %c0_13] : memref<2x8x8xf32, #tpu.memory_space<vmem>>, vector<2x8x8xf32>
    %cst_14 = arith.constant 0.000000e+00 : f32
    %15 = vector.broadcast %cst_14 : f32 to vector<2x8x8xf32>
    %16 = arith.cmpf one, %14, %15 : vector<2x8x8xf32>
    %cst_15 = arith.constant 0.000000e+00 : f32
    %cst_16 = arith.constant -1.000000e+10 : f32
    %17 = vector.broadcast %cst_15 : f32 to vector<2x8x8xf32>
    %18 = vector.broadcast %cst_16 : f32 to vector<2x8x8xf32>
    %19 = arith.select %16, %17, %18 : vector<2x8x8xi1>, vector<2x8x8xf32>
    %20 = tpu.concatenate %13, %13, %13, %13 in 0 : vector<2x8x8xf32>, vector<2x8x8xf32>, vector<2x8x8xf32>, vector<2x8x8xf32> -> vector<8x8x8xf32>
    %21 = tpu.concatenate %19, %19, %19, %19 in 0 : vector<2x8x8xf32>, vector<2x8x8xf32>, vector<2x8x8xf32>, vector<2x8x8xf32> -> vector<8x8x8xf32>
    %c0_17 = arith.constant 0 : index
    %c0_18 = arith.constant 0 : index
    %c0_19 = arith.constant 0 : index
    %22 = vector.load %arg6[%c0_17, %c0_18, %c0_19] : memref<1x4x32xf32, #tpu.memory_space<vmem>>, vector<1x4x32xf32>
    %23 = vector.shape_cast %22 : vector<1x4x32xf32> to vector<4x32xf32>
    %c0_20 = arith.constant 0 : index
    %c0_21 = arith.constant 0 : index
    %c0_22 = arith.constant 0 : index
    %24 = vector.load %arg7[%c0_20, %c0_21, %c0_22] : memref<1x4x32xf32, #tpu.memory_space<vmem>>, vector<1x4x32xf32>
    %25 = vector.shape_cast %24 : vector<1x4x32xf32> to vector<4x32xf32>
    %26 = vector.extract_strided_slice %23 {offsets = [0, 0], sizes = [1, 32], strides = [1, 1]} : vector<4x32xf32> to vector<1x32xf32>
    %27 = vector.extract_strided_slice %25 {offsets = [0, 0], sizes = [1, 32], strides = [1, 1]} : vector<4x32xf32> to vector<1x32xf32>
    %cst_23 = arith.constant dense<0.000000e+00> : vector<16xf32>
    %28 = vector.multi_reduction <add>, %4, %cst_23 [1] : vector<16x32xf32> to vector<16xf32>
    %29 = vector.shape_cast %28 : vector<16xf32> to vector<16x1xf32>
    %cst_24 = arith.constant 3.200000e+01 : f32
    %30 = vector.broadcast %cst_24 : f32 to vector<16x1xf32>
    %31 = arith.divf %29, %30 : vector<16x1xf32>
    %32 = vector.broadcast %31 : vector<16x1xf32> to vector<16x32xf32>
    %33 = arith.subf %4, %32 : vector<16x32xf32>
    %34 = arith.mulf %33, %33 : vector<16x32xf32>
    %cst_25 = arith.constant dense<0.000000e+00> : vector<16xf32>
    %35 = vector.multi_reduction <add>, %34, %cst_25 [1] : vector<16x32xf32> to vector<16xf32>
    %36 = vector.shape_cast %35 : vector<16xf32> to vector<16x1xf32>
    %cst_26 = arith.constant 3.200000e+01 : f32
    %37 = vector.broadcast %cst_26 : f32 to vector<16x1xf32>
    %38 = arith.divf %36, %37 : vector<16x1xf32>
    %cst_27 = arith.constant 9.99999974E-6 : f32
    %39 = vector.broadcast %cst_27 : f32 to vector<16x1xf32>
    %40 = arith.addf %38, %39 : vector<16x1xf32>
    %41 = math.rsqrt %40 : vector<16x1xf32>
    %42 = vector.broadcast %41 : vector<16x1xf32> to vector<16x32xf32>
    %43 = arith.mulf %33, %42 : vector<16x32xf32>
    %44 = vector.broadcast %26 : vector<1x32xf32> to vector<16x32xf32>
    %45 = arith.mulf %43, %44 : vector<16x32xf32>
    %46 = vector.broadcast %27 : vector<1x32xf32> to vector<16x32xf32>
    %47 = arith.addf %45, %46 : vector<16x32xf32>
    %48 = arith.truncf %47 : vector<16x32xf32> to vector<16x32xbf16>
    %c0_28 = arith.constant 0 : index
    %c0_29 = arith.constant 0 : index
    %c0_30 = arith.constant 0 : index
    %49 = vector.load %arg8[%c0_28, %c0_29, %c0_30] : memref<1x32x128xbf16, #tpu.memory_space<vmem>>, vector<1x32x128xbf16>
    %50 = vector.shape_cast %49 : vector<1x32x128xbf16> to vector<32x128xbf16>
    %cst_31 = arith.constant dense<0.000000e+00> : vector<16x128xf32>
    %51 = tpu.matmul %48, %50, %cst_31 {dimension_numbers = #tpu.dot_dimension_numbers<[1], [0], [0], [1], [0, 0, 1, 1], [], []>} : vector<16x32xbf16>, vector<32x128xbf16>, vector<16x128xf32> -> vector<16x128xf32>
    %c0_32 = arith.constant 0 : index
    %c0_33 = arith.constant 0 : index
    %c0_34 = arith.constant 0 : index
    %52 = vector.load %arg9[%c0_32, %c0_33, %c0_34] : memref<1x1x128xf32, #tpu.memory_space<vmem>>, vector<1x1x128xf32>
    %53 = vector.shape_cast %52 : vector<1x1x128xf32> to vector<1x128xf32>
    %54 = vector.broadcast %53 : vector<1x128xf32> to vector<16x128xf32>
    %55 = arith.addf %51, %54 : vector<16x128xf32>
    %56 = vector.extract_strided_slice %55 {offsets = [0, 0], sizes = [16, 32], strides = [1, 1]} : vector<16x128xf32> to vector<16x32xf32>
    %57 = vector.extract_strided_slice %55 {offsets = [0, 32], sizes = [16, 32], strides = [1, 1]} : vector<16x128xf32> to vector<16x32xf32>
    %58 = vector.extract_strided_slice %55 {offsets = [0, 64], sizes = [16, 32], strides = [1, 1]} : vector<16x128xf32> to vector<16x32xf32>
    %59 = vector.extract_strided_slice %55 {offsets = [0, 96], sizes = [16, 32], strides = [1, 1]} : vector<16x128xf32> to vector<16x32xf32>
    %c0_35 = arith.constant 0 : index
    %c0_36 = arith.constant 0 : index
    %c0_37 = arith.constant 0 : index
    %c0_38 = arith.constant 0 : index
    %60 = vector.load %arg10[%c0_35, %c0_36, %c0_37, %c0_38] : memref<1x4x8x32xbf16, #tpu.memory_space<vmem>>, vector<1x4x8x32xbf16>
    %61 = vector.shape_cast %60 : vector<1x4x8x32xbf16> to vector<4x8x32xbf16>
    %c0_39 = arith.constant 0 : index
    %c0_40 = arith.constant 0 : index
    %c0_41 = arith.constant 0 : index
    %62 = vector.load %arg11[%c0_39, %c0_40, %c0_41] : memref<1x1x32xf32, #tpu.memory_space<vmem>>, vector<1x1x32xf32>
    %63 = vector.shape_cast %62 : vector<1x1x32xf32> to vector<1x32xf32>
    %64 = vector.extract_strided_slice %56 {offsets = [0, 0], sizes = [16, 8], strides = [1, 1]} : vector<16x32xf32> to vector<16x8xf32>
    %65 = vector.shape_cast %64 : vector<16x8xf32> to vector<2x8x8xf32>
    %66 = vector.extract_strided_slice %56 {offsets = [0, 8], sizes = [16, 8], strides = [1, 1]} : vector<16x32xf32> to vector<16x8xf32>
    %67 = vector.shape_cast %66 : vector<16x8xf32> to vector<2x8x8xf32>
    %68 = vector.extract_strided_slice %56 {offsets = [0, 16], sizes = [16, 8], strides = [1, 1]} : vector<16x32xf32> to vector<16x8xf32>
    %69 = vector.shape_cast %68 : vector<16x8xf32> to vector<2x8x8xf32>
    %70 = vector.extract_strided_slice %56 {offsets = [0, 24], sizes = [16, 8], strides = [1, 1]} : vector<16x32xf32> to vector<16x8xf32>
    %71 = vector.shape_cast %70 : vector<16x8xf32> to vector<2x8x8xf32>
    %72 = vector.shape_cast %65 : vector<2x8x8xf32> to vector<1x2x8x8xf32>
    %73 = vector.shape_cast %67 : vector<2x8x8xf32> to vector<1x2x8x8xf32>
    %74 = vector.shape_cast %69 : vector<2x8x8xf32> to vector<1x2x8x8xf32>
    %75 = vector.shape_cast %71 : vector<2x8x8xf32> to vector<1x2x8x8xf32>
    %76 = tpu.concatenate %72, %73, %74, %75 in 0 : vector<1x2x8x8xf32>, vector<1x2x8x8xf32>, vector<1x2x8x8xf32>, vector<1x2x8x8xf32> -> vector<4x2x8x8xf32>
    %77 = vector.shape_cast %76 : vector<4x2x8x8xf32> to vector<8x8x8xf32>
    %78 = arith.truncf %77 : vector<8x8x8xf32> to vector<8x8x8xbf16>
    %79 = vector.extract_strided_slice %58 {offsets = [0, 0], sizes = [16, 8], strides = [1, 1]} : vector<16x32xf32> to vector<16x8xf32>
    %80 = vector.shape_cast %79 : vector<16x8xf32> to vector<2x8x8xf32>
    %81 = vector.extract_strided_slice %58 {offsets = [0, 8], sizes = [16, 8], strides = [1, 1]} : vector<16x32xf32> to vector<16x8xf32>
    %82 = vector.shape_cast %81 : vector<16x8xf32> to vector<2x8x8xf32>
    %83 = vector.extract_strided_slice %58 {offsets = [0, 16], sizes = [16, 8], strides = [1, 1]} : vector<16x32xf32> to vector<16x8xf32>
    %84 = vector.shape_cast %83 : vector<16x8xf32> to vector<2x8x8xf32>
    %85 = vector.extract_strided_slice %58 {offsets = [0, 24], sizes = [16, 8], strides = [1, 1]} : vector<16x32xf32> to vector<16x8xf32>
    %86 = vector.shape_cast %85 : vector<16x8xf32> to vector<2x8x8xf32>
    %87 = vector.shape_cast %80 : vector<2x8x8xf32> to vector<1x2x8x8xf32>
    %88 = vector.shape_cast %82 : vector<2x8x8xf32> to vector<1x2x8x8xf32>
    %89 = vector.shape_cast %84 : vector<2x8x8xf32> to vector<1x2x8x8xf32>
    %90 = vector.shape_cast %86 : vector<2x8x8xf32> to vector<1x2x8x8xf32>
    %91 = tpu.concatenate %87, %88, %89, %90 in 0 : vector<1x2x8x8xf32>, vector<1x2x8x8xf32>, vector<1x2x8x8xf32>, vector<1x2x8x8xf32> -> vector<4x2x8x8xf32>
    %92 = vector.shape_cast %91 : vector<4x2x8x8xf32> to vector<8x8x8xf32>
    %93 = arith.truncf %92 : vector<8x8x8xf32> to vector<8x8x8xbf16>
    %94 = vector.extract_strided_slice %59 {offsets = [0, 0], sizes = [16, 8], strides = [1, 1]} : vector<16x32xf32> to vector<16x8xf32>
    %95 = vector.shape_cast %94 : vector<16x8xf32> to vector<2x8x8xf32>
    %96 = vector.extract_strided_slice %59 {offsets = [0, 8], sizes = [16, 8], strides = [1, 1]} : vector<16x32xf32> to vector<16x8xf32>
    %97 = vector.shape_cast %96 : vector<16x8xf32> to vector<2x8x8xf32>
    %98 = vector.extract_strided_slice %59 {offsets = [0, 16], sizes = [16, 8], strides = [1, 1]} : vector<16x32xf32> to vector<16x8xf32>
    %99 = vector.shape_cast %98 : vector<16x8xf32> to vector<2x8x8xf32>
    %100 = vector.extract_strided_slice %59 {offsets = [0, 24], sizes = [16, 8], strides = [1, 1]} : vector<16x32xf32> to vector<16x8xf32>
    %101 = vector.shape_cast %100 : vector<16x8xf32> to vector<2x8x8xf32>
    %102 = vector.shape_cast %95 : vector<2x8x8xf32> to vector<1x2x8x8xf32>
    %103 = vector.shape_cast %97 : vector<2x8x8xf32> to vector<1x2x8x8xf32>
    %104 = vector.shape_cast %99 : vector<2x8x8xf32> to vector<1x2x8x8xf32>
    %105 = vector.shape_cast %101 : vector<2x8x8xf32> to vector<1x2x8x8xf32>
    %106 = tpu.concatenate %102, %103, %104, %105 in 0 : vector<1x2x8x8xf32>, vector<1x2x8x8xf32>, vector<1x2x8x8xf32>, vector<1x2x8x8xf32> -> vector<4x2x8x8xf32>
    %107 = vector.shape_cast %106 : vector<4x2x8x8xf32> to vector<8x8x8xf32>
    %108 = arith.truncf %107 : vector<8x8x8xf32> to vector<8x8x8xbf16>
    "tpu.trace_start"() <{level = 10 : i32, message = "bqd,bkd->bqk"}> : () -> ()
    %cst_42 = arith.constant dense<0.000000e+00> : vector<8x8x8xf32>
    %109 = tpu.matmul %78, %93, %cst_42 {dimension_numbers = #tpu.dot_dimension_numbers<[2], [2], [1], [1], [0, 0, 0, 1, 1, 1], [0], [0]>} : vector<8x8x8xbf16>, vector<8x8x8xbf16>, vector<8x8x8xf32> -> vector<8x8x8xf32>
    "tpu.trace_stop"() : () -> ()
    %110 = arith.addf %109, %20 : vector<8x8x8xf32>
    %cst_43 = arith.constant dense<0xFF800000> : vector<8x8xf32>
    %111 = vector.multi_reduction <maximumf>, %110, %cst_43 [2] : vector<8x8x8xf32> to vector<8x8xf32>
    %112 = vector.shape_cast %111 : vector<8x8xf32> to vector<8x8x1xf32>
    %113 = vector.broadcast %112 : vector<8x8x1xf32> to vector<8x8x8xf32>
    %114 = arith.subf %110, %113 : vector<8x8x8xf32>
    %115 = math.exp %114 : vector<8x8x8xf32>
    %cst_44 = arith.constant dense<0.000000e+00> : vector<8x8xf32>
    %116 = vector.multi_reduction <add>, %115, %cst_44 [2] : vector<8x8x8xf32> to vector<8x8xf32>
    %117 = vector.shape_cast %116 : vector<8x8xf32> to vector<8x8x1xf32>
    %118 = tpu.reciprocal %117 {approx = true} : vector<8x8x1xf32> -> vector<8x8x1xf32>
    %119 = vector.broadcast %118 : vector<8x8x1xf32> to vector<8x8x8xf32>
    %120 = arith.mulf %115, %119 : vector<8x8x8xf32>
    %121 = arith.truncf %120 : vector<8x8x8xf32> to vector<8x8x8xbf16>
    "tpu.trace_start"() <{level = 10 : i32, message = "bqk,bkd->bqd"}> : () -> ()
    %cst_45 = arith.constant dense<0.000000e+00> : vector<8x8x8xf32>
    %122 = tpu.matmul %121, %108, %cst_45 {dimension_numbers = #tpu.dot_dimension_numbers<[2], [1], [1], [2], [0, 0, 0, 1, 1, 2], [0], [0]>} : vector<8x8x8xbf16>, vector<8x8x8xbf16>, vector<8x8x8xf32> -> vector<8x8x8xf32>
    "tpu.trace_stop"() : () -> ()
    %123 = vector.extract_strided_slice %57 {offsets = [0, 0], sizes = [16, 8], strides = [1, 1]} : vector<16x32xf32> to vector<16x8xf32>
    %124 = vector.shape_cast %123 : vector<16x8xf32> to vector<2x8x8xf32>
    %125 = vector.extract_strided_slice %57 {offsets = [0, 8], sizes = [16, 8], strides = [1, 1]} : vector<16x32xf32> to vector<16x8xf32>
    %126 = vector.shape_cast %125 : vector<16x8xf32> to vector<2x8x8xf32>
    %127 = vector.extract_strided_slice %57 {offsets = [0, 16], sizes = [16, 8], strides = [1, 1]} : vector<16x32xf32> to vector<16x8xf32>
    %128 = vector.shape_cast %127 : vector<16x8xf32> to vector<2x8x8xf32>
    %129 = vector.extract_strided_slice %57 {offsets = [0, 24], sizes = [16, 8], strides = [1, 1]} : vector<16x32xf32> to vector<16x8xf32>
    %130 = vector.shape_cast %129 : vector<16x8xf32> to vector<2x8x8xf32>
    %131 = vector.shape_cast %124 : vector<2x8x8xf32> to vector<1x2x8x8xf32>
    %132 = vector.shape_cast %126 : vector<2x8x8xf32> to vector<1x2x8x8xf32>
    %133 = vector.shape_cast %128 : vector<2x8x8xf32> to vector<1x2x8x8xf32>
    %134 = vector.shape_cast %130 : vector<2x8x8xf32> to vector<1x2x8x8xf32>
    %135 = tpu.concatenate %131, %132, %133, %134 in 0 : vector<1x2x8x8xf32>, vector<1x2x8x8xf32>, vector<1x2x8x8xf32>, vector<1x2x8x8xf32> -> vector<4x2x8x8xf32>
    %136 = vector.shape_cast %135 : vector<4x2x8x8xf32> to vector<8x8x8xf32>
    %137 = arith.mulf %122, %136 : vector<8x8x8xf32>
    %138 = vector.shape_cast %137 : vector<8x8x8xf32> to vector<4x16x8xf32>
    %139 = vector.extract_strided_slice %138 {offsets = [0, 0, 0], sizes = [1, 16, 8], strides = [1, 1, 1]} : vector<4x16x8xf32> to vector<1x16x8xf32>
    %140 = vector.shape_cast %139 : vector<1x16x8xf32> to vector<16x8xf32>
    %141 = arith.truncf %140 : vector<16x8xf32> to vector<16x8xbf16>
    %142 = vector.extract_strided_slice %61 {offsets = [0, 0, 0], sizes = [1, 8, 32], strides = [1, 1, 1]} : vector<4x8x32xbf16> to vector<1x8x32xbf16>
    %143 = vector.shape_cast %142 : vector<1x8x32xbf16> to vector<8x32xbf16>
    %cst_46 = arith.constant dense<0.000000e+00> : vector<16x32xf32>
    %144 = tpu.matmul %141, %143, %cst_46 {dimension_numbers = #tpu.dot_dimension_numbers<[1], [0], [0], [1], [0, 0, 1, 1], [], []>} : vector<16x8xbf16>, vector<8x32xbf16>, vector<16x32xf32> -> vector<16x32xf32>
    %145 = vector.extract_strided_slice %138 {offsets = [1, 0, 0], sizes = [1, 16, 8], strides = [1, 1, 1]} : vector<4x16x8xf32> to vector<1x16x8xf32>
    %146 = vector.shape_cast %145 : vector<1x16x8xf32> to vector<16x8xf32>
    %147 = arith.truncf %146 : vector<16x8xf32> to vector<16x8xbf16>
    %148 = vector.extract_strided_slice %61 {offsets = [1, 0, 0], sizes = [1, 8, 32], strides = [1, 1, 1]} : vector<4x8x32xbf16> to vector<1x8x32xbf16>
    %149 = vector.shape_cast %148 : vector<1x8x32xbf16> to vector<8x32xbf16>
    %cst_47 = arith.constant dense<0.000000e+00> : vector<16x32xf32>
    %150 = tpu.matmul %147, %149, %cst_47 {dimension_numbers = #tpu.dot_dimension_numbers<[1], [0], [0], [1], [0, 0, 1, 1], [], []>} : vector<16x8xbf16>, vector<8x32xbf16>, vector<16x32xf32> -> vector<16x32xf32>
    %151 = arith.addf %144, %150 : vector<16x32xf32>
    %152 = vector.extract_strided_slice %138 {offsets = [2, 0, 0], sizes = [1, 16, 8], strides = [1, 1, 1]} : vector<4x16x8xf32> to vector<1x16x8xf32>
    %153 = vector.shape_cast %152 : vector<1x16x8xf32> to vector<16x8xf32>
    %154 = arith.truncf %153 : vector<16x8xf32> to vector<16x8xbf16>
    %155 = vector.extract_strided_slice %61 {offsets = [2, 0, 0], sizes = [1, 8, 32], strides = [1, 1, 1]} : vector<4x8x32xbf16> to vector<1x8x32xbf16>
    %156 = vector.shape_cast %155 : vector<1x8x32xbf16> to vector<8x32xbf16>
    %cst_48 = arith.constant dense<0.000000e+00> : vector<16x32xf32>
    %157 = tpu.matmul %154, %156, %cst_48 {dimension_numbers = #tpu.dot_dimension_numbers<[1], [0], [0], [1], [0, 0, 1, 1], [], []>} : vector<16x8xbf16>, vector<8x32xbf16>, vector<16x32xf32> -> vector<16x32xf32>
    %158 = arith.addf %151, %157 : vector<16x32xf32>
    %159 = vector.extract_strided_slice %138 {offsets = [3, 0, 0], sizes = [1, 16, 8], strides = [1, 1, 1]} : vector<4x16x8xf32> to vector<1x16x8xf32>
    %160 = vector.shape_cast %159 : vector<1x16x8xf32> to vector<16x8xf32>
    %161 = arith.truncf %160 : vector<16x8xf32> to vector<16x8xbf16>
    %162 = vector.extract_strided_slice %61 {offsets = [3, 0, 0], sizes = [1, 8, 32], strides = [1, 1, 1]} : vector<4x8x32xbf16> to vector<1x8x32xbf16>
    %163 = vector.shape_cast %162 : vector<1x8x32xbf16> to vector<8x32xbf16>
    %cst_49 = arith.constant dense<0.000000e+00> : vector<16x32xf32>
    %164 = tpu.matmul %161, %163, %cst_49 {dimension_numbers = #tpu.dot_dimension_numbers<[1], [0], [0], [1], [0, 0, 1, 1], [], []>} : vector<16x8xbf16>, vector<8x32xbf16>, vector<16x32xf32> -> vector<16x32xf32>
    %165 = arith.addf %158, %164 : vector<16x32xf32>
    %166 = vector.broadcast %63 : vector<1x32xf32> to vector<16x32xf32>
    %167 = arith.addf %165, %166 : vector<16x32xf32>
    %168 = arith.addf %4, %167 : vector<16x32xf32>
    %169 = vector.extract_strided_slice %23 {offsets = [1, 0], sizes = [1, 32], strides = [1, 1]} : vector<4x32xf32> to vector<1x32xf32>
    %170 = vector.extract_strided_slice %25 {offsets = [1, 0], sizes = [1, 32], strides = [1, 1]} : vector<4x32xf32> to vector<1x32xf32>
    %cst_50 = arith.constant dense<0.000000e+00> : vector<16xf32>
    %171 = vector.multi_reduction <add>, %168, %cst_50 [1] : vector<16x32xf32> to vector<16xf32>
    %172 = vector.shape_cast %171 : vector<16xf32> to vector<16x1xf32>
    %cst_51 = arith.constant 3.200000e+01 : f32
    %173 = vector.broadcast %cst_51 : f32 to vector<16x1xf32>
    %174 = arith.divf %172, %173 : vector<16x1xf32>
    %175 = vector.broadcast %174 : vector<16x1xf32> to vector<16x32xf32>
    %176 = arith.subf %168, %175 : vector<16x32xf32>
    %177 = arith.mulf %176, %176 : vector<16x32xf32>
    %cst_52 = arith.constant dense<0.000000e+00> : vector<16xf32>
    %178 = vector.multi_reduction <add>, %177, %cst_52 [1] : vector<16x32xf32> to vector<16xf32>
    %179 = vector.shape_cast %178 : vector<16xf32> to vector<16x1xf32>
    %cst_53 = arith.constant 3.200000e+01 : f32
    %180 = vector.broadcast %cst_53 : f32 to vector<16x1xf32>
    %181 = arith.divf %179, %180 : vector<16x1xf32>
    %cst_54 = arith.constant 9.99999974E-6 : f32
    %182 = vector.broadcast %cst_54 : f32 to vector<16x1xf32>
    %183 = arith.addf %181, %182 : vector<16x1xf32>
    %184 = math.rsqrt %183 : vector<16x1xf32>
    %185 = vector.broadcast %184 : vector<16x1xf32> to vector<16x32xf32>
    %186 = arith.mulf %176, %185 : vector<16x32xf32>
    %187 = vector.broadcast %169 : vector<1x32xf32> to vector<16x32xf32>
    %188 = arith.mulf %186, %187 : vector<16x32xf32>
    %189 = vector.broadcast %170 : vector<1x32xf32> to vector<16x32xf32>
    %190 = arith.addf %188, %189 : vector<16x32xf32>
    %191 = arith.truncf %190 : vector<16x32xf32> to vector<16x32xbf16>
    %c0_55 = arith.constant 0 : index
    %c0_56 = arith.constant 0 : index
    %c0_57 = arith.constant 0 : index
    %192 = vector.load %arg12[%c0_55, %c0_56, %c0_57] : memref<1x32x64xbf16, #tpu.memory_space<vmem>>, vector<1x32x64xbf16>
    %193 = vector.shape_cast %192 : vector<1x32x64xbf16> to vector<32x64xbf16>
    %cst_58 = arith.constant dense<0.000000e+00> : vector<16x64xf32>
    %194 = tpu.matmul %191, %193, %cst_58 {dimension_numbers = #tpu.dot_dimension_numbers<[1], [0], [0], [1], [0, 0, 1, 1], [], []>} : vector<16x32xbf16>, vector<32x64xbf16>, vector<16x64xf32> -> vector<16x64xf32>
    %c0_59 = arith.constant 0 : index
    %c0_60 = arith.constant 0 : index
    %c0_61 = arith.constant 0 : index
    %195 = vector.load %arg13[%c0_59, %c0_60, %c0_61] : memref<1x1x64xf32, #tpu.memory_space<vmem>>, vector<1x1x64xf32>
    %196 = vector.shape_cast %195 : vector<1x1x64xf32> to vector<1x64xf32>
    %197 = vector.broadcast %196 : vector<1x64xf32> to vector<16x64xf32>
    %198 = arith.addf %194, %197 : vector<16x64xf32>
    %c0_62 = arith.constant 0 : index
    %c0_63 = arith.constant 0 : index
    %c0_64 = arith.constant 0 : index
    %199 = vector.load %arg14[%c0_62, %c0_63, %c0_64] : memref<1x32x64xbf16, #tpu.memory_space<vmem>>, vector<1x32x64xbf16>
    %200 = vector.shape_cast %199 : vector<1x32x64xbf16> to vector<32x64xbf16>
    %cst_65 = arith.constant dense<0.000000e+00> : vector<16x64xf32>
    %201 = tpu.matmul %7, %200, %cst_65 {dimension_numbers = #tpu.dot_dimension_numbers<[1], [0], [0], [1], [0, 0, 1, 1], [], []>} : vector<16x32xbf16>, vector<32x64xbf16>, vector<16x64xf32> -> vector<16x64xf32>
    %c0_66 = arith.constant 0 : index
    %c0_67 = arith.constant 0 : index
    %c0_68 = arith.constant 0 : index
    %202 = vector.load %arg15[%c0_66, %c0_67, %c0_68] : memref<1x1x64xf32, #tpu.memory_space<vmem>>, vector<1x1x64xf32>
    %203 = vector.shape_cast %202 : vector<1x1x64xf32> to vector<1x64xf32>
    %204 = vector.broadcast %203 : vector<1x64xf32> to vector<16x64xf32>
    %205 = arith.addf %201, %204 : vector<16x64xf32>
    %206 = vector.extract_strided_slice %198 {offsets = [0, 0], sizes = [16, 32], strides = [1, 1]} : vector<16x64xf32> to vector<16x32xf32>
    %207 = vector.extract_strided_slice %198 {offsets = [0, 32], sizes = [16, 32], strides = [1, 1]} : vector<16x64xf32> to vector<16x32xf32>
    %208 = vector.extract_strided_slice %205 {offsets = [0, 0], sizes = [16, 32], strides = [1, 1]} : vector<16x64xf32> to vector<16x32xf32>
    %209 = vector.extract_strided_slice %205 {offsets = [0, 32], sizes = [16, 32], strides = [1, 1]} : vector<16x64xf32> to vector<16x32xf32>
    %c0_69 = arith.constant 0 : index
    %c0_70 = arith.constant 0 : index
    %c0_71 = arith.constant 0 : index
    %c0_72 = arith.constant 0 : index
    %210 = vector.load %arg16[%c0_69, %c0_70, %c0_71, %c0_72] : memref<1x4x8x32xbf16, #tpu.memory_space<vmem>>, vector<1x4x8x32xbf16>
    %211 = vector.shape_cast %210 : vector<1x4x8x32xbf16> to vector<4x8x32xbf16>
    %c0_73 = arith.constant 0 : index
    %c0_74 = arith.constant 0 : index
    %c0_75 = arith.constant 0 : index
    %212 = vector.load %arg17[%c0_73, %c0_74, %c0_75] : memref<1x1x32xf32, #tpu.memory_space<vmem>>, vector<1x1x32xf32>
    %213 = vector.shape_cast %212 : vector<1x1x32xf32> to vector<1x32xf32>
    %214 = vector.extract_strided_slice %206 {offsets = [0, 0], sizes = [16, 8], strides = [1, 1]} : vector<16x32xf32> to vector<16x8xf32>
    %215 = vector.shape_cast %214 : vector<16x8xf32> to vector<2x8x8xf32>
    %216 = vector.extract_strided_slice %206 {offsets = [0, 8], sizes = [16, 8], strides = [1, 1]} : vector<16x32xf32> to vector<16x8xf32>
    %217 = vector.shape_cast %216 : vector<16x8xf32> to vector<2x8x8xf32>
    %218 = vector.extract_strided_slice %206 {offsets = [0, 16], sizes = [16, 8], strides = [1, 1]} : vector<16x32xf32> to vector<16x8xf32>
    %219 = vector.shape_cast %218 : vector<16x8xf32> to vector<2x8x8xf32>
    %220 = vector.extract_strided_slice %206 {offsets = [0, 24], sizes = [16, 8], strides = [1, 1]} : vector<16x32xf32> to vector<16x8xf32>
    %221 = vector.shape_cast %220 : vector<16x8xf32> to vector<2x8x8xf32>
    %222 = vector.shape_cast %215 : vector<2x8x8xf32> to vector<1x2x8x8xf32>
    %223 = vector.shape_cast %217 : vector<2x8x8xf32> to vector<1x2x8x8xf32>
    %224 = vector.shape_cast %219 : vector<2x8x8xf32> to vector<1x2x8x8xf32>
    %225 = vector.shape_cast %221 : vector<2x8x8xf32> to vector<1x2x8x8xf32>
    %226 = tpu.concatenate %222, %223, %224, %225 in 0 : vector<1x2x8x8xf32>, vector<1x2x8x8xf32>, vector<1x2x8x8xf32>, vector<1x2x8x8xf32> -> vector<4x2x8x8xf32>
    %227 = vector.shape_cast %226 : vector<4x2x8x8xf32> to vector<8x8x8xf32>
    %228 = arith.truncf %227 : vector<8x8x8xf32> to vector<8x8x8xbf16>
    %229 = vector.extract_strided_slice %208 {offsets = [0, 0], sizes = [16, 8], strides = [1, 1]} : vector<16x32xf32> to vector<16x8xf32>
    %230 = vector.shape_cast %229 : vector<16x8xf32> to vector<2x8x8xf32>
    %231 = vector.extract_strided_slice %208 {offsets = [0, 8], sizes = [16, 8], strides = [1, 1]} : vector<16x32xf32> to vector<16x8xf32>
    %232 = vector.shape_cast %231 : vector<16x8xf32> to vector<2x8x8xf32>
    %233 = vector.extract_strided_slice %208 {offsets = [0, 16], sizes = [16, 8], strides = [1, 1]} : vector<16x32xf32> to vector<16x8xf32>
    %234 = vector.shape_cast %233 : vector<16x8xf32> to vector<2x8x8xf32>
    %235 = vector.extract_strided_slice %208 {offsets = [0, 24], sizes = [16, 8], strides = [1, 1]} : vector<16x32xf32> to vector<16x8xf32>
    %236 = vector.shape_cast %235 : vector<16x8xf32> to vector<2x8x8xf32>
    %237 = vector.shape_cast %230 : vector<2x8x8xf32> to vector<1x2x8x8xf32>
    %238 = vector.shape_cast %232 : vector<2x8x8xf32> to vector<1x2x8x8xf32>
    %239 = vector.shape_cast %234 : vector<2x8x8xf32> to vector<1x2x8x8xf32>
    %240 = vector.shape_cast %236 : vector<2x8x8xf32> to vector<1x2x8x8xf32>
    %241 = tpu.concatenate %237, %238, %239, %240 in 0 : vector<1x2x8x8xf32>, vector<1x2x8x8xf32>, vector<1x2x8x8xf32>, vector<1x2x8x8xf32> -> vector<4x2x8x8xf32>
    %242 = vector.shape_cast %241 : vector<4x2x8x8xf32> to vector<8x8x8xf32>
    %243 = arith.truncf %242 : vector<8x8x8xf32> to vector<8x8x8xbf16>
    %244 = vector.extract_strided_slice %209 {offsets = [0, 0], sizes = [16, 8], strides = [1, 1]} : vector<16x32xf32> to vector<16x8xf32>
    %245 = vector.shape_cast %244 : vector<16x8xf32> to vector<2x8x8xf32>
    %246 = vector.extract_strided_slice %209 {offsets = [0, 8], sizes = [16, 8], strides = [1, 1]} : vector<16x32xf32> to vector<16x8xf32>
    %247 = vector.shape_cast %246 : vector<16x8xf32> to vector<2x8x8xf32>
    %248 = vector.extract_strided_slice %209 {offsets = [0, 16], sizes = [16, 8], strides = [1, 1]} : vector<16x32xf32> to vector<16x8xf32>
    %249 = vector.shape_cast %248 : vector<16x8xf32> to vector<2x8x8xf32>
    %250 = vector.extract_strided_slice %209 {offsets = [0, 24], sizes = [16, 8], strides = [1, 1]} : vector<16x32xf32> to vector<16x8xf32>
    %251 = vector.shape_cast %250 : vector<16x8xf32> to vector<2x8x8xf32>
    %252 = vector.shape_cast %245 : vector<2x8x8xf32> to vector<1x2x8x8xf32>
    %253 = vector.shape_cast %247 : vector<2x8x8xf32> to vector<1x2x8x8xf32>
    %254 = vector.shape_cast %249 : vector<2x8x8xf32> to vector<1x2x8x8xf32>
    %255 = vector.shape_cast %251 : vector<2x8x8xf32> to vector<1x2x8x8xf32>
    %256 = tpu.concatenate %252, %253, %254, %255 in 0 : vector<1x2x8x8xf32>, vector<1x2x8x8xf32>, vector<1x2x8x8xf32>, vector<1x2x8x8xf32> -> vector<4x2x8x8xf32>
    %257 = vector.shape_cast %256 : vector<4x2x8x8xf32> to vector<8x8x8xf32>
    %258 = arith.truncf %257 : vector<8x8x8xf32> to vector<8x8x8xbf16>
    "tpu.trace_start"() <{level = 10 : i32, message = "bqd,bkd->bqk"}> : () -> ()
    %cst_76 = arith.constant dense<0.000000e+00> : vector<8x8x8xf32>
    %259 = tpu.matmul %228, %243, %cst_76 {dimension_numbers = #tpu.dot_dimension_numbers<[2], [2], [1], [1], [0, 0, 0, 1, 1, 1], [0], [0]>} : vector<8x8x8xbf16>, vector<8x8x8xbf16>, vector<8x8x8xf32> -> vector<8x8x8xf32>
    "tpu.trace_stop"() : () -> ()
    %260 = arith.addf %259, %21 : vector<8x8x8xf32>
    %cst_77 = arith.constant dense<0xFF800000> : vector<8x8xf32>
    %261 = vector.multi_reduction <maximumf>, %260, %cst_77 [2] : vector<8x8x8xf32> to vector<8x8xf32>
    %262 = vector.shape_cast %261 : vector<8x8xf32> to vector<8x8x1xf32>
    %263 = vector.broadcast %262 : vector<8x8x1xf32> to vector<8x8x8xf32>
    %264 = arith.subf %260, %263 : vector<8x8x8xf32>
    %265 = math.exp %264 : vector<8x8x8xf32>
    %cst_78 = arith.constant dense<0.000000e+00> : vector<8x8xf32>
    %266 = vector.multi_reduction <add>, %265, %cst_78 [2] : vector<8x8x8xf32> to vector<8x8xf32>
    %267 = vector.shape_cast %266 : vector<8x8xf32> to vector<8x8x1xf32>
    %268 = tpu.reciprocal %267 {approx = true} : vector<8x8x1xf32> -> vector<8x8x1xf32>
    %269 = vector.broadcast %268 : vector<8x8x1xf32> to vector<8x8x8xf32>
    %270 = arith.mulf %265, %269 : vector<8x8x8xf32>
    %271 = arith.truncf %270 : vector<8x8x8xf32> to vector<8x8x8xbf16>
    "tpu.trace_start"() <{level = 10 : i32, message = "bqk,bkd->bqd"}> : () -> ()
    %cst_79 = arith.constant dense<0.000000e+00> : vector<8x8x8xf32>
    %272 = tpu.matmul %271, %258, %cst_79 {dimension_numbers = #tpu.dot_dimension_numbers<[2], [1], [1], [2], [0, 0, 0, 1, 1, 2], [0], [0]>} : vector<8x8x8xbf16>, vector<8x8x8xbf16>, vector<8x8x8xf32> -> vector<8x8x8xf32>
    "tpu.trace_stop"() : () -> ()
    %273 = vector.extract_strided_slice %207 {offsets = [0, 0], sizes = [16, 8], strides = [1, 1]} : vector<16x32xf32> to vector<16x8xf32>
    %274 = vector.shape_cast %273 : vector<16x8xf32> to vector<2x8x8xf32>
    %275 = vector.extract_strided_slice %207 {offsets = [0, 8], sizes = [16, 8], strides = [1, 1]} : vector<16x32xf32> to vector<16x8xf32>
    %276 = vector.shape_cast %275 : vector<16x8xf32> to vector<2x8x8xf32>
    %277 = vector.extract_strided_slice %207 {offsets = [0, 16], sizes = [16, 8], strides = [1, 1]} : vector<16x32xf32> to vector<16x8xf32>
    %278 = vector.shape_cast %277 : vector<16x8xf32> to vector<2x8x8xf32>
    %279 = vector.extract_strided_slice %207 {offsets = [0, 24], sizes = [16, 8], strides = [1, 1]} : vector<16x32xf32> to vector<16x8xf32>
    %280 = vector.shape_cast %279 : vector<16x8xf32> to vector<2x8x8xf32>
    %281 = vector.shape_cast %274 : vector<2x8x8xf32> to vector<1x2x8x8xf32>
    %282 = vector.shape_cast %276 : vector<2x8x8xf32> to vector<1x2x8x8xf32>
    %283 = vector.shape_cast %278 : vector<2x8x8xf32> to vector<1x2x8x8xf32>
    %284 = vector.shape_cast %280 : vector<2x8x8xf32> to vector<1x2x8x8xf32>
    %285 = tpu.concatenate %281, %282, %283, %284 in 0 : vector<1x2x8x8xf32>, vector<1x2x8x8xf32>, vector<1x2x8x8xf32>, vector<1x2x8x8xf32> -> vector<4x2x8x8xf32>
    %286 = vector.shape_cast %285 : vector<4x2x8x8xf32> to vector<8x8x8xf32>
    %287 = arith.mulf %272, %286 : vector<8x8x8xf32>
    %288 = vector.shape_cast %287 : vector<8x8x8xf32> to vector<4x16x8xf32>
    %289 = vector.extract_strided_slice %288 {offsets = [0, 0, 0], sizes = [1, 16, 8], strides = [1, 1, 1]} : vector<4x16x8xf32> to vector<1x16x8xf32>
    %290 = vector.shape_cast %289 : vector<1x16x8xf32> to vector<16x8xf32>
    %291 = arith.truncf %290 : vector<16x8xf32> to vector<16x8xbf16>
    %292 = vector.extract_strided_slice %211 {offsets = [0, 0, 0], sizes = [1, 8, 32], strides = [1, 1, 1]} : vector<4x8x32xbf16> to vector<1x8x32xbf16>
    %293 = vector.shape_cast %292 : vector<1x8x32xbf16> to vector<8x32xbf16>
    %cst_80 = arith.constant dense<0.000000e+00> : vector<16x32xf32>
    %294 = tpu.matmul %291, %293, %cst_80 {dimension_numbers = #tpu.dot_dimension_numbers<[1], [0], [0], [1], [0, 0, 1, 1], [], []>} : vector<16x8xbf16>, vector<8x32xbf16>, vector<16x32xf32> -> vector<16x32xf32>
    %295 = vector.extract_strided_slice %288 {offsets = [1, 0, 0], sizes = [1, 16, 8], strides = [1, 1, 1]} : vector<4x16x8xf32> to vector<1x16x8xf32>
    %296 = vector.shape_cast %295 : vector<1x16x8xf32> to vector<16x8xf32>
    %297 = arith.truncf %296 : vector<16x8xf32> to vector<16x8xbf16>
    %298 = vector.extract_strided_slice %211 {offsets = [1, 0, 0], sizes = [1, 8, 32], strides = [1, 1, 1]} : vector<4x8x32xbf16> to vector<1x8x32xbf16>
    %299 = vector.shape_cast %298 : vector<1x8x32xbf16> to vector<8x32xbf16>
    %cst_81 = arith.constant dense<0.000000e+00> : vector<16x32xf32>
    %300 = tpu.matmul %297, %299, %cst_81 {dimension_numbers = #tpu.dot_dimension_numbers<[1], [0], [0], [1], [0, 0, 1, 1], [], []>} : vector<16x8xbf16>, vector<8x32xbf16>, vector<16x32xf32> -> vector<16x32xf32>
    %301 = arith.addf %294, %300 : vector<16x32xf32>
    %302 = vector.extract_strided_slice %288 {offsets = [2, 0, 0], sizes = [1, 16, 8], strides = [1, 1, 1]} : vector<4x16x8xf32> to vector<1x16x8xf32>
    %303 = vector.shape_cast %302 : vector<1x16x8xf32> to vector<16x8xf32>
    %304 = arith.truncf %303 : vector<16x8xf32> to vector<16x8xbf16>
    %305 = vector.extract_strided_slice %211 {offsets = [2, 0, 0], sizes = [1, 8, 32], strides = [1, 1, 1]} : vector<4x8x32xbf16> to vector<1x8x32xbf16>
    %306 = vector.shape_cast %305 : vector<1x8x32xbf16> to vector<8x32xbf16>
    %cst_82 = arith.constant dense<0.000000e+00> : vector<16x32xf32>
    %307 = tpu.matmul %304, %306, %cst_82 {dimension_numbers = #tpu.dot_dimension_numbers<[1], [0], [0], [1], [0, 0, 1, 1], [], []>} : vector<16x8xbf16>, vector<8x32xbf16>, vector<16x32xf32> -> vector<16x32xf32>
    %308 = arith.addf %301, %307 : vector<16x32xf32>
    %309 = vector.extract_strided_slice %288 {offsets = [3, 0, 0], sizes = [1, 16, 8], strides = [1, 1, 1]} : vector<4x16x8xf32> to vector<1x16x8xf32>
    %310 = vector.shape_cast %309 : vector<1x16x8xf32> to vector<16x8xf32>
    %311 = arith.truncf %310 : vector<16x8xf32> to vector<16x8xbf16>
    %312 = vector.extract_strided_slice %211 {offsets = [3, 0, 0], sizes = [1, 8, 32], strides = [1, 1, 1]} : vector<4x8x32xbf16> to vector<1x8x32xbf16>
    %313 = vector.shape_cast %312 : vector<1x8x32xbf16> to vector<8x32xbf16>
    %cst_83 = arith.constant dense<0.000000e+00> : vector<16x32xf32>
    %314 = tpu.matmul %311, %313, %cst_83 {dimension_numbers = #tpu.dot_dimension_numbers<[1], [0], [0], [1], [0, 0, 1, 1], [], []>} : vector<16x8xbf16>, vector<8x32xbf16>, vector<16x32xf32> -> vector<16x32xf32>
    %315 = arith.addf %308, %314 : vector<16x32xf32>
    %316 = vector.broadcast %213 : vector<1x32xf32> to vector<16x32xf32>
    %317 = arith.addf %315, %316 : vector<16x32xf32>
    %318 = arith.addf %168, %317 : vector<16x32xf32>
    %319 = vector.extract_strided_slice %23 {offsets = [2, 0], sizes = [1, 32], strides = [1, 1]} : vector<4x32xf32> to vector<1x32xf32>
    %320 = vector.extract_strided_slice %25 {offsets = [2, 0], sizes = [1, 32], strides = [1, 1]} : vector<4x32xf32> to vector<1x32xf32>
    %cst_84 = arith.constant dense<0.000000e+00> : vector<16xf32>
    %321 = vector.multi_reduction <add>, %318, %cst_84 [1] : vector<16x32xf32> to vector<16xf32>
    %322 = vector.shape_cast %321 : vector<16xf32> to vector<16x1xf32>
    %cst_85 = arith.constant 3.200000e+01 : f32
    %323 = vector.broadcast %cst_85 : f32 to vector<16x1xf32>
    %324 = arith.divf %322, %323 : vector<16x1xf32>
    %325 = vector.broadcast %324 : vector<16x1xf32> to vector<16x32xf32>
    %326 = arith.subf %318, %325 : vector<16x32xf32>
    %327 = arith.mulf %326, %326 : vector<16x32xf32>
    %cst_86 = arith.constant dense<0.000000e+00> : vector<16xf32>
    %328 = vector.multi_reduction <add>, %327, %cst_86 [1] : vector<16x32xf32> to vector<16xf32>
    %329 = vector.shape_cast %328 : vector<16xf32> to vector<16x1xf32>
    %cst_87 = arith.constant 3.200000e+01 : f32
    %330 = vector.broadcast %cst_87 : f32 to vector<16x1xf32>
    %331 = arith.divf %329, %330 : vector<16x1xf32>
    %cst_88 = arith.constant 9.99999974E-6 : f32
    %332 = vector.broadcast %cst_88 : f32 to vector<16x1xf32>
    %333 = arith.addf %331, %332 : vector<16x1xf32>
    %334 = math.rsqrt %333 : vector<16x1xf32>
    %335 = vector.broadcast %334 : vector<16x1xf32> to vector<16x32xf32>
    %336 = arith.mulf %326, %335 : vector<16x32xf32>
    %337 = vector.broadcast %319 : vector<1x32xf32> to vector<16x32xf32>
    %338 = arith.mulf %336, %337 : vector<16x32xf32>
    %339 = vector.broadcast %320 : vector<1x32xf32> to vector<16x32xf32>
    %340 = arith.addf %338, %339 : vector<16x32xf32>
    %c0_89 = arith.constant 0 : index
    %c0_90 = arith.constant 0 : index
    %c0_91 = arith.constant 0 : index
    %341 = vector.load %arg18[%c0_89, %c0_90, %c0_91] : memref<1x5x32xf32, #tpu.memory_space<vmem>>, vector<1x5x32xf32>
    %342 = vector.shape_cast %341 : vector<1x5x32xf32> to vector<5x32xf32>
    %c0_92 = arith.constant 0 : index
    %c0_93 = arith.constant 0 : index
    %c0_94 = arith.constant 0 : index
    %343 = vector.load %arg19[%c0_92, %c0_93, %c0_94] : memref<1x32x32xbf16, #tpu.memory_space<vmem>>, vector<1x32x32xbf16>
    %344 = vector.shape_cast %343 : vector<1x32x32xbf16> to vector<32x32xbf16>
    %345 = math.tanh %340 : vector<16x32xf32>
    %cst_95 = arith.constant -1.000000e+00 : f32
    %346 = vector.broadcast %cst_95 : f32 to vector<16x32xf32>
    %347 = arith.cmpf oge, %345, %346 : vector<16x32xf32>
    %cst_96 = arith.constant -0.714285731 : f32
    %348 = vector.broadcast %cst_96 : f32 to vector<16x32xf32>
    %349 = arith.cmpf olt, %345, %348 : vector<16x32xf32>
    %350 = arith.andi %347, %349 : vector<16x32xi1>
    %351 = arith.extui %350 : vector<16x32xi1> to vector<16x32xi32>
    %352 = arith.sitofp %351 : vector<16x32xi32> to vector<16x32xf32>
    %cst_97 = arith.constant -0.714285731 : f32
    %353 = vector.broadcast %cst_97 : f32 to vector<16x32xf32>
    %354 = arith.cmpf oge, %345, %353 : vector<16x32xf32>
    %cst_98 = arith.constant -0.428571433 : f32
    %355 = vector.broadcast %cst_98 : f32 to vector<16x32xf32>
    %356 = arith.cmpf olt, %345, %355 : vector<16x32xf32>
    %357 = arith.andi %354, %356 : vector<16x32xi1>
    %358 = arith.extui %357 : vector<16x32xi1> to vector<16x32xi32>
    %359 = arith.sitofp %358 : vector<16x32xi32> to vector<16x32xf32>
    %cst_99 = arith.constant -0.428571433 : f32
    %360 = vector.broadcast %cst_99 : f32 to vector<16x32xf32>
    %361 = arith.cmpf oge, %345, %360 : vector<16x32xf32>
    %cst_100 = arith.constant -0.142857149 : f32
    %362 = vector.broadcast %cst_100 : f32 to vector<16x32xf32>
    %363 = arith.cmpf olt, %345, %362 : vector<16x32xf32>
    %364 = arith.andi %361, %363 : vector<16x32xi1>
    %365 = arith.extui %364 : vector<16x32xi1> to vector<16x32xi32>
    %366 = arith.sitofp %365 : vector<16x32xi32> to vector<16x32xf32>
    %cst_101 = arith.constant -0.142857149 : f32
    %367 = vector.broadcast %cst_101 : f32 to vector<16x32xf32>
    %368 = arith.cmpf oge, %345, %367 : vector<16x32xf32>
    %cst_102 = arith.constant 0.142857149 : f32
    %369 = vector.broadcast %cst_102 : f32 to vector<16x32xf32>
    %370 = arith.cmpf olt, %345, %369 : vector<16x32xf32>
    %371 = arith.andi %368, %370 : vector<16x32xi1>
    %372 = arith.extui %371 : vector<16x32xi1> to vector<16x32xi32>
    %373 = arith.sitofp %372 : vector<16x32xi32> to vector<16x32xf32>
    %cst_103 = arith.constant 0.142857149 : f32
    %374 = vector.broadcast %cst_103 : f32 to vector<16x32xf32>
    %375 = arith.cmpf oge, %345, %374 : vector<16x32xf32>
    %cst_104 = arith.constant 0.428571433 : f32
    %376 = vector.broadcast %cst_104 : f32 to vector<16x32xf32>
    %377 = arith.cmpf olt, %345, %376 : vector<16x32xf32>
    %378 = arith.andi %375, %377 : vector<16x32xi1>
    %379 = arith.extui %378 : vector<16x32xi1> to vector<16x32xi32>
    %380 = arith.sitofp %379 : vector<16x32xi32> to vector<16x32xf32>
    %cst_105 = arith.constant -1.000000e+00 : f32
    %381 = vector.broadcast %cst_105 : f32 to vector<16x32xf32>
    %382 = arith.subf %345, %381 : vector<16x32xf32>
    %cst_106 = arith.constant 3.500000e+00 : f32
    %383 = vector.broadcast %cst_106 : f32 to vector<16x32xf32>
    %384 = arith.mulf %382, %383 : vector<16x32xf32>
    %385 = arith.mulf %384, %352 : vector<16x32xf32>
    %cst_107 = arith.constant -0.428571433 : f32
    %386 = vector.broadcast %cst_107 : f32 to vector<16x32xf32>
    %387 = arith.subf %386, %345 : vector<16x32xf32>
    %cst_108 = arith.constant 3.500000e+00 : f32
    %388 = vector.broadcast %cst_108 : f32 to vector<16x32xf32>
    %389 = arith.mulf %387, %388 : vector<16x32xf32>
    %390 = arith.mulf %389, %359 : vector<16x32xf32>
    %391 = arith.addf %385, %390 : vector<16x32xf32>
    %cst_109 = arith.constant -0.714285731 : f32
    %392 = vector.broadcast %cst_109 : f32 to vector<16x32xf32>
    %393 = arith.subf %345, %392 : vector<16x32xf32>
    %cst_110 = arith.constant 3.500000e+00 : f32
    %394 = vector.broadcast %cst_110 : f32 to vector<16x32xf32>
    %395 = arith.mulf %393, %394 : vector<16x32xf32>
    %396 = arith.mulf %395, %359 : vector<16x32xf32>
    %cst_111 = arith.constant -0.142857149 : f32
    %397 = vector.broadcast %cst_111 : f32 to vector<16x32xf32>
    %398 = arith.subf %397, %345 : vector<16x32xf32>
    %cst_112 = arith.constant 3.500000e+00 : f32
    %399 = vector.broadcast %cst_112 : f32 to vector<16x32xf32>
    %400 = arith.mulf %398, %399 : vector<16x32xf32>
    %401 = arith.mulf %400, %366 : vector<16x32xf32>
    %402 = arith.addf %396, %401 : vector<16x32xf32>
    %cst_113 = arith.constant -0.428571433 : f32
    %403 = vector.broadcast %cst_113 : f32 to vector<16x32xf32>
    %404 = arith.subf %345, %403 : vector<16x32xf32>
    %cst_114 = arith.constant 3.500000e+00 : f32
    %405 = vector.broadcast %cst_114 : f32 to vector<16x32xf32>
    %406 = arith.mulf %404, %405 : vector<16x32xf32>
    %407 = arith.mulf %406, %366 : vector<16x32xf32>
    %cst_115 = arith.constant 0.142857149 : f32
    %408 = vector.broadcast %cst_115 : f32 to vector<16x32xf32>
    %409 = arith.subf %408, %345 : vector<16x32xf32>
    %cst_116 = arith.constant 3.500000e+00 : f32
    %410 = vector.broadcast %cst_116 : f32 to vector<16x32xf32>
    %411 = arith.mulf %409, %410 : vector<16x32xf32>
    %412 = arith.mulf %411, %373 : vector<16x32xf32>
    %413 = arith.addf %407, %412 : vector<16x32xf32>
    %cst_117 = arith.constant -0.142857149 : f32
    %414 = vector.broadcast %cst_117 : f32 to vector<16x32xf32>
    %415 = arith.subf %345, %414 : vector<16x32xf32>
    %cst_118 = arith.constant 3.500000e+00 : f32
    %416 = vector.broadcast %cst_118 : f32 to vector<16x32xf32>
    %417 = arith.mulf %415, %416 : vector<16x32xf32>
    %418 = arith.mulf %417, %373 : vector<16x32xf32>
    %cst_119 = arith.constant 0.428571433 : f32
    %419 = vector.broadcast %cst_119 : f32 to vector<16x32xf32>
    %420 = arith.subf %419, %345 : vector<16x32xf32>
    %cst_120 = arith.constant 3.500000e+00 : f32
    %421 = vector.broadcast %cst_120 : f32 to vector<16x32xf32>
    %422 = arith.mulf %420, %421 : vector<16x32xf32>
    %423 = arith.mulf %422, %380 : vector<16x32xf32>
    %424 = arith.addf %418, %423 : vector<16x32xf32>
    %cst_121 = arith.constant -1.000000e+00 : f32
    %425 = vector.broadcast %cst_121 : f32 to vector<16x32xf32>
    %426 = arith.subf %345, %425 : vector<16x32xf32>
    %cst_122 = arith.constant 1.750000e+00 : f32
    %427 = vector.broadcast %cst_122 : f32 to vector<16x32xf32>
    %428 = arith.mulf %426, %427 : vector<16x32xf32>
    %429 = arith.mulf %428, %391 : vector<16x32xf32>
    %cst_123 = arith.constant -0.142857149 : f32
    %430 = vector.broadcast %cst_123 : f32 to vector<16x32xf32>
    %431 = arith.subf %430, %345 : vector<16x32xf32>
    %cst_124 = arith.constant 1.750000e+00 : f32
    %432 = vector.broadcast %cst_124 : f32 to vector<16x32xf32>
    %433 = arith.mulf %431, %432 : vector<16x32xf32>
    %434 = arith.mulf %433, %402 : vector<16x32xf32>
    %435 = arith.addf %429, %434 : vector<16x32xf32>
    %cst_125 = arith.constant -0.714285731 : f32
    %436 = vector.broadcast %cst_125 : f32 to vector<16x32xf32>
    %437 = arith.subf %345, %436 : vector<16x32xf32>
    %cst_126 = arith.constant 1.750000e+00 : f32
    %438 = vector.broadcast %cst_126 : f32 to vector<16x32xf32>
    %439 = arith.mulf %437, %438 : vector<16x32xf32>
    %440 = arith.mulf %439, %402 : vector<16x32xf32>
    %cst_127 = arith.constant 0.142857149 : f32
    %441 = vector.broadcast %cst_127 : f32 to vector<16x32xf32>
    %442 = arith.subf %441, %345 : vector<16x32xf32>
    %cst_128 = arith.constant 1.750000e+00 : f32
    %443 = vector.broadcast %cst_128 : f32 to vector<16x32xf32>
    %444 = arith.mulf %442, %443 : vector<16x32xf32>
    %445 = arith.mulf %444, %413 : vector<16x32xf32>
    %446 = arith.addf %440, %445 : vector<16x32xf32>
    %cst_129 = arith.constant -0.428571433 : f32
    %447 = vector.broadcast %cst_129 : f32 to vector<16x32xf32>
    %448 = arith.subf %345, %447 : vector<16x32xf32>
    %cst_130 = arith.constant 1.750000e+00 : f32
    %449 = vector.broadcast %cst_130 : f32 to vector<16x32xf32>
    %450 = arith.mulf %448, %449 : vector<16x32xf32>
    %451 = arith.mulf %450, %413 : vector<16x32xf32>
    %cst_131 = arith.constant 0.428571433 : f32
    %452 = vector.broadcast %cst_131 : f32 to vector<16x32xf32>
    %453 = arith.subf %452, %345 : vector<16x32xf32>
    %cst_132 = arith.constant 1.750000e+00 : f32
    %454 = vector.broadcast %cst_132 : f32 to vector<16x32xf32>
    %455 = arith.mulf %453, %454 : vector<16x32xf32>
    %456 = arith.mulf %455, %424 : vector<16x32xf32>
    %457 = arith.addf %451, %456 : vector<16x32xf32>
    %cst_133 = arith.constant -1.000000e+00 : f32
    %458 = vector.broadcast %cst_133 : f32 to vector<16x32xf32>
    %459 = arith.subf %345, %458 : vector<16x32xf32>
    %cst_134 = arith.constant 1.16666663 : f32
    %460 = vector.broadcast %cst_134 : f32 to vector<16x32xf32>
    %461 = arith.mulf %459, %460 : vector<16x32xf32>
    %462 = arith.mulf %461, %435 : vector<16x32xf32>
    %cst_135 = arith.constant 0.142857149 : f32
    %463 = vector.broadcast %cst_135 : f32 to vector<16x32xf32>
    %464 = arith.subf %463, %345 : vector<16x32xf32>
    %cst_136 = arith.constant 1.16666663 : f32
    %465 = vector.broadcast %cst_136 : f32 to vector<16x32xf32>
    %466 = arith.mulf %464, %465 : vector<16x32xf32>
    %467 = arith.mulf %466, %446 : vector<16x32xf32>
    %468 = arith.addf %462, %467 : vector<16x32xf32>
    %cst_137 = arith.constant -0.714285731 : f32
    %469 = vector.broadcast %cst_137 : f32 to vector<16x32xf32>
    %470 = arith.subf %345, %469 : vector<16x32xf32>
    %cst_138 = arith.constant 1.16666663 : f32
    %471 = vector.broadcast %cst_138 : f32 to vector<16x32xf32>
    %472 = arith.mulf %470, %471 : vector<16x32xf32>
    %473 = arith.mulf %472, %446 : vector<16x32xf32>
    %cst_139 = arith.constant 0.428571433 : f32
    %474 = vector.broadcast %cst_139 : f32 to vector<16x32xf32>
    %475 = arith.subf %474, %345 : vector<16x32xf32>
    %cst_140 = arith.constant 1.16666663 : f32
    %476 = vector.broadcast %cst_140 : f32 to vector<16x32xf32>
    %477 = arith.mulf %475, %476 : vector<16x32xf32>
    %478 = arith.mulf %477, %457 : vector<16x32xf32>
    %479 = arith.addf %473, %478 : vector<16x32xf32>
    %480 = vector.extract_strided_slice %342 {offsets = [0, 0], sizes = [1, 32], strides = [1, 1]} : vector<5x32xf32> to vector<1x32xf32>
    %481 = vector.broadcast %480 : vector<1x32xf32> to vector<16x32xf32>
    %482 = arith.mulf %468, %481 : vector<16x32xf32>
    %483 = vector.extract_strided_slice %342 {offsets = [1, 0], sizes = [1, 32], strides = [1, 1]} : vector<5x32xf32> to vector<1x32xf32>
    %484 = vector.broadcast %483 : vector<1x32xf32> to vector<16x32xf32>
    %485 = arith.mulf %479, %484 : vector<16x32xf32>
    %486 = arith.addf %482, %485 : vector<16x32xf32>
    %487 = arith.truncf %486 : vector<16x32xf32> to vector<16x32xbf16>
    %cst_141 = arith.constant dense<0.000000e+00> : vector<16x32xf32>
    %488 = tpu.matmul %487, %344, %cst_141 {dimension_numbers = #tpu.dot_dimension_numbers<[1], [0], [0], [1], [0, 0, 1, 1], [], []>} : vector<16x32xbf16>, vector<32x32xbf16>, vector<16x32xf32> -> vector<16x32xf32>
    %489 = arith.addf %318, %488 : vector<16x32xf32>
    %490 = vector.extract_strided_slice %23 {offsets = [3, 0], sizes = [1, 32], strides = [1, 1]} : vector<4x32xf32> to vector<1x32xf32>
    %491 = vector.extract_strided_slice %25 {offsets = [3, 0], sizes = [1, 32], strides = [1, 1]} : vector<4x32xf32> to vector<1x32xf32>
    %cst_142 = arith.constant dense<0.000000e+00> : vector<16xf32>
    %492 = vector.multi_reduction <add>, %489, %cst_142 [1] : vector<16x32xf32> to vector<16xf32>
    %493 = vector.shape_cast %492 : vector<16xf32> to vector<16x1xf32>
    %cst_143 = arith.constant 3.200000e+01 : f32
    %494 = vector.broadcast %cst_143 : f32 to vector<16x1xf32>
    %495 = arith.divf %493, %494 : vector<16x1xf32>
    %496 = vector.broadcast %495 : vector<16x1xf32> to vector<16x32xf32>
    %497 = arith.subf %489, %496 : vector<16x32xf32>
    %498 = arith.mulf %497, %497 : vector<16x32xf32>
    %cst_144 = arith.constant dense<0.000000e+00> : vector<16xf32>
    %499 = vector.multi_reduction <add>, %498, %cst_144 [1] : vector<16x32xf32> to vector<16xf32>
    %500 = vector.shape_cast %499 : vector<16xf32> to vector<16x1xf32>
    %cst_145 = arith.constant 3.200000e+01 : f32
    %501 = vector.broadcast %cst_145 : f32 to vector<16x1xf32>
    %502 = arith.divf %500, %501 : vector<16x1xf32>
    %cst_146 = arith.constant 9.99999974E-6 : f32
    %503 = vector.broadcast %cst_146 : f32 to vector<16x1xf32>
    %504 = arith.addf %502, %503 : vector<16x1xf32>
    %505 = math.rsqrt %504 : vector<16x1xf32>
    %506 = vector.broadcast %505 : vector<16x1xf32> to vector<16x32xf32>
    %507 = arith.mulf %497, %506 : vector<16x32xf32>
    %508 = vector.broadcast %490 : vector<1x32xf32> to vector<16x32xf32>
    %509 = arith.mulf %507, %508 : vector<16x32xf32>
    %510 = vector.broadcast %491 : vector<1x32xf32> to vector<16x32xf32>
    %511 = arith.addf %509, %510 : vector<16x32xf32>
    %512 = vector.shape_cast %511 : vector<16x32xf32> to vector<2x8x32xf32>
    %c0_147 = arith.constant 0 : index
    %c0_148 = arith.constant 0 : index
    %c0_149 = arith.constant 0 : index
    %513 = vector.load %arg20[%c0_147, %c0_148, %c0_149] : memref<2x8x32xf32, #tpu.memory_space<vmem>>, vector<2x8x32xf32>
    tpu.vector_store %arg20[%c0_147, %c0_148, %c0_149], %512 {strides = array<i32>} : memref<2x8x32xf32, #tpu.memory_space<vmem>>, vector<2x8x32xf32>,
    return
  }
  func.func @transform_0(%arg0: i32, %arg1: i32) -> (i32, i32, i32) {
    %c0_i32 = arith.constant 0 : i32
    %c0_i32_0 = arith.constant 0 : i32
    %c0_i32_1 = arith.constant 0 : i32
    return %arg0, %c0_i32, %c0_i32_0 : i32, i32, i32
  }
  func.func @transform_1(%arg0: i32, %arg1: i32) -> (i32, i32, i32) {
    %c0_i32 = arith.constant 0 : i32
    %c0_i32_0 = arith.constant 0 : i32
    %c0_i32_1 = arith.constant 0 : i32
    return %arg0, %c0_i32, %c0_i32_0 : i32, i32, i32
  }
  func.func @transform_2(%arg0: i32, %arg1: i32) -> (i32, i32, i32) {
    %c0_i32 = arith.constant 0 : i32
    %c0_i32_0 = arith.constant 0 : i32
    %c0_i32_1 = arith.constant 0 : i32
    return %arg0, %c0_i32, %c0_i32_0 : i32, i32, i32
  }
  func.func @transform_3(%arg0: i32, %arg1: i32) -> (i32, i32, i32) {
    %c0_i32 = arith.constant 0 : i32
    %c0_i32_0 = arith.constant 0 : i32
    %c0_i32_1 = arith.constant 0 : i32
    return %arg0, %c0_i32, %c0_i32_0 : i32, i32, i32
  }
  func.func @transform_4(%arg0: i32, %arg1: i32) -> (i32, i32, i32) {
    %c0_i32 = arith.constant 0 : i32
    %c0_i32_0 = arith.constant 0 : i32
    %c0_i32_1 = arith.constant 0 : i32
    return %arg1, %c0_i32, %c0_i32_0 : i32, i32, i32
  }
  func.func @transform_5(%arg0: i32, %arg1: i32) -> (i32, i32, i32) {
    %c0_i32 = arith.constant 0 : i32
    %c0_i32_0 = arith.constant 0 : i32
    %c0_i32_1 = arith.constant 0 : i32
    return %arg1, %c0_i32, %c0_i32_0 : i32, i32, i32
  }
  func.func @transform_6(%arg0: i32, %arg1: i32) -> (i32, i32, i32) {
    %c0_i32 = arith.constant 0 : i32
    %c0_i32_0 = arith.constant 0 : i32
    %c0_i32_1 = arith.constant 0 : i32
    return %arg1, %c0_i32, %c0_i32_0 : i32, i32, i32
  }
  func.func @transform_7(%arg0: i32, %arg1: i32) -> (i32, i32, i32) {
    %c0_i32 = arith.constant 0 : i32
    %c0_i32_0 = arith.constant 0 : i32
    %c0_i32_1 = arith.constant 0 : i32
    return %arg1, %c0_i32, %c0_i32_0 : i32, i32, i32
  }
  func.func @transform_8(%arg0: i32, %arg1: i32) -> (i32, i32, i32, i32) {
    %c0_i32 = arith.constant 0 : i32
    %c0_i32_0 = arith.constant 0 : i32
    %c0_i32_1 = arith.constant 0 : i32
    %c0_i32_2 = arith.constant 0 : i32
    return %arg1, %c0_i32, %c0_i32_0, %c0_i32_1 : i32, i32, i32, i32
  }
  func.func @transform_9(%arg0: i32, %arg1: i32) -> (i32, i32, i32) {
    %c0_i32 = arith.constant 0 : i32
    %c0_i32_0 = arith.constant 0 : i32
    %c0_i32_1 = arith.constant 0 : i32
    return %arg1, %c0_i32, %c0_i32_0 : i32, i32, i32
  }
  func.func @transform_10(%arg0: i32, %arg1: i32) -> (i32, i32, i32) {
    %c0_i32 = arith.constant 0 : i32
    %c0_i32_0 = arith.constant 0 : i32
    %c0_i32_1 = arith.constant 0 : i32
    return %arg1, %c0_i32, %c0_i32_0 : i32, i32, i32
  }
  func.func @transform_11(%arg0: i32, %arg1: i32) -> (i32, i32, i32) {
    %c0_i32 = arith.constant 0 : i32
    %c0_i32_0 = arith.constant 0 : i32
    %c0_i32_1 = arith.constant 0 : i32
    return %arg1, %c0_i32, %c0_i32_0 : i32, i32, i32
  }
  func.func @transform_12(%arg0: i32, %arg1: i32) -> (i32, i32, i32) {
    %c0_i32 = arith.constant 0 : i32
    %c0_i32_0 = arith.constant 0 : i32
    %c0_i32_1 = arith.constant 0 : i32
    return %arg1, %c0_i32, %c0_i32_0 : i32, i32, i32
  }
  func.func @transform_13(%arg0: i32, %arg1: i32) -> (i32, i32, i32) {
    %c0_i32 = arith.constant 0 : i32
    %c0_i32_0 = arith.constant 0 : i32
    %c0_i32_1 = arith.constant 0 : i32
    return %arg1, %c0_i32, %c0_i32_0 : i32, i32, i32
  }
  func.func @transform_14(%arg0: i32, %arg1: i32) -> (i32, i32, i32, i32) {
    %c0_i32 = arith.constant 0 : i32
    %c0_i32_0 = arith.constant 0 : i32
    %c0_i32_1 = arith.constant 0 : i32
    %c0_i32_2 = arith.constant 0 : i32
    return %arg1, %c0_i32, %c0_i32_0, %c0_i32_1 : i32, i32, i32, i32
  }
  func.func @transform_15(%arg0: i32, %arg1: i32) -> (i32, i32, i32) {
    %c0_i32 = arith.constant 0 : i32
    %c0_i32_0 = arith.constant 0 : i32
    %c0_i32_1 = arith.constant 0 : i32
    return %arg1, %c0_i32, %c0_i32_0 : i32, i32, i32
  }
  func.func @transform_16(%arg0: i32, %arg1: i32) -> (i32, i32, i32) {
    %c0_i32 = arith.constant 0 : i32
    %c0_i32_0 = arith.constant 0 : i32
    %c0_i32_1 = arith.constant 0 : i32
    return %arg1, %c0_i32, %c0_i32_0 : i32, i32, i32
  }
  func.func @transform_17(%arg0: i32, %arg1: i32) -> (i32, i32, i32) {
    %c0_i32 = arith.constant 0 : i32
    %c0_i32_0 = arith.constant 0 : i32
    %c0_i32_1 = arith.constant 0 : i32
    return %arg1, %c0_i32, %c0_i32_0 : i32, i32, i32
  }
  func.func @transform_18(%arg0: i32, %arg1: i32) -> (i32, i32, i32) {
    %c0_i32 = arith.constant 0 : i32
    %c0_i32_0 = arith.constant 0 : i32
    %c0_i32_1 = arith.constant 0 : i32
    return %arg0, %c0_i32, %c0_i32_0 : i32, i32, i32
  }
}

</mosaic_0001>

<llo_original>
// kernel: tpu_custom_call.1
$region0: #{tpu_custom_call.1}
  #allocation0 [shape = 'u32[]', space=smem, size = 0x4, offset = 0x4, fixed_abs, tag = 'smem constant byte address 0x4 - core index']
  #allocation1 [shape = 'u32[144,128]{1,0:T(1,128)}', space=vmem, size = 0x12000, scoped, tag = 'internal scratch']
  %s0 = inlined_call_operand.hbm [shape: f32[2,8,32], index: 0, kind: input, shape index: {}]
  %s1 = inlined_call_operand.hbm [shape: f32[2,8,32], index: 1, kind: input, shape index: {}]
  %s2 = inlined_call_operand.hbm [shape: f32[2,8,8], index: 2, kind: input, shape index: {}]
  %s3 = inlined_call_operand.hbm [shape: f32[2,8,8], index: 3, kind: input, shape index: {}]
  %s4 = inlined_call_operand.hbm [shape: f32[2,4,32], index: 4, kind: input, shape index: {}]
  %s5 = inlined_call_operand.hbm [shape: f32[2,4,32], index: 5, kind: input, shape index: {}]
  %s6 = inlined_call_operand.vmem [shape: bf16[2,32,128], index: 6, kind: input, shape index: {}]
  %s7 = inlined_call_operand.hbm [shape: f32[2,1,128], index: 7, kind: input, shape index: {}]
  %s8 = inlined_call_operand.hbm [shape: bf16[2,4,8,32], index: 8, kind: input, shape index: {}]
  %s9 = inlined_call_operand.hbm [shape: f32[2,1,32], index: 9, kind: input, shape index: {}]
  %s10 = inlined_call_operand.hbm [shape: bf16[2,32,64], index: 10, kind: input, shape index: {}]
  %s11 = inlined_call_operand.hbm [shape: f32[2,1,64], index: 11, kind: input, shape index: {}]
  %s12 = inlined_call_operand.vmem [shape: bf16[2,32,64], index: 12, kind: input, shape index: {}]
  %s13 = inlined_call_operand.hbm [shape: f32[2,1,64], index: 13, kind: input, shape index: {}]
  %s14 = inlined_call_operand.hbm [shape: bf16[2,4,8,32], index: 14, kind: input, shape index: {}]
  %s15 = inlined_call_operand.vmem [shape: f32[2,1,32], index: 15, kind: input, shape index: {}]
  %s16 = inlined_call_operand.vmem [shape: f32[2,5,32], index: 16, kind: input, shape index: {}]
  %s17 = inlined_call_operand.hbm [shape: bf16[2,32,32], index: 17, kind: input, shape index: {}]
  %s18 = inlined_call_operand.hbm [shape: f32[2,8,32], index: 18, kind: output, shape index: {}]
  %s19 = sld [smem:[#allocation0]]
  $region165: #{tpu_custom_call.1} parent=0
    _
  %s21 = ssub.s32 1, %s19
  %s22 = scalar_select 0, %s21, %s19
  $region1: #{tpu_custom_call.1} parent=0
    #allocation2 [shape = 'u8[8192]{0}', space=vmem, size = 0x2000, scoped, tag = 'input window, operand 0, single buffered']
    #allocation3 [shape = 's32[2]{0}', space=sflag, size = 0x8, scoped, tag = 'scoped memory for tpu_custom_call.1']
    #allocation4 [shape = 's32[2]{0}', space=sflag, size = 0x8, scoped, tag = 'scoped memory for tpu_custom_call.1']
    #allocation5 [shape = 'u8[8192]{0}', space=vmem, size = 0x2000, scoped, tag = 'input window, operand 1, single buffered']
    #allocation6 [shape = 's32[1]{0}', space=sflag, size = 0x4, scoped, tag = 'scoped memory for tpu_custom_call.1']
    #allocation7 [shape = 'u8[8192]{0}', space=vmem, size = 0x2000, scoped, tag = 'input window, operand 2, single buffered']
    #allocation8 [shape = 'u8[8192]{0}', space=vmem, size = 0x2000, scoped, tag = 'input window, operand 3, single buffered']
    #allocation9 [shape = 's32[1]{0}', space=sflag, size = 0x4, scoped, tag = 'scoped memory for tpu_custom_call.1']
    #allocation10 [shape = 'u8[4096]{0}', space=vmem, size = 0x1000, scoped, tag = 'input window, operand 4']
    #allocation11 [shape = 'u8[4096]{0}', space=vmem, size = 0x1000, scoped, tag = 'input window, operand 5']
    #allocation12 [shape = 'u8[1024]{0}', space=vmem, size = 0x400, scoped, tag = 'input window, operand 7']
    #allocation13 [shape = 'u8[16384]{0}', space=vmem, size = 0x4000, scoped, tag = 'input window, operand 8']
    #allocation14 [shape = 'u8[1024]{0}', space=vmem, size = 0x400, scoped, tag = 'input window, operand 9']
    #allocation15 [shape = 'u8[16384]{0}', space=vmem, size = 0x4000, scoped, tag = 'input window, operand 10']
    #allocation16 [shape = 'u8[1024]{0}', space=vmem, size = 0x400, scoped, tag = 'input window, operand 11']
    #allocation17 [shape = 'u8[1024]{0}', space=vmem, size = 0x400, scoped, tag = 'input window, operand 13']
    #allocation18 [shape = 'u8[16384]{0}', space=vmem, size = 0x4000, scoped, tag = 'input window, operand 14']
    #allocation19 [shape = 'u8[16384]{0}', space=vmem, size = 0x4000, scoped, tag = 'input window, operand 17']
    #allocation20 [shape = 'u8[8192]{0}', space=vmem, size = 0x2000, scoped, tag = 'output window, operand 0, single buffered']
    %23 = vsyncpa [#allocation3], 0
    %24 = vsyncpa [#allocation6], 0
    %25 = vsyncpa [#allocation9], 0
    %26 = vsyncpa [#allocation4], 0
    loop: start=0, step=1, limit=4
    $region2: #{tpu_custom_call.1} parent=1 // loop_pre_header
      _
    $region3: #{tpu_custom_call.1} parent=1 // loop_header
      %s28 = sphi 0, %s32
      %p29 = scmp.ge.s32.totalorder %s28, 4
      %s35 = sphi 0, %s47
      %s36 = sphi 0, %s43
      %s37 = sphi 0, %s35
      %s38 = sphi 0, %s36
      %s39 = sphi 0, %s37
      %s40 = sphi 0, %s38
      %s50 = sphi 0, %s52
      %s53 = sphi 0, %s50
      %s54 = sphi 0, %s53
      %s70 = sphi 0, %s54
      %s76 = sphi 0, %s78
      %s79 = sphi 0, %s76
      %s80 = sphi 0, %s79
      %s96 = sphi 0, %s80
      %s102 = sphi 0, %s104
      %s105 = sphi 0, %s102
      %s106 = sphi 0, %s105
      %s122 = sphi 0, %s106
      %s128 = sphi 0, %s130
      %s131 = sphi 0, %s128
      %s132 = sphi 0, %s131
      %s148 = sphi 0, %s132
      %s154 = sphi 0, %s156
      %s157 = sphi 0, %s154
      %s158 = sphi 0, %s157
      %s174 = sphi 0, %s158
      %s180 = sphi 0, %s182
      %s183 = sphi 0, %s180
      %s184 = sphi 0, %s183
      %s200 = sphi 0, %s184
      %s206 = sphi 0, %s208
      %s209 = sphi 0, %s206
      %s210 = sphi 0, %s209
      %s226 = sphi 0, %s210
      %s232 = sphi 0, %s234
      %s235 = sphi 0, %s232
      %s236 = sphi 0, %s235
      %s252 = sphi 0, %s236
      %s258 = sphi 0, %s260
      %s261 = sphi 0, %s258
      %s262 = sphi 0, %s261
      %s278 = sphi 0, %s262
      %s284 = sphi 0, %s286
      %s287 = sphi 0, %s284
      %s288 = sphi 0, %s287
      %s304 = sphi 0, %s288
      %s310 = sphi 0, %s312
      %s313 = sphi 0, %s310
      %s314 = sphi 0, %s313
      %s330 = sphi 0, %s314
      %s336 = sphi 0, %s338
      %s339 = sphi 0, %s336
      %s340 = sphi 0, %s339
      %s356 = sphi 0, %s340
      %s362 = sphi 0, %s364
      %s365 = sphi 0, %s362
      %s366 = sphi 0, %s365
      %s382 = sphi 0, %s366
      %s388 = sphi 0, %s390
      %s391 = sphi 0, %s388
      %s392 = sphi 0, %s391
      %s408 = sphi 0, %s392
      %s414 = sphi 0, %s416
      %s417 = sphi 0, %s414
      %s418 = sphi 0, %s417
      %s434 = sphi 0, %s418
      %s440 = sphi 0, %s442
      %s443 = sphi 0, %s440
      %s444 = sphi 0, %s443
      %s460 = sphi 0, %s444
      %s466 = sphi 0, %s468
      %s469 = sphi 0, %s466
      %s470 = sphi 0, %s469
      %s486 = sphi 0, %s470
      %s492 = sphi 0, %s494
      %s495 = sphi 0, %s492
      %s496 = sphi 0, %s495
      %s512 = sphi 0, %s496
      %s518 = sphi 0, %s520
      %s521 = sphi 0, %s518
      %s522 = sphi 0, %s521
      %s538 = sphi 0, %s522
    $region4: #{tpu_custom_call.1} parent=1 // loop_header_branch
      %31 = sbr.rel (%p29) target = $region8
    $region5: #{tpu_custom_call.1} parent=1 // loop_body
      %s33 = ssub.s32 %s28, 1
      %s34 = ssub.s32 %s28, 2
      %s41 = sadd.s32 1, %s36
      %p42 = scmp.ge.s32.totalorder %s41, 2
      %s43 = scalar_select %p42, 0, %s41
      %s44 = sadd.s32 1, %s35
      %s45 = scalar_select %p42, %s44, %s35
      %p46 = scmp.ge.s32.totalorder %s45, 1
      %s47 = scalar_select %p46, 0, %s45
      %s48 = ssub.s32 %s35, %s47
      %p49 = scmp.eq.s32.totalorder %s48, 0
      %s51 = sadd.s32 %s50, 1
      %s52 = scalar_select %p49, %s50, %s51
      %p55 = pneg %p49
      %p56 = scmp.eq.s32.totalorder %s28, 1
      %p57 = por %p55, %p56
      %p58 = scmp.ne.s32.totalorder %s50, %s53
      %p59 = scmp.eq.s32.totalorder %s28, 0
      %p60 = por %p58, %p59
      %p61 = scmp.ne.s32.totalorder %s50, %s53
      %p62 = scmp.eq.s32.totalorder %s33, 1
      %p63 = por %p61, %p62
      %p64 = scmp.ne.s32.totalorder %s53, %s54
      %p65 = scmp.eq.s32.totalorder %s33, 0
      %p66 = por %p64, %p65
      %p67 = scmp.ne.s32.totalorder %s53, %s54
      %p68 = scmp.eq.s32.totalorder %s34, 1
      %p69 = por %p67, %p68
      %p71 = scmp.ne.s32.totalorder %s54, %s70
      %p72 = scmp.eq.s32.totalorder %s34, 0
      %p73 = por %p71, %p72
      %s74 = ssub.s32 %s35, %s47
      %p75 = scmp.eq.s32.totalorder %s74, 0
      %s77 = sadd.s32 %s76, 1
      %s78 = scalar_select %p75, %s76, %s77
      %p81 = pneg %p75
      %p82 = scmp.eq.s32.totalorder %s28, 1
      %p83 = por %p81, %p82
      %p84 = scmp.ne.s32.totalorder %s76, %s79
      %p85 = scmp.eq.s32.totalorder %s28, 0
      %p86 = por %p84, %p85
      %p87 = scmp.ne.s32.totalorder %s76, %s79
      %p88 = scmp.eq.s32.totalorder %s33, 1
      %p89 = por %p87, %p88
      %p90 = scmp.ne.s32.totalorder %s79, %s80
      %p91 = scmp.eq.s32.totalorder %s33, 0
      %p92 = por %p90, %p91
      %p93 = scmp.ne.s32.totalorder %s79, %s80
      %p94 = scmp.eq.s32.totalorder %s34, 1
      %p95 = por %p93, %p94
      %p97 = scmp.ne.s32.totalorder %s80, %s96
      %p98 = scmp.eq.s32.totalorder %s34, 0
      %p99 = por %p97, %p98
      %s100 = ssub.s32 %s35, %s47
      %p101 = scmp.eq.s32.totalorder %s100, 0
      %s103 = sadd.s32 %s102, 1
      %s104 = scalar_select %p101, %s102, %s103
      %p107 = pneg %p101
      %p108 = scmp.eq.s32.totalorder %s28, 1
      %p109 = por %p107, %p108
      %p110 = scmp.ne.s32.totalorder %s102, %s105
      %p111 = scmp.eq.s32.totalorder %s28, 0
      %p112 = por %p110, %p111
      %p113 = scmp.ne.s32.totalorder %s102, %s105
      %p114 = scmp.eq.s32.totalorder %s33, 1
      %p115 = por %p113, %p114
      %p116 = scmp.ne.s32.totalorder %s105, %s106
      %p117 = scmp.eq.s32.totalorder %s33, 0
      %p118 = por %p116, %p117
      %p119 = scmp.ne.s32.totalorder %s105, %s106
      %p120 = scmp.eq.s32.totalorder %s34, 1
      %p121 = por %p119, %p120
      %p123 = scmp.ne.s32.totalorder %s106, %s122
      %p124 = scmp.eq.s32.totalorder %s34, 0
      %p125 = por %p123, %p124
      %s126 = ssub.s32 %s35, %s47
      %p127 = scmp.eq.s32.totalorder %s126, 0
      %s129 = sadd.s32 %s128, 1
      %s130 = scalar_select %p127, %s128, %s129
      %p133 = pneg %p127
      %p134 = scmp.eq.s32.totalorder %s28, 1
      %p135 = por %p133, %p134
      %p136 = scmp.ne.s32.totalorder %s128, %s131
      %p137 = scmp.eq.s32.totalorder %s28, 0
      %p138 = por %p136, %p137
      %p139 = scmp.ne.s32.totalorder %s128, %s131
      %p140 = scmp.eq.s32.totalorder %s33, 1
      %p141 = por %p139, %p140
      %p142 = scmp.ne.s32.totalorder %s131, %s132
      %p143 = scmp.eq.s32.totalorder %s33, 0
      %p144 = por %p142, %p143
      %p145 = scmp.ne.s32.totalorder %s131, %s132
      %p146 = scmp.eq.s32.totalorder %s34, 1
      %p147 = por %p145, %p146
      %p149 = scmp.ne.s32.totalorder %s132, %s148
      %p150 = scmp.eq.s32.totalorder %s34, 0
      %p151 = por %p149, %p150
      %s152 = ssub.s32 %s36, %s43
      %p153 = scmp.eq.s32.totalorder %s152, 0
      %s155 = sadd.s32 %s154, 1
      %s156 = scalar_select %p153, %s154, %s155
      %p159 = pneg %p153
      %p160 = scmp.eq.s32.totalorder %s28, 1
      %p161 = por %p159, %p160
      %p162 = scmp.ne.s32.totalorder %s154, %s157
      %p163 = scmp.eq.s32.totalorder %s28, 0
      %p164 = por %p162, %p163
      %p165 = scmp.ne.s32.totalorder %s154, %s157
      %p166 = scmp.eq.s32.totalorder %s33, 1
      %p167 = por %p165, %p166
      %p168 = scmp.ne.s32.totalorder %s157, %s158
      %p169 = scmp.eq.s32.totalorder %s33, 0
      %p170 = por %p168, %p169
      %p171 = scmp.ne.s32.totalorder %s157, %s158
      %p172 = scmp.eq.s32.totalorder %s34, 1
      %p173 = por %p171, %p172
      %p175 = scmp.ne.s32.totalorder %s158, %s174
      %p176 = scmp.eq.s32.totalorder %s34, 0
      %p177 = por %p175, %p176
      %s178 = ssub.s32 %s36, %s43
      %p179 = scmp.eq.s32.totalorder %s178, 0
      %s181 = sadd.s32 %s180, 1
      %s182 = scalar_select %p179, %s180, %s181
      %p185 = pneg %p179
      %p186 = scmp.eq.s32.totalorder %s28, 1
      %p187 = por %p185, %p186
      %p188 = scmp.ne.s32.totalorder %s180, %s183
      %p189 = scmp.eq.s32.totalorder %s28, 0
      %p190 = por %p188, %p189
      %p191 = scmp.ne.s32.totalorder %s180, %s183
      %p192 = scmp.eq.s32.totalorder %s33, 1
      %p193 = por %p191, %p192
      %p194 = scmp.ne.s32.totalorder %s183, %s184
      %p195 = scmp.eq.s32.totalorder %s33, 0
      %p196 = por %p194, %p195
      %p197 = scmp.ne.s32.totalorder %s183, %s184
      %p198 = scmp.eq.s32.totalorder %s34, 1
      %p199 = por %p197, %p198
      %p201 = scmp.ne.s32.totalorder %s184, %s200
      %p202 = scmp.eq.s32.totalorder %s34, 0
      %p203 = por %p201, %p202
      %s204 = ssub.s32 %s36, %s43
      %p205 = scmp.eq.s32.totalorder %s204, 0
      %s207 = sadd.s32 %s206, 1
      %s208 = scalar_select %p205, %s206, %s207
      %p211 = pneg %p205
      %p212 = scmp.eq.s32.totalorder %s28, 1
      %p213 = por %p211, %p212
      %p214 = scmp.ne.s32.totalorder %s206, %s209
      %p215 = scmp.eq.s32.totalorder %s28, 0
      %p216 = por %p214, %p215
      %p217 = scmp.ne.s32.totalorder %s206, %s209
      %p218 = scmp.eq.s32.totalorder %s33, 1
      %p219 = por %p217, %p218
      %p220 = scmp.ne.s32.totalorder %s209, %s210
      %p221 = scmp.eq.s32.totalorder %s33, 0
      %p222 = por %p220, %p221
      %p223 = scmp.ne.s32.totalorder %s209, %s210
      %p224 = scmp.eq.s32.totalorder %s34, 1
      %p225 = por %p223, %p224
      %p227 = scmp.ne.s32.totalorder %s210, %s226
      %p228 = scmp.eq.s32.totalorder %s34, 0
      %p229 = por %p227, %p228
      %s230 = ssub.s32 %s36, %s43
      %p231 = scmp.eq.s32.totalorder %s230, 0
      %s233 = sadd.s32 %s232, 1
      %s234 = scalar_select %p231, %s232, %s233
      %p237 = pneg %p231
      %p238 = scmp.eq.s32.totalorder %s28, 1
      %p239 = por %p237, %p238
      %p240 = scmp.ne.s32.totalorder %s232, %s235
      %p241 = scmp.eq.s32.totalorder %s28, 0
      %p242 = por %p240, %p241
      %p243 = scmp.ne.s32.totalorder %s232, %s235
      %p244 = scmp.eq.s32.totalorder %s33, 1
      %p245 = por %p243, %p244
      %p246 = scmp.ne.s32.totalorder %s235, %s236
      %p247 = scmp.eq.s32.totalorder %s33, 0
      %p248 = por %p246, %p247
      %p249 = scmp.ne.s32.totalorder %s235, %s236
      %p250 = scmp.eq.s32.totalorder %s34, 1
      %p251 = por %p249, %p250
      %p253 = scmp.ne.s32.totalorder %s236, %s252
      %p254 = scmp.eq.s32.totalorder %s34, 0
      %p255 = por %p253, %p254
      %s256 = ssub.s32 %s36, %s43
      %p257 = scmp.eq.s32.totalorder %s256, 0
      %s259 = sadd.s32 %s258, 1
      %s260 = scalar_select %p257, %s258, %s259
      %p263 = pneg %p257
      %p264 = scmp.eq.s32.totalorder %s28, 1
      %p265 = por %p263, %p264
      %p266 = scmp.ne.s32.totalorder %s258, %s261
      %p267 = scmp.eq.s32.totalorder %s28, 0
      %p268 = por %p266, %p267
      %p269 = scmp.ne.s32.totalorder %s258, %s261
      %p270 = scmp.eq.s32.totalorder %s33, 1
      %p271 = por %p269, %p270
      %p272 = scmp.ne.s32.totalorder %s261, %s262
      %p273 = scmp.eq.s32.totalorder %s33, 0
      %p274 = por %p272, %p273
      %p275 = scmp.ne.s32.totalorder %s261, %s262
      %p276 = scmp.eq.s32.totalorder %s34, 1
      %p277 = por %p275, %p276
      %p279 = scmp.ne.s32.totalorder %s262, %s278
      %p280 = scmp.eq.s32.totalorder %s34, 0
      %p281 = por %p279, %p280
      %s282 = ssub.s32 %s36, %s43
      %p283 = scmp.eq.s32.totalorder %s282, 0
      %s285 = sadd.s32 %s284, 1
      %s286 = scalar_select %p283, %s284, %s285
      %p289 = pneg %p283
      %p290 = scmp.eq.s32.totalorder %s28, 1
      %p291 = por %p289, %p290
      %p292 = scmp.ne.s32.totalorder %s284, %s287
      %p293 = scmp.eq.s32.totalorder %s28, 0
      %p294 = por %p292, %p293
      %p295 = scmp.ne.s32.totalorder %s284, %s287
      %p296 = scmp.eq.s32.totalorder %s33, 1
      %p297 = por %p295, %p296
      %p298 = scmp.ne.s32.totalorder %s287, %s288
      %p299 = scmp.eq.s32.totalorder %s33, 0
      %p300 = por %p298, %p299
      %p301 = scmp.ne.s32.totalorder %s287, %s288
      %p302 = scmp.eq.s32.totalorder %s34, 1
      %p303 = por %p301, %p302
      %p305 = scmp.ne.s32.totalorder %s288, %s304
      %p306 = scmp.eq.s32.totalorder %s34, 0
      %p307 = por %p305, %p306
      %s308 = ssub.s32 %s36, %s43
      %p309 = scmp.eq.s32.totalorder %s308, 0
      %s311 = sadd.s32 %s310, 1
      %s312 = scalar_select %p309, %s310, %s311
      %p315 = pneg %p309
      %p316 = scmp.eq.s32.totalorder %s28, 1
      %p317 = por %p315, %p316
      %p318 = scmp.ne.s32.totalorder %s310, %s313
      %p319 = scmp.eq.s32.totalorder %s28, 0
      %p320 = por %p318, %p319
      %p321 = scmp.ne.s32.totalorder %s310, %s313
      %p322 = scmp.eq.s32.totalorder %s33, 1
      %p323 = por %p321, %p322
      %p324 = scmp.ne.s32.totalorder %s313, %s314
      %p325 = scmp.eq.s32.totalorder %s33, 0
      %p326 = por %p324, %p325
      %p327 = scmp.ne.s32.totalorder %s313, %s314
      %p328 = scmp.eq.s32.totalorder %s34, 1
      %p329 = por %p327, %p328
      %p331 = scmp.ne.s32.totalorder %s314, %s330
      %p332 = scmp.eq.s32.totalorder %s34, 0
      %p333 = por %p331, %p332
      %s334 = ssub.s32 %s36, %s43
      %p335 = scmp.eq.s32.totalorder %s334, 0
      %s337 = sadd.s32 %s336, 1
      %s338 = scalar_select %p335, %s336, %s337
      %p341 = pneg %p335
      %p342 = scmp.eq.s32.totalorder %s28, 1
      %p343 = por %p341, %p342
      %p344 = scmp.ne.s32.totalorder %s336, %s339
      %p345 = scmp.eq.s32.totalorder %s28, 0
      %p346 = por %p344, %p345
      %p347 = scmp.ne.s32.totalorder %s336, %s339
      %p348 = scmp.eq.s32.totalorder %s33, 1
      %p349 = por %p347, %p348
      %p350 = scmp.ne.s32.totalorder %s339, %s340
      %p351 = scmp.eq.s32.totalorder %s33, 0
      %p352 = por %p350, %p351
      %p353 = scmp.ne.s32.totalorder %s339, %s340
      %p354 = scmp.eq.s32.totalorder %s34, 1
      %p355 = por %p353, %p354
      %p357 = scmp.ne.s32.totalorder %s340, %s356
      %p358 = scmp.eq.s32.totalorder %s34, 0
      %p359 = por %p357, %p358
      %s360 = ssub.s32 %s36, %s43
      %p361 = scmp.eq.s32.totalorder %s360, 0
      %s363 = sadd.s32 %s362, 1
      %s364 = scalar_select %p361, %s362, %s363
      %p367 = pneg %p361
      %p368 = scmp.eq.s32.totalorder %s28, 1
      %p369 = por %p367, %p368
      %p370 = scmp.ne.s32.totalorder %s362, %s365
      %p371 = scmp.eq.s32.totalorder %s28, 0
      %p372 = por %p370, %p371
      %p373 = scmp.ne.s32.totalorder %s362, %s365
      %p374 = scmp.eq.s32.totalorder %s33, 1
      %p375 = por %p373, %p374
      %p376 = scmp.ne.s32.totalorder %s365, %s366
      %p377 = scmp.eq.s32.totalorder %s33, 0
      %p378 = por %p376, %p377
      %p379 = scmp.ne.s32.totalorder %s365, %s366
      %p380 = scmp.eq.s32.totalorder %s34, 1
      %p381 = por %p379, %p380
      %p383 = scmp.ne.s32.totalorder %s366, %s382
      %p384 = scmp.eq.s32.totalorder %s34, 0
      %p385 = por %p383, %p384
      %s386 = ssub.s32 %s36, %s43
      %p387 = scmp.eq.s32.totalorder %s386, 0
      %s389 = sadd.s32 %s388, 1
      %s390 = scalar_select %p387, %s388, %s389
      %p393 = pneg %p387
      %p394 = scmp.eq.s32.totalorder %s28, 1
      %p395 = por %p393, %p394
      %p396 = scmp.ne.s32.totalorder %s388, %s391
      %p397 = scmp.eq.s32.totalorder %s28, 0
      %p398 = por %p396, %p397
      %p399 = scmp.ne.s32.totalorder %s388, %s391
      %p400 = scmp.eq.s32.totalorder %s33, 1
      %p401 = por %p399, %p400
      %p402 = scmp.ne.s32.totalorder %s391, %s392
      %p403 = scmp.eq.s32.totalorder %s33, 0
      %p404 = por %p402, %p403
      %p405 = scmp.ne.s32.totalorder %s391, %s392
      %p406 = scmp.eq.s32.totalorder %s34, 1
      %p407 = por %p405, %p406
      %p409 = scmp.ne.s32.totalorder %s392, %s408
      %p410 = scmp.eq.s32.totalorder %s34, 0
      %p411 = por %p409, %p410
      %s412 = ssub.s32 %s36, %s43
      %p413 = scmp.eq.s32.totalorder %s412, 0
      %s415 = sadd.s32 %s414, 1
      %s416 = scalar_select %p413, %s414, %s415
      %p419 = pneg %p413
      %p420 = scmp.eq.s32.totalorder %s28, 1
      %p421 = por %p419, %p420
      %p422 = scmp.ne.s32.totalorder %s414, %s417
      %p423 = scmp.eq.s32.totalorder %s28, 0
      %p424 = por %p422, %p423
      %p425 = scmp.ne.s32.totalorder %s414, %s417
      %p426 = scmp.eq.s32.totalorder %s33, 1
      %p427 = por %p425, %p426
      %p428 = scmp.ne.s32.totalorder %s417, %s418
      %p429 = scmp.eq.s32.totalorder %s33, 0
      %p430 = por %p428, %p429
      %p431 = scmp.ne.s32.totalorder %s417, %s418
      %p432 = scmp.eq.s32.totalorder %s34, 1
      %p433 = por %p431, %p432
      %p435 = scmp.ne.s32.totalorder %s418, %s434
      %p436 = scmp.eq.s32.totalorder %s34, 0
      %p437 = por %p435, %p436
      %s438 = ssub.s32 %s36, %s43
      %p439 = scmp.eq.s32.totalorder %s438, 0
      %s441 = sadd.s32 %s440, 1
      %s442 = scalar_select %p439, %s440, %s441
      %p445 = pneg %p439
      %p446 = scmp.eq.s32.totalorder %s28, 1
      %p447 = por %p445, %p446
      %p448 = scmp.ne.s32.totalorder %s440, %s443
      %p449 = scmp.eq.s32.totalorder %s28, 0
      %p450 = por %p448, %p449
      %p451 = scmp.ne.s32.totalorder %s440, %s443
      %p452 = scmp.eq.s32.totalorder %s33, 1
      %p453 = por %p451, %p452
      %p454 = scmp.ne.s32.totalorder %s443, %s444
      %p455 = scmp.eq.s32.totalorder %s33, 0
      %p456 = por %p454, %p455
      %p457 = scmp.ne.s32.totalorder %s443, %s444
      %p458 = scmp.eq.s32.totalorder %s34, 1
      %p459 = por %p457, %p458
      %p461 = scmp.ne.s32.totalorder %s444, %s460
      %p462 = scmp.eq.s32.totalorder %s34, 0
      %p463 = por %p461, %p462
      %s464 = ssub.s32 %s36, %s43
      %p465 = scmp.eq.s32.totalorder %s464, 0
      %s467 = sadd.s32 %s466, 1
      %s468 = scalar_select %p465, %s466, %s467
      %p471 = pneg %p465
      %p472 = scmp.eq.s32.totalorder %s28, 1
      %p473 = por %p471, %p472
      %p474 = scmp.ne.s32.totalorder %s466, %s469
      %p475 = scmp.eq.s32.totalorder %s28, 0
      %p476 = por %p474, %p475
      %p477 = scmp.ne.s32.totalorder %s466, %s469
      %p478 = scmp.eq.s32.totalorder %s33, 1
      %p479 = por %p477, %p478
      %p480 = scmp.ne.s32.totalorder %s469, %s470
      %p481 = scmp.eq.s32.totalorder %s33, 0
      %p482 = por %p480, %p481
      %p483 = scmp.ne.s32.totalorder %s469, %s470
      %p484 = scmp.eq.s32.totalorder %s34, 1
      %p485 = por %p483, %p484
      %p487 = scmp.ne.s32.totalorder %s470, %s486
      %p488 = scmp.eq.s32.totalorder %s34, 0
      %p489 = por %p487, %p488
      %s490 = ssub.s32 %s36, %s43
      %p491 = scmp.eq.s32.totalorder %s490, 0
      %s493 = sadd.s32 %s492, 1
      %s494 = scalar_select %p491, %s492, %s493
      %p497 = pneg %p491
      %p498 = scmp.eq.s32.totalorder %s28, 1
      %p499 = por %p497, %p498
      %p500 = scmp.ne.s32.totalorder %s492, %s495
      %p501 = scmp.eq.s32.totalorder %s28, 0
      %p502 = por %p500, %p501
      %p503 = scmp.ne.s32.totalorder %s492, %s495
      %p504 = scmp.eq.s32.totalorder %s33, 1
      %p505 = por %p503, %p504
      %p506 = scmp.ne.s32.totalorder %s495, %s496
      %p507 = scmp.eq.s32.totalorder %s33, 0
      %p508 = por %p506, %p507
      %p509 = scmp.ne.s32.totalorder %s495, %s496
      %p510 = scmp.eq.s32.totalorder %s34, 1
      %p511 = por %p509, %p510
      %p513 = scmp.ne.s32.totalorder %s496, %s512
      %p514 = scmp.eq.s32.totalorder %s34, 0
      %p515 = por %p513, %p514
      %s516 = ssub.s32 %s35, %s47
      %p517 = scmp.eq.s32.totalorder %s516, 0
      %s519 = sadd.s32 %s518, 1
      %s520 = scalar_select %p517, %s518, %s519
      %p523 = pneg %p517
      %p524 = scmp.eq.s32.totalorder %s28, 1
      %p525 = por %p523, %p524
      %p526 = scmp.ne.s32.totalorder %s518, %s521
      %p527 = scmp.eq.s32.totalorder %s28, 0
      %p528 = por %p526, %p527
      %p529 = scmp.ne.s32.totalorder %s518, %s521
      %p530 = scmp.eq.s32.totalorder %s33, 1
      %p531 = por %p529, %p530
      %p532 = scmp.ne.s32.totalorder %s521, %s522
      %p533 = scmp.eq.s32.totalorder %s33, 0
      %p534 = por %p532, %p533
      %p535 = scmp.ne.s32.totalorder %s521, %s522
      %p536 = scmp.eq.s32.totalorder %s34, 1
      %p537 = por %p535, %p536
      %p539 = scmp.ne.s32.totalorder %s522, %s538
      %p540 = scmp.eq.s32.totalorder %s34, 0
      %p541 = por %p539, %p540
      %p542 = scmp.le.s32.totalorder 1, %s28
      %p543 = scmp.lt.s32.totalorder %s28, 3
      %p544 = pnand %p542, %p543
      %p545 = pneg %p544
      // Predicated region
      $region9: #{tpu_custom_call.1} parent=5 // pred_check
        _
      $region10: #{tpu_custom_call.1} parent=5 // pred_check_branch
        %547 = sbr.rel (%p544) target = $region12
      $region11: #{tpu_custom_call.1} parent=5 // pred_region
        %s548 = ssub.s32 %s28, 1
        // Predicated region
        $region13: #{tpu_custom_call.1} parent=11 // pred_check
          %p549 = pneg %p66
        $region14: #{tpu_custom_call.1} parent=11 // pred_check_branch
          %551 = sbr.rel (%p549) target = $region16
        $region15: #{tpu_custom_call.1} parent=11 // pred_region
          %s552 = smul.u32 2, %s37
          %s554 = ssub.s32 256, 256
          %555 = vsyncadd [#allocation3], %s554
          %s556 = smul.addr %s552, 128
          %s557 = scalar_lea.hbm %s0, %s556
          %s558 = sshll.u32 [#allocation2], 4
          %s559 = int_to_ptr.vmem [resolvable:$true] %s558
          %564 = dma.hbm_to_vmem [thread:$0]  %s557, 256, %s559, [#allocation3], 128, 128, 8
        $region16: #{tpu_custom_call.1} parent=11 // pred_fallthru
          _
        // Predicated region
        $region17: #{tpu_custom_call.1} parent=11 // pred_check
          %p565 = pneg %p92
        $region18: #{tpu_custom_call.1} parent=11 // pred_check_branch
          %567 = sbr.rel (%p565) target = $region20
        $region19: #{tpu_custom_call.1} parent=11 // pred_region
          %s568 = smul.u32 2, %s37
          %s570 = ssub.s32 256, 256
          %571 = vsyncadd [#allocation6], %s570
          %s572 = smul.addr %s568, 128
          %s573 = scalar_lea.hbm %s1, %s572
          %s574 = sshll.u32 [#allocation5], 4
          %s575 = int_to_ptr.vmem [resolvable:$true] %s574
          %580 = dma.hbm_to_vmem [thread:$0]  %s573, 256, %s575, [#allocation6], 128, 128, 8
        $region20: #{tpu_custom_call.1} parent=11 // pred_fallthru
          _
        // Predicated region
        $region21: #{tpu_custom_call.1} parent=11 // pred_check
          %p581 = pneg %p118
        $region22: #{tpu_custom_call.1} parent=11 // pred_check_branch
          %583 = sbr.rel (%p581) target = $region24
        $region23: #{tpu_custom_call.1} parent=11 // pred_region
          %s584 = smul.u32 2, %s37
          %s586 = ssub.s32 256, 256
          %587 = vsyncadd [#allocation6], %s586
          %s588 = smul.addr %s584, 128
          %s589 = scalar_lea.hbm %s2, %s588
          %s590 = sshll.u32 [#allocation7], 4
          %s591 = int_to_ptr.vmem [resolvable:$true] %s590
          %596 = dma.hbm_to_vmem [thread:$0]  %s589, 256, %s591, [#allocation6], 128, 128, 8
        $region24: #{tpu_custom_call.1} parent=11 // pred_fallthru
          _
        // Predicated region
        $region25: #{tpu_custom_call.1} parent=11 // pred_check
          %p597 = pneg %p144
        $region26: #{tpu_custom_call.1} parent=11 // pred_check_branch
          %599 = sbr.rel (%p597) target = $region28
        $region27: #{tpu_custom_call.1} parent=11 // pred_region
          %s600 = smul.u32 2, %s37
          %s602 = ssub.s32 256, 256
          %603 = vsyncadd [#allocation9], %s602
          %s604 = smul.addr %s600, 128
          %s605 = scalar_lea.hbm %s3, %s604
          %s606 = sshll.u32 [#allocation8], 4
          %s607 = int_to_ptr.vmem [resolvable:$true] %s606
          %612 = dma.hbm_to_vmem [thread:$0]  %s605, 256, %s607, [#allocation9], 128, 128, 8
        $region28: #{tpu_custom_call.1} parent=11 // pred_fallthru
          _
      $region12: #{tpu_custom_call.1} parent=5 // pred_fallthru
        _
      %p613 = scmp.lt.s32.totalorder %s28, 2
      // Predicated region
      $region29: #{tpu_custom_call.1} parent=5 // pred_check
        %p614 = pneg %p613
      $region30: #{tpu_custom_call.1} parent=5 // pred_check_branch
        %616 = sbr.rel (%p614) target = $region32
      $region31: #{tpu_custom_call.1} parent=5 // pred_region
        // Predicated region
        $region33: #{tpu_custom_call.1} parent=31 // pred_check
          %p617 = pneg %p164
        $region34: #{tpu_custom_call.1} parent=31 // pred_check_branch
          %619 = sbr.rel (%p617) target = $region36
        $region35: #{tpu_custom_call.1} parent=31 // pred_region
          %s620 = sand.u32 %s28, 1
          %s621 = scalar_lea.sflag [#allocation3], %s620
          %s622 = sand.u32 %s154, 1
          %s623 = smul.addr %s622, 4
          %s624 = scalar_lea.vmem [#allocation10], %s623
          %s626 = ssub.s32 64, 64
          %627 = vsyncadd %s621, %s626
          %s628 = smul.addr %s36, 64
          %s629 = scalar_lea.hbm %s4, %s628
          %s631 = sshll.u32 %s624, 4
          %s632 = int_to_ptr.vmem [resolvable:$true] %s631
          %634 = dma.hbm_to_vmem [thread:$0]  %s629, 64, %s632, %s621
        $region36: #{tpu_custom_call.1} parent=31 // pred_fallthru
          _
        // Predicated region
        $region37: #{tpu_custom_call.1} parent=31 // pred_check
          %p635 = pneg %p190
        $region38: #{tpu_custom_call.1} parent=31 // pred_check_branch
          %637 = sbr.rel (%p635) target = $region40
        $region39: #{tpu_custom_call.1} parent=31 // pred_region
          %s638 = sand.u32 %s28, 1
          %s639 = scalar_lea.sflag [#allocation3], %s638
          %s640 = sand.u32 %s180, 1
          %s641 = smul.addr %s640, 4
          %s642 = scalar_lea.vmem [#allocation11], %s641
          %s644 = ssub.s32 64, 64
          %645 = vsyncadd %s639, %s644
          %s646 = smul.addr %s36, 64
          %s647 = scalar_lea.hbm %s5, %s646
          %s649 = sshll.u32 %s642, 4
          %s650 = int_to_ptr.vmem [resolvable:$true] %s649
          %652 = dma.hbm_to_vmem [thread:$0]  %s647, 64, %s650, %s639
        $region40: #{tpu_custom_call.1} parent=31 // pred_fallthru
          _
        // Predicated region
        $region41: #{tpu_custom_call.1} parent=31 // pred_check
          %p653 = pneg %p216
        $region42: #{tpu_custom_call.1} parent=31 // pred_check_branch
          %655 = sbr.rel (%p653) target = $region44
        $region43: #{tpu_custom_call.1} parent=31 // pred_region
          %p656 = scmp.lt.s32.totalorder %s36, 1
          %s657 = scalar_select %p656, %s36, 1
          %s658 = smul.addr %s657, 4
          %s659 = smul.addr %s658, 4
          %s660 = scalar_lea.vmem %s6, %s659
        $region44: #{tpu_custom_call.1} parent=31 // pred_fallthru
          _
        // Predicated region
        $region45: #{tpu_custom_call.1} parent=31 // pred_check
          %p661 = pneg %p242
        $region46: #{tpu_custom_call.1} parent=31 // pred_check_branch
          %663 = sbr.rel (%p661) target = $region48
        $region47: #{tpu_custom_call.1} parent=31 // pred_region
          %s664 = sand.u32 %s28, 1
          %s665 = scalar_lea.sflag [#allocation3], %s664
          %s666 = sand.u32 %s232, 1
          %s667 = scalar_lea.vmem [#allocation12], %s666
          %s669 = ssub.s32 16, 16
          %670 = vsyncadd %s665, %s669
          %s671 = smul.addr %s36, 16
          %s672 = scalar_lea.hbm %s7, %s671
          %s674 = sshll.u32 %s667, 4
          %s675 = int_to_ptr.vmem [resolvable:$true] %s674
          %677 = dma.hbm_to_vmem [thread:$0]  %s672, 16, %s675, %s665
        $region48: #{tpu_custom_call.1} parent=31 // pred_fallthru
          _
        // Predicated region
        $region49: #{tpu_custom_call.1} parent=31 // pred_check
          %p678 = pneg %p268
        $region50: #{tpu_custom_call.1} parent=31 // pred_check_branch
          %680 = sbr.rel (%p678) target = $region52
        $region51: #{tpu_custom_call.1} parent=31 // pred_region
          %s681 = sand.u32 %s28, 1
          %s682 = scalar_lea.sflag [#allocation3], %s681
          %s683 = sand.u32 %s258, 1
          %s684 = smul.addr %s683, 16
          %s685 = scalar_lea.vmem [#allocation13], %s684
          %s687 = ssub.s32 256, 256
          %688 = vsyncadd %s682, %s687
          %s689 = smul.addr %s36, 4
          %s690 = smul.addr %s689, 64
          %s691 = scalar_lea.hbm %s8, %s690
          %s692 = sshll.u32 %s685, 4
          %s693 = int_to_ptr.vmem [resolvable:$true] %s692
          %698 = dma.hbm_to_vmem [thread:$0]  %s691, 256, %s693, %s682, 64, 64, 4
        $region52: #{tpu_custom_call.1} parent=31 // pred_fallthru
          _
        // Predicated region
        $region53: #{tpu_custom_call.1} parent=31 // pred_check
          %p699 = pneg %p294
        $region54: #{tpu_custom_call.1} parent=31 // pred_check_branch
          %701 = sbr.rel (%p699) target = $region56
        $region55: #{tpu_custom_call.1} parent=31 // pred_region
          %s702 = sand.u32 %s28, 1
          %s703 = scalar_lea.sflag [#allocation3], %s702
          %s704 = sand.u32 %s284, 1
          %s705 = scalar_lea.vmem [#allocation14], %s704
          %s707 = ssub.s32 16, 16
          %708 = vsyncadd %s703, %s707
          %s709 = smul.addr %s36, 16
          %s710 = scalar_lea.hbm %s9, %s709
          %s712 = sshll.u32 %s705, 4
          %s713 = int_to_ptr.vmem [resolvable:$true] %s712
          %715 = dma.hbm_to_vmem [thread:$0]  %s710, 16, %s713, %s703
        $region56: #{tpu_custom_call.1} parent=31 // pred_fallthru
          _
        // Predicated region
        $region57: #{tpu_custom_call.1} parent=31 // pred_check
          %p716 = pneg %p320
        $region58: #{tpu_custom_call.1} parent=31 // pred_check_branch
          %718 = sbr.rel (%p716) target = $region60
        $region59: #{tpu_custom_call.1} parent=31 // pred_region
          %s719 = sand.u32 %s28, 1
          %s720 = scalar_lea.sflag [#allocation3], %s719
          %s721 = sand.u32 %s310, 1
          %s722 = smul.addr %s721, 16
          %s723 = scalar_lea.vmem [#allocation15], %s722
          %s725 = ssub.s32 256, 256
          %726 = vsyncadd %s720, %s725
          %s727 = smul.addr %s36, 4
          %s728 = smul.addr %s727, 64
          %s729 = scalar_lea.hbm %s10, %s728
          %s730 = sshll.u32 %s723, 4
          %s731 = int_to_ptr.vmem [resolvable:$true] %s730
          %736 = dma.hbm_to_vmem [thread:$0]  %s729, 256, %s731, %s720, 64, 64, 4
        $region60: #{tpu_custom_call.1} parent=31 // pred_fallthru
          _
        // Predicated region
        $region61: #{tpu_custom_call.1} parent=31 // pred_check
          %p737 = pneg %p346
        $region62: #{tpu_custom_call.1} parent=31 // pred_check_branch
          %739 = sbr.rel (%p737) target = $region64
        $region63: #{tpu_custom_call.1} parent=31 // pred_region
          %s740 = sand.u32 %s28, 1
          %s741 = scalar_lea.sflag [#allocation3], %s740
          %s742 = sand.u32 %s336, 1
          %s743 = scalar_lea.vmem [#allocation16], %s742
          %s745 = ssub.s32 16, 16
          %746 = vsyncadd %s741, %s745
          %s747 = smul.addr %s36, 16
          %s748 = scalar_lea.hbm %s11, %s747
          %s750 = sshll.u32 %s743, 4
          %s751 = int_to_ptr.vmem [resolvable:$true] %s750
          %753 = dma.hbm_to_vmem [thread:$0]  %s748, 16, %s751, %s741
        $region64: #{tpu_custom_call.1} parent=31 // pred_fallthru
          _
        // Predicated region
        $region65: #{tpu_custom_call.1} parent=31 // pred_check
          %p754 = pneg %p372
        $region66: #{tpu_custom_call.1} parent=31 // pred_check_branch
          %756 = sbr.rel (%p754) target = $region68
        $region67: #{tpu_custom_call.1} parent=31 // pred_region
          %p757 = scmp.lt.s32.totalorder %s36, 1
          %s758 = scalar_select %p757, %s36, 1
          %s759 = smul.addr %s758, 4
          %s760 = smul.addr %s759, 4
          %s761 = scalar_lea.vmem %s12, %s760
        $region68: #{tpu_custom_call.1} parent=31 // pred_fallthru
          _
        // Predicated region
        $region69: #{tpu_custom_call.1} parent=31 // pred_check
          %p762 = pneg %p398
        $region70: #{tpu_custom_call.1} parent=31 // pred_check_branch
          %764 = sbr.rel (%p762) target = $region72
        $region71: #{tpu_custom_call.1} parent=31 // pred_region
          %s765 = sand.u32 %s28, 1
          %s766 = scalar_lea.sflag [#allocation3], %s765
          %s767 = sand.u32 %s388, 1
          %s768 = scalar_lea.vmem [#allocation17], %s767
          %s770 = ssub.s32 16, 16
          %771 = vsyncadd %s766, %s770
          %s772 = smul.addr %s36, 16
          %s773 = scalar_lea.hbm %s13, %s772
          %s775 = sshll.u32 %s768, 4
          %s776 = int_to_ptr.vmem [resolvable:$true] %s775
          %778 = dma.hbm_to_vmem [thread:$0]  %s773, 16, %s776, %s766
        $region72: #{tpu_custom_call.1} parent=31 // pred_fallthru
          _
        // Predicated region
        $region73: #{tpu_custom_call.1} parent=31 // pred_check
          %p779 = pneg %p424
        $region74: #{tpu_custom_call.1} parent=31 // pred_check_branch
          %781 = sbr.rel (%p779) target = $region76
        $region75: #{tpu_custom_call.1} parent=31 // pred_region
          %s782 = sand.u32 %s28, 1
          %s783 = scalar_lea.sflag [#allocation3], %s782
          %s784 = sand.u32 %s414, 1
          %s785 = smul.addr %s784, 16
          %s786 = scalar_lea.vmem [#allocation18], %s785
          %s788 = ssub.s32 256, 256
          %789 = vsyncadd %s783, %s788
          %s790 = smul.addr %s36, 4
          %s791 = smul.addr %s790, 64
          %s792 = scalar_lea.hbm %s14, %s791
          %s793 = sshll.u32 %s786, 4
          %s794 = int_to_ptr.vmem [resolvable:$true] %s793
          %799 = dma.hbm_to_vmem [thread:$0]  %s792, 256, %s794, %s783, 64, 64, 4
        $region76: #{tpu_custom_call.1} parent=31 // pred_fallthru
          _
        // Predicated region
        $region77: #{tpu_custom_call.1} parent=31 // pred_check
          %p800 = pneg %p450
        $region78: #{tpu_custom_call.1} parent=31 // pred_check_branch
          %802 = sbr.rel (%p800) target = $region80
        $region79: #{tpu_custom_call.1} parent=31 // pred_region
          %p803 = scmp.lt.s32.totalorder %s36, 1
          %s804 = scalar_select %p803, %s36, 1
          %s805 = scalar_lea.vmem %s15, %s804
        $region80: #{tpu_custom_call.1} parent=31 // pred_fallthru
          _
        // Predicated region
        $region81: #{tpu_custom_call.1} parent=31 // pred_check
          %p806 = pneg %p476
        $region82: #{tpu_custom_call.1} parent=31 // pred_check_branch
          %808 = sbr.rel (%p806) target = $region84
        $region83: #{tpu_custom_call.1} parent=31 // pred_region
          %p809 = scmp.lt.s32.totalorder %s36, 1
          %s810 = scalar_select %p809, %s36, 1
          %s811 = smul.addr %s810, 8
          %s812 = scalar_lea.vmem %s16, %s811
        $region84: #{tpu_custom_call.1} parent=31 // pred_fallthru
          _
        // Predicated region
        $region85: #{tpu_custom_call.1} parent=31 // pred_check
          %p813 = pneg %p502
        $region86: #{tpu_custom_call.1} parent=31 // pred_check_branch
          %815 = sbr.rel (%p813) target = $region88
        $region87: #{tpu_custom_call.1} parent=31 // pred_region
          %s816 = sand.u32 %s28, 1
          %s817 = scalar_lea.sflag [#allocation3], %s816
          %s818 = sand.u32 %s492, 1
          %s819 = smul.addr %s818, 16
          %s820 = scalar_lea.vmem [#allocation19], %s819
          %s822 = ssub.s32 256, 256
          %823 = vsyncadd %s817, %s822
          %s824 = smul.addr %s36, 4
          %s825 = smul.addr %s824, 64
          %s826 = scalar_lea.hbm %s17, %s825
          %s827 = sshll.u32 %s820, 4
          %s828 = int_to_ptr.vmem [resolvable:$true] %s827
          %833 = dma.hbm_to_vmem [thread:$0]  %s826, 256, %s828, %s817, 64, 64, 4
        $region88: #{tpu_custom_call.1} parent=31 // pred_fallthru
          _
      $region32: #{tpu_custom_call.1} parent=5 // pred_fallthru
        _
      %p834 = scmp.le.s32.totalorder 1, %s28
      %p835 = scmp.lt.s32.totalorder %s28, 3
      %p836 = pnand %p834, %p835
      %p837 = pneg %p836
      // Predicated region
      $region89: #{tpu_custom_call.1} parent=5 // pred_check
        _
      $region90: #{tpu_custom_call.1} parent=5 // pred_check_branch
        %839 = sbr.rel (%p836) target = $region92
      $region91: #{tpu_custom_call.1} parent=5 // pred_region
        %s840 = ssub.s32 %s28, 1
        // Predicated region
        $region93: #{tpu_custom_call.1} parent=91 // pred_check
          %p841 = pneg %p66
        $region94: #{tpu_custom_call.1} parent=91 // pred_check_branch
          %843 = sbr.rel (%p841) target = $region96
        $region95: #{tpu_custom_call.1} parent=91 // pred_region
          %844 = dma.done [#allocation3], 256
        $region96: #{tpu_custom_call.1} parent=91 // pred_fallthru
          _
        // Predicated region
        $region97: #{tpu_custom_call.1} parent=91 // pred_check
          %p845 = pneg %p92
        $region98: #{tpu_custom_call.1} parent=91 // pred_check_branch
          %847 = sbr.rel (%p845) target = $region100
        $region99: #{tpu_custom_call.1} parent=91 // pred_region
          %848 = dma.done [#allocation6], 256
        $region100: #{tpu_custom_call.1} parent=91 // pred_fallthru
          _
        // Predicated region
        $region101: #{tpu_custom_call.1} parent=91 // pred_check
          %p849 = pneg %p118
        $region102: #{tpu_custom_call.1} parent=91 // pred_check_branch
          %851 = sbr.rel (%p849) target = $region104
        $region103: #{tpu_custom_call.1} parent=91 // pred_region
          %852 = dma.done [#allocation6], 256
        $region104: #{tpu_custom_call.1} parent=91 // pred_fallthru
          _
        // Predicated region
        $region105: #{tpu_custom_call.1} parent=91 // pred_check
          %p853 = pneg %p144
        $region106: #{tpu_custom_call.1} parent=91 // pred_check_branch
          %855 = sbr.rel (%p853) target = $region108
        $region107: #{tpu_custom_call.1} parent=91 // pred_region
          %856 = dma.done [#allocation9], 256
        $region108: #{tpu_custom_call.1} parent=91 // pred_fallthru
          _
        %s857 = sand.u32 %s33, 1
        %s858 = scalar_lea.sflag [#allocation3], %s857
        %s859 = sand.u32 %s157, 1
        %s860 = smul.addr %s859, 4
        %s861 = scalar_lea.vmem [#allocation10], %s860
        // Predicated region
        $region109: #{tpu_custom_call.1} parent=91 // pred_check
          %p862 = pneg %p170
        $region110: #{tpu_custom_call.1} parent=91 // pred_check_branch
          %864 = sbr.rel (%p862) target = $region112
        $region111: #{tpu_custom_call.1} parent=91 // pred_region
          %865 = dma.done %s858, 64
        $region112: #{tpu_custom_call.1} parent=91 // pred_fallthru
          _
        %s866 = sand.u32 %s33, 1
        %s867 = scalar_lea.sflag [#allocation3], %s866
        %s868 = sand.u32 %s183, 1
        %s869 = smul.addr %s868, 4
        %s870 = scalar_lea.vmem [#allocation11], %s869
        // Predicated region
        $region113: #{tpu_custom_call.1} parent=91 // pred_check
          %p871 = pneg %p196
        $region114: #{tpu_custom_call.1} parent=91 // pred_check_branch
          %873 = sbr.rel (%p871) target = $region116
        $region115: #{tpu_custom_call.1} parent=91 // pred_region
          %874 = dma.done %s867, 64
        $region116: #{tpu_custom_call.1} parent=91 // pred_fallthru
          _
        %s875 = sand.u32 %s33, 1
        %s876 = scalar_lea.sflag [#allocation3], %s875
        %s877 = sand.u32 %s235, 1
        %s878 = scalar_lea.vmem [#allocation12], %s877
        // Predicated region
        $region117: #{tpu_custom_call.1} parent=91 // pred_check
          %p879 = pneg %p248
        $region118: #{tpu_custom_call.1} parent=91 // pred_check_branch
          %881 = sbr.rel (%p879) target = $region120
        $region119: #{tpu_custom_call.1} parent=91 // pred_region
          %882 = dma.done %s876, 16
        $region120: #{tpu_custom_call.1} parent=91 // pred_fallthru
          _
        %s883 = sand.u32 %s33, 1
        %s884 = scalar_lea.sflag [#allocation3], %s883
        %s885 = sand.u32 %s261, 1
        %s886 = smul.addr %s885, 16
        %s887 = scalar_lea.vmem [#allocation13], %s886
        // Predicated region
        $region121: #{tpu_custom_call.1} parent=91 // pred_check
          %p888 = pneg %p274
        $region122: #{tpu_custom_call.1} parent=91 // pred_check_branch
          %890 = sbr.rel (%p888) target = $region124
        $region123: #{tpu_custom_call.1} parent=91 // pred_region
          %891 = dma.done %s884, 256
        $region124: #{tpu_custom_call.1} parent=91 // pred_fallthru
          _
        %s892 = sand.u32 %s33, 1
        %s893 = scalar_lea.sflag [#allocation3], %s892
        %s894 = sand.u32 %s287, 1
        %s895 = scalar_lea.vmem [#allocation14], %s894
        // Predicated region
        $region125: #{tpu_custom_call.1} parent=91 // pred_check
          %p896 = pneg %p300
        $region126: #{tpu_custom_call.1} parent=91 // pred_check_branch
          %898 = sbr.rel (%p896) target = $region128
        $region127: #{tpu_custom_call.1} parent=91 // pred_region
          %899 = dma.done %s893, 16
        $region128: #{tpu_custom_call.1} parent=91 // pred_fallthru
          _
        %s900 = sand.u32 %s33, 1
        %s901 = scalar_lea.sflag [#allocation3], %s900
        %s902 = sand.u32 %s313, 1
        %s903 = smul.addr %s902, 16
        %s904 = scalar_lea.vmem [#allocation15], %s903
        // Predicated region
        $region129: #{tpu_custom_call.1} parent=91 // pred_check
          %p905 = pneg %p326
        $region130: #{tpu_custom_call.1} parent=91 // pred_check_branch
          %907 = sbr.rel (%p905) target = $region132
        $region131: #{tpu_custom_call.1} parent=91 // pred_region
          %908 = dma.done %s901, 256
        $region132: #{tpu_custom_call.1} parent=91 // pred_fallthru
          _
        %s909 = sand.u32 %s33, 1
        %s910 = scalar_lea.sflag [#allocation3], %s909
        %s911 = sand.u32 %s339, 1
        %s912 = scalar_lea.vmem [#allocation16], %s911
        // Predicated region
        $region133: #{tpu_custom_call.1} parent=91 // pred_check
          %p913 = pneg %p352
        $region134: #{tpu_custom_call.1} parent=91 // pred_check_branch
          %915 = sbr.rel (%p913) target = $region136
        $region135: #{tpu_custom_call.1} parent=91 // pred_region
          %916 = dma.done %s910, 16
        $region136: #{tpu_custom_call.1} parent=91 // pred_fallthru
          _
        %s917 = sand.u32 %s33, 1
        %s918 = scalar_lea.sflag [#allocation3], %s917
        %s919 = sand.u32 %s391, 1
        %s920 = scalar_lea.vmem [#allocation17], %s919
        // Predicated region
        $region137: #{tpu_custom_call.1} parent=91 // pred_check
          %p921 = pneg %p404
        $region138: #{tpu_custom_call.1} parent=91 // pred_check_branch
          %923 = sbr.rel (%p921) target = $region140
        $region139: #{tpu_custom_call.1} parent=91 // pred_region
          %924 = dma.done %s918, 16
        $region140: #{tpu_custom_call.1} parent=91 // pred_fallthru
          _
        %s925 = sand.u32 %s33, 1
        %s926 = scalar_lea.sflag [#allocation3], %s925
        %s927 = sand.u32 %s417, 1
        %s928 = smul.addr %s927, 16
        %s929 = scalar_lea.vmem [#allocation18], %s928
        // Predicated region
        $region141: #{tpu_custom_call.1} parent=91 // pred_check
          %p930 = pneg %p430
        $region142: #{tpu_custom_call.1} parent=91 // pred_check_branch
          %932 = sbr.rel (%p930) target = $region144
        $region143: #{tpu_custom_call.1} parent=91 // pred_region
          %933 = dma.done %s926, 256
        $region144: #{tpu_custom_call.1} parent=91 // pred_fallthru
          _
        %s934 = sand.u32 %s33, 1
        %s935 = scalar_lea.sflag [#allocation3], %s934
        %s936 = sand.u32 %s495, 1
        %s937 = smul.addr %s936, 16
        %s938 = scalar_lea.vmem [#allocation19], %s937
        // Predicated region
        $region145: #{tpu_custom_call.1} parent=91 // pred_check
          %p939 = pneg %p508
        $region146: #{tpu_custom_call.1} parent=91 // pred_check_branch
          %941 = sbr.rel (%p939) target = $region148
        $region147: #{tpu_custom_call.1} parent=91 // pred_region
          %942 = dma.done %s935, 256
        $region148: #{tpu_custom_call.1} parent=91 // pred_fallthru
          _
        %p943 = pneg %p66
        %p944 = pneg %p63
        %p945 = pneg %p92
        %p946 = pneg %p89
        %p947 = pneg %p118
        %p948 = pneg %p115
        %p949 = pneg %p144
        %p950 = pneg %p141
        %s951 = sand.u32 %s33, 1
        %s952 = scalar_lea.sflag [#allocation3], %s951
        %s953 = sand.u32 %s157, 1
        %s954 = smul.addr %s953, 4
        %s955 = scalar_lea.vmem [#allocation10], %s954
        %p956 = pneg %p170
        %p957 = pneg %p167
        %s958 = sand.u32 %s33, 1
        %s959 = scalar_lea.sflag [#allocation3], %s958
        %s960 = sand.u32 %s183, 1
        %s961 = smul.addr %s960, 4
        %s962 = scalar_lea.vmem [#allocation11], %s961
        %p963 = pneg %p196
        %p964 = pneg %p193
        %p965 = scmp.lt.s32.totalorder %s38, 1
        %s966 = scalar_select %p965, %s38, 1
        %s967 = smul.addr %s966, 4
        %s968 = smul.addr %s967, 4
        %s969 = scalar_lea.vmem %s6, %s968
        %p970 = pneg %p222
        %p971 = pneg %p219
        %s972 = sand.u32 %s33, 1
        %s973 = scalar_lea.sflag [#allocation3], %s972
        %s974 = sand.u32 %s235, 1
        %s975 = scalar_lea.vmem [#allocation12], %s974
        %p976 = pneg %p248
        %p977 = pneg %p245
        %s978 = sand.u32 %s33, 1
        %s979 = scalar_lea.sflag [#allocation3], %s978
        %s980 = sand.u32 %s261, 1
        %s981 = smul.addr %s980, 16
        %s982 = scalar_lea.vmem [#allocation13], %s981
        %p983 = pneg %p274
        %p984 = pneg %p271
        %s985 = sand.u32 %s33, 1
        %s986 = scalar_lea.sflag [#allocation3], %s985
        %s987 = sand.u32 %s287, 1
        %s988 = scalar_lea.vmem [#allocation14], %s987
        %p989 = pneg %p300
        %p990 = pneg %p297
        %s991 = sand.u32 %s33, 1
        %s992 = scalar_lea.sflag [#allocation3], %s991
        %s993 = sand.u32 %s313, 1
        %s994 = smul.addr %s993, 16
        %s995 = scalar_lea.vmem [#allocation15], %s994
        %p996 = pneg %p326
        %p997 = pneg %p323
        %s998 = sand.u32 %s33, 1
        %s999 = scalar_lea.sflag [#allocation3], %s998
        %s1000 = sand.u32 %s339, 1
        %s1001 = scalar_lea.vmem [#allocation16], %s1000
        %p1002 = pneg %p352
        %p1003 = pneg %p349
        %p1004 = scmp.lt.s32.totalorder %s38, 1
        %s1005 = scalar_select %p1004, %s38, 1
        %s1006 = smul.addr %s1005, 4
        %s1007 = smul.addr %s1006, 4
        %s1008 = scalar_lea.vmem %s12, %s1007
        %p1009 = pneg %p378
        %p1010 = pneg %p375
        %s1011 = sand.u32 %s33, 1
        %s1012 = scalar_lea.sflag [#allocation3], %s1011
        %s1013 = sand.u32 %s391, 1
        %s1014 = scalar_lea.vmem [#allocation17], %s1013
        %p1015 = pneg %p404
        %p1016 = pneg %p401
        %s1017 = sand.u32 %s33, 1
        %s1018 = scalar_lea.sflag [#allocation3], %s1017
        %s1019 = sand.u32 %s417, 1
        %s1020 = smul.addr %s1019, 16
        %s1021 = scalar_lea.vmem [#allocation18], %s1020
        %p1022 = pneg %p430
        %p1023 = pneg %p427
        %p1024 = scmp.lt.s32.totalorder %s38, 1
        %s1025 = scalar_select %p1024, %s38, 1
        %s1026 = scalar_lea.vmem %s15, %s1025
        %p1027 = pneg %p456
        %p1028 = pneg %p453
        %p1029 = scmp.lt.s32.totalorder %s38, 1
        %s1030 = scalar_select %p1029, %s38, 1
        %s1031 = smul.addr %s1030, 8
        %s1032 = scalar_lea.vmem %s16, %s1031
        %p1033 = pneg %p482
        %p1034 = pneg %p479
        %s1035 = sand.u32 %s33, 1
        %s1036 = scalar_lea.sflag [#allocation3], %s1035
        %s1037 = sand.u32 %s495, 1
        %s1038 = smul.addr %s1037, 16
        %s1039 = scalar_lea.vmem [#allocation19], %s1038
        %p1040 = pneg %p508
        %p1041 = pneg %p505
        %p1042 = pneg %p534
        %p1043 = pneg %p531
        %s1044 = smul.u32 2, %s37
        %s1045 = smul.u32 2, %s37
        %s1046 = smul.u32 2, %s37
        %s1047 = smul.u32 2, %s37
        %p1048 = scmp.lt.s32.totalorder %s38, 1
        %s1049 = scalar_select %p1048, %s38, 1
        %s1050 = smul.addr %s1049, 4
        %s1051 = smul.addr %s1050, 4
        %s1052 = scalar_lea.vmem %s6, %s1051
        %p1053 = scmp.lt.s32.totalorder %s38, 1
        %s1054 = scalar_select %p1053, %s38, 1
        %s1055 = smul.addr %s1054, 4
        %s1056 = smul.addr %s1055, 4
        %s1057 = scalar_lea.vmem %s12, %s1056
        %p1058 = scmp.lt.s32.totalorder %s38, 1
        %s1059 = scalar_select %p1058, %s38, 1
        %s1060 = scalar_lea.vmem %s15, %s1059
        %p1061 = scmp.lt.s32.totalorder %s38, 1
        %s1062 = scalar_select %p1061, %s38, 1
        %s1063 = smul.addr %s1062, 8
        %s1064 = scalar_lea.vmem %s16, %s1063
        %s1065 = smul.u32 2, %s37
        %p1067 = scmp.eq.s32.totalorder %s38, 0
        // Predicated region
        $region149: #{tpu_custom_call.1} parent=91 // pred_check
          %p1068 = pneg %p1067
        $region150: #{tpu_custom_call.1} parent=91 // pred_check_branch
          %1070 = sbr.rel (%p1068) target = $region152
        $region151: #{tpu_custom_call.1} parent=91 // pred_region
          %v1071 = vld [vmem:[#allocation2] sm:$0xff]
          %v1072 = vld [vmem:[#allocation2 + $0x8] sm:$0xff]
          %vm1073 = vcmask 261120
          %1074 = vst.msk [vmem:[#allocation20] sm:$0xff] %vm1073, %v1071
          %1075 = vst.msk [vmem:[#allocation20 + $0x8] sm:$0xff] %vm1073, %v1072
        $region152: #{tpu_custom_call.1} parent=91 // pred_fallthru
          _
        %v1076 = vld [vmem:[#allocation20] sm:$0xff]
        %v1077 = vld [vmem:[#allocation20 + $0x8] sm:$0xff]
        %v1078 = vld [vmem:[#allocation5] sm:$0xff]
        %v1079 = vld [vmem:[#allocation5 + $0x8] sm:$0xff]
        %v1080 = vpack.c.bf16 %v1079, %v1078
        %v1081 = vld [vmem:[#allocation7] sm:$0xff]
        %v1082 = vld [vmem:[#allocation7 + $0x8] sm:$0xff]
        %vm1083 = vcmp.ne.f32.partialorder %v1081, 0.0
        %vm1084 = vcmp.ne.f32.partialorder %v1082, 0.0
        %v1085 = vsel %vm1083, 0.0, -1e+10
        %v1086 = vsel %vm1084, 0.0, -1e+10
        %v1087 = vld [vmem:[#allocation8] sm:$0xff]
        %v1088 = vld [vmem:[#allocation8 + $0x8] sm:$0xff]
        %vm1089 = vcmp.ne.f32.partialorder %v1087, 0.0
        %vm1090 = vcmp.ne.f32.partialorder %v1088, 0.0
        %v1091 = vsel %vm1089, 0.0, -1e+10
        %v1092 = vsel %vm1090, 0.0, -1e+10
        %v1093 = vld [vmem:[%s861] sm:$0xf]
        %v1094 = vld [vmem:[%s870] sm:$0xf]
        %vm1095 = vcmask 261120
        %v1096 = vsel %vm1095, %v1076, 0.0
        %1097 = vadd.xlane.f32.xlu0 %v1096
        %v1098 = vpop.xlane.xlu0 %1097
        %v1099 = vsel %vm1095, %v1077, 0.0
        %1100 = vadd.xlane.f32.xlu0 %v1099
        %v1101 = vpop.xlane.xlu0 %1100
        %v1102 = vrcp.pop 32.0
        %v1103 = vmul.f32 %v1098, %v1102
        %v1104 = vmul.f32 %v1101, %v1102
        %v1105 = vsub.f32 %v1076, %v1103
        %v1106 = vsub.f32 %v1077, %v1104
        %v1107 = vmul.f32 %v1105, %v1105
        %v1108 = vmul.f32 %v1106, %v1106
        %v1109 = vsel %vm1095, %v1107, 0.0
        %1110 = vadd.xlane.f32.xlu0 %v1109
        %v1111 = vpop.xlane.xlu0 %1110
        %v1112 = vsel %vm1095, %v1108, 0.0
        %1113 = vadd.xlane.f32.xlu0 %v1112
        %v1114 = vpop.xlane.xlu0 %1113
        %v1115 = vmul.f32 %v1111, %v1102
        %v1116 = vmul.f32 %v1114, %v1102
        %v1117 = vadd.f32 %v1115, 1e-05
        %v1118 = vadd.f32 %v1116, 1e-05
        %v1119 = vrsqrt.pop %v1117
        %v1120 = vrsqrt.pop %v1118
        %v1121 = vmul.f32 %v1105, %v1119
        %v1122 = vmul.f32 %v1106, %v1120
        %v1123 = vlaneseq
        %v1124 = vshrl.u32 %v1123, 7
        %v1125 = vsub.s32 0, %v1124
        %v1126 = vrot.slane %v1093, %v1125
        %v1127 = vmul.f32 %v1121, %v1126
        %v1128 = vmul.f32 %v1122, %v1126
        %v1129 = vlaneseq
        %v1130 = vshrl.u32 %v1129, 7
        %v1131 = vsub.s32 0, %v1130
        %v1132 = vrot.slane %v1094, %v1131
        %v1133 = vadd.f32 %v1127, %v1132
        %v1134 = vadd.f32 %v1128, %v1132
        %v1135 = vpack.c.bf16 %v1134, %v1133
        %v1136 = vld [vmem:[%s1052] sm:$0xf]
        %v1137 = vld [vmem:[%s1052 + $0x4] sm:$0xf]
        %v1138 = vld [vmem:[%s1052 + $0x8] sm:$0xf]
        %v1139 = vld [vmem:[%s1052 + $0xc] sm:$0xf]
        %v1140 = vld [vmem:[%s878] sm:$0x1]
        %v1142 = vlaneseq
        %v1143 = vshrl.u32 %v1142, 7
        %v1144 = vsub.s32 0, %v1143
        %v1145 = vrot.slane %v1140, %v1144
        %v1151 = vunpack.c.l.b16 %v1136
        %v1152 = vunpack.c.l.b16 %v1137
        %v1153 = vunpack.c.l.b16 %v1138
        %v1154 = vunpack.c.l.b16 %v1139
        %v1155 = vpack.c.b16 %v1152, %v1151
        %v1156 = vpack.c.b16 %v1154, %v1153
        %v1160 = vsel %vm1095, %v1135, 0
        %1162 = vmatprep.subr.bf16.mxu0 0
        %1163 = vmatpush1.bf16.msra.mxu0 %v1155
        %1164 = vmatprep.subr.bf16.mxu0 0
        %1165 = vmatpush1.bf16.msra.mxu0 %v1156
        %1166 = vmatprep.subr.bf16.mxu0 0
        %1167 = vmatpush1.bf16.msra.mxu0 0
        %1168 = vmatprep.subr.bf16.mxu0 0
        %1169 = vmatpush1.bf16.msra.mxu0 0
        %1170 = vmatprep.subr.bf16.mxu0 0
        %1171 = vmatpush1.bf16.msra.mxu0 0
        %1172 = vmatprep.subr.bf16.mxu0 0
        %1173 = vmatpush1.bf16.msra.mxu0 0
        %1174 = vmatprep.subr.bf16.mxu0 0
        %1175 = vmatpush1.bf16.msra.mxu0 0
        %1176 = vmatprep.subr.bf16.mxu0 0
        %1177 = vmatpush1.bf16.msra.mxu0 0
        %1178 = vmatprep.subr.bf16.mxu0 0
        %1179 = vmatpush1.bf16.msra.mxu0 0
        %1180 = vmatprep.subr.bf16.mxu0 0
        %1181 = vmatpush1.bf16.msra.mxu0 0
        %1182 = vmatprep.subr.bf16.mxu0 0
        %1183 = vmatpush1.bf16.msra.mxu0 0
        %1184 = vmatprep.subr.bf16.mxu0 0
        %1185 = vmatpush1.bf16.msra.mxu0 0
        %1186 = vmatprep.subr.bf16.mxu0 0
        %1187 = vmatpush1.bf16.msra.mxu0 0
        %1188 = vmatprep.subr.bf16.mxu0 0
        %1189 = vmatpush1.bf16.msra.mxu0 0
        %1190 = vmatprep.subr.bf16.mxu0 0
        %1191 = vmatpush1.bf16.msra.mxu0 0
        %1192 = vmatprep.subr.bf16.mxu0 0
        %1193 = vmatpush1.bf16.msra.mxu0 0
        %1194 = vmatprep.mubr.bf16.mxu0 0
        %1195 = vmatmul.mubr.bf16.gmra.mrb[0].mxu0 %v1160
        %v1196 = vpop.f32.mrb[0].mxu0
        %v1197 = vadd.f32 %v1145, %v1196
        %v1198 = vpop.f32.mrb[0].mxu0
        %v1199 = vpop.f32.mrb[0].mxu0
        %v1200 = vadd.f32 %v1145, %v1199
        %v1201 = vpop.f32.mrb[0].mxu0
        %1202 = vdwg.mxu0
        %v1203 = vld [vmem:[%s887] sm:$0xf]
        %v1204 = vld [vmem:[%s887 + $0x4] sm:$0xf]
        %v1205 = vld [vmem:[%s887 + $0x8] sm:$0xf]
        %v1206 = vld [vmem:[%s887 + $0xc] sm:$0xf]
        %v1207 = vld [vmem:[%s895] sm:$0x1]
        %1210 = vrot.lane.b32.xlu0 %v1197, 120
        %v1211 = vpop.permute.xlu0 %1210
        %1212 = vrot.lane.b32.xlu0 %v1200, 120
        %v1213 = vpop.permute.xlu0 %1212
        %1216 = vrot.lane.b32.xlu0 %v1197, 112
        %v1217 = vpop.permute.xlu0 %1216
        %1218 = vrot.lane.b32.xlu0 %v1200, 112
        %v1219 = vpop.permute.xlu0 %1218
        %1222 = vrot.lane.b32.xlu0 %v1197, 104
        %v1223 = vpop.permute.xlu0 %1222
        %1224 = vrot.lane.b32.xlu0 %v1200, 104
        %v1225 = vpop.permute.xlu0 %1224
        %v1228 = vpack.c.bf16 %v1197, %v1197
        %v1229 = vpack.c.bf16 %v1200, %v1200
        %v1230 = vpack.c.bf16 %v1211, %v1211
        %v1231 = vpack.c.bf16 %v1213, %v1213
        %v1232 = vpack.c.bf16 %v1217, %v1217
        %v1233 = vpack.c.bf16 %v1219, %v1219
        %v1234 = vpack.c.bf16 %v1223, %v1223
        %v1235 = vpack.c.bf16 %v1225, %v1225
        %1237 = vrot.lane.b32.xlu0 %v1228, 64
        %v1238 = vpop.permute.xlu0 %1237
        %vm1239 = vcmask 64512
        %v1241 = vsel %vm1239, %v1228, 0
        %v1244 = vsel %vm1239, %v1238, 0
        %1246 = vmatprep.subr.bf16.mxu0 0
        %1247 = vmatpush1.bf16.xpose.msra.mxu0 %v1244
        %1248 = vmatprep.subr.bf16.mxu0 0
        %1249 = vmatpush1.bf16.xpose.msra.mxu0 0
        %1250 = vmatprep.subr.bf16.mxu0 0
        %1251 = vmatpush1.bf16.xpose.msra.mxu0 0
        %1252 = vmatprep.subr.bf16.mxu0 0
        %1253 = vmatpush1.bf16.xpose.msra.mxu0 0
        %1254 = vmatprep.subr.bf16.mxu0 0
        %1255 = vmatpush1.bf16.xpose.msra.mxu0 0
        %1256 = vmatprep.subr.bf16.mxu0 0
        %1257 = vmatpush1.bf16.xpose.msra.mxu0 0
        %1258 = vmatprep.subr.bf16.mxu0 0
        %1259 = vmatpush1.bf16.xpose.msra.mxu0 0
        %1260 = vmatprep.subr.bf16.mxu0 0
        %1261 = vmatpush1.bf16.xpose.msra.mxu0 0
        %1262 = vmatprep.subr.bf16.mxu0 0
        %1263 = vmatpush1.bf16.xpose.msra.mxu0 0
        %1264 = vmatprep.subr.bf16.mxu0 0
        %1265 = vmatpush1.bf16.xpose.msra.mxu0 0
        %1266 = vmatprep.subr.bf16.mxu0 0
        %1267 = vmatpush1.bf16.xpose.msra.mxu0 0
        %1268 = vmatprep.subr.bf16.mxu0 0
        %1269 = vmatpush1.bf16.xpose.msra.mxu0 0
        %1270 = vmatprep.subr.bf16.mxu0 0
        %1271 = vmatpush1.bf16.xpose.msra.mxu0 0
        %1272 = vmatprep.subr.bf16.mxu0 0
        %1273 = vmatpush1.bf16.xpose.msra.mxu0 0
        %1274 = vmatprep.subr.bf16.mxu0 0
        %1275 = vmatpush1.bf16.xpose.msra.mxu0 0
        %1276 = vmatprep.subr.bf16.mxu0 0
        %1277 = vmatpush1.bf16.xpose.msra.mxu0 0
        %1278 = vmatprep.mubr.bf16.mxu0 0
        %1279 = vmatmul.mubr.bf16.gmra.mrb[0].mxu0 %v1241
        %v1280 = vpop.f32.mrb[0].mxu0
        %v1281 = vadd.f32 %v1085, %v1280
        %v1282 = vpop.f32.mrb[0].mxu0
        %v1283 = vpop.f32.mrb[0].mxu0
        %v1284 = vpop.f32.mrb[0].mxu0
        %1285 = vdwg.mxu0
        %1287 = vrot.lane.b32.xlu0 %v1229, 64
        %v1288 = vpop.permute.xlu0 %1287
        %v1290 = vsel %vm1239, %v1229, 0
        %v1293 = vsel %vm1239, %v1288, 0
        %1295 = vmatprep.subr.bf16.mxu0 0
        %1296 = vmatpush1.bf16.xpose.msra.mxu0 %v1293
        %1297 = vmatprep.subr.bf16.mxu0 0
        %1298 = vmatpush1.bf16.xpose.msra.mxu0 0
        %1299 = vmatprep.subr.bf16.mxu0 0
        %1300 = vmatpush1.bf16.xpose.msra.mxu0 0
        %1301 = vmatprep.subr.bf16.mxu0 0
        %1302 = vmatpush1.bf16.xpose.msra.mxu0 0
        %1303 = vmatprep.subr.bf16.mxu0 0
        %1304 = vmatpush1.bf16.xpose.msra.mxu0 0
        %1305 = vmatprep.subr.bf16.mxu0 0
        %1306 = vmatpush1.bf16.xpose.msra.mxu0 0
        %1307 = vmatprep.subr.bf16.mxu0 0
        %1308 = vmatpush1.bf16.xpose.msra.mxu0 0
        %1309 = vmatprep.subr.bf16.mxu0 0
        %1310 = vmatpush1.bf16.xpose.msra.mxu0 0
        %1311 = vmatprep.subr.bf16.mxu0 0
        %1312 = vmatpush1.bf16.xpose.msra.mxu0 0
        %1313 = vmatprep.subr.bf16.mxu0 0
        %1314 = vmatpush1.bf16.xpose.msra.mxu0 0
        %1315 = vmatprep.subr.bf16.mxu0 0
        %1316 = vmatpush1.bf16.xpose.msra.mxu0 0
        %1317 = vmatprep.subr.bf16.mxu0 0
        %1318 = vmatpush1.bf16.xpose.msra.mxu0 0
        %1319 = vmatprep.subr.bf16.mxu0 0
        %1320 = vmatpush1.bf16.xpose.msra.mxu0 0
        %1321 = vmatprep.subr.bf16.mxu0 0
        %1322 = vmatpush1.bf16.xpose.msra.mxu0 0
        %1323 = vmatprep.subr.bf16.mxu0 0
        %1324 = vmatpush1.bf16.xpose.msra.mxu0 0
        %1325 = vmatprep.subr.bf16.mxu0 0
        %1326 = vmatpush1.bf16.xpose.msra.mxu0 0
        %1327 = vmatprep.mubr.bf16.mxu0 0
        %1328 = vmatmul.mubr.bf16.gmra.mrb[0].mxu0 %v1290
        %v1329 = vpop.f32.mrb[0].mxu0
        %v1330 = vadd.f32 %v1086, %v1329
        %v1331 = vpop.f32.mrb[0].mxu0
        %v1332 = vpop.f32.mrb[0].mxu0
        %v1333 = vpop.f32.mrb[0].mxu0
        %1334 = vdwg.mxu0
        %1336 = vrot.lane.b32.xlu0 %v1230, 64
        %v1337 = vpop.permute.xlu0 %1336
        %v1339 = vsel %vm1239, %v1230, 0
        %v1342 = vsel %vm1239, %v1337, 0
        %1344 = vmatprep.subr.bf16.mxu0 0
        %1345 = vmatpush1.bf16.xpose.msra.mxu0 %v1342
        %1346 = vmatprep.subr.bf16.mxu0 0
        %1347 = vmatpush1.bf16.xpose.msra.mxu0 0
        %1348 = vmatprep.subr.bf16.mxu0 0
        %1349 = vmatpush1.bf16.xpose.msra.mxu0 0
        %1350 = vmatprep.subr.bf16.mxu0 0
        %1351 = vmatpush1.bf16.xpose.msra.mxu0 0
        %1352 = vmatprep.subr.bf16.mxu0 0
        %1353 = vmatpush1.bf16.xpose.msra.mxu0 0
        %1354 = vmatprep.subr.bf16.mxu0 0
        %1355 = vmatpush1.bf16.xpose.msra.mxu0 0
        %1356 = vmatprep.subr.bf16.mxu0 0
        %1357 = vmatpush1.bf16.xpose.msra.mxu0 0
        %1358 = vmatprep.subr.bf16.mxu0 0
        %1359 = vmatpush1.bf16.xpose.msra.mxu0 0
        %1360 = vmatprep.subr.bf16.mxu0 0
        %1361 = vmatpush1.bf16.xpose.msra.mxu0 0
        %1362 = vmatprep.subr.bf16.mxu0 0
        %1363 = vmatpush1.bf16.xpose.msra.mxu0 0
        %1364 = vmatprep.subr.bf16.mxu0 0
        %1365 = vmatpush1.bf16.xpose.msra.mxu0 0
        %1366 = vmatprep.subr.bf16.mxu0 0
        %1367 = vmatpush1.bf16.xpose.msra.mxu0 0
        %1368 = vmatprep.subr.bf16.mxu0 0
        %1369 = vmatpush1.bf16.xpose.msra.mxu0 0
        %1370 = vmatprep.subr.bf16.mxu0 0
        %1371 = vmatpush1.bf16.xpose.msra.mxu0 0
        %1372 = vmatprep.subr.bf16.mxu0 0
        %1373 = vmatpush1.bf16.xpose.msra.mxu0 0
        %1374 = vmatprep.subr.bf16.mxu0 0
        %1375 = vmatpush1.bf16.xpose.msra.mxu0 0
        %1376 = vmatprep.mubr.bf16.mxu0 0
        %1377 = vmatmul.mubr.bf16.gmra.mrb[0].mxu0 %v1339
        %v1378 = vpop.f32.mrb[0].mxu0
        %v1379 = vadd.f32 %v1085, %v1378
        %v1380 = vpop.f32.mrb[0].mxu0
        %v1381 = vpop.f32.mrb[0].mxu0
        %v1382 = vpop.f32.mrb[0].mxu0
        %1383 = vdwg.mxu0
        %1385 = vrot.lane.b32.xlu0 %v1231, 64
        %v1386 = vpop.permute.xlu0 %1385
        %v1388 = vsel %vm1239, %v1231, 0
        %v1391 = vsel %vm1239, %v1386, 0
        %1393 = vmatprep.subr.bf16.mxu0 0
        %1394 = vmatpush1.bf16.xpose.msra.mxu0 %v1391
        %1395 = vmatprep.subr.bf16.mxu0 0
        %1396 = vmatpush1.bf16.xpose.msra.mxu0 0
        %1397 = vmatprep.subr.bf16.mxu0 0
        %1398 = vmatpush1.bf16.xpose.msra.mxu0 0
        %1399 = vmatprep.subr.bf16.mxu0 0
        %1400 = vmatpush1.bf16.xpose.msra.mxu0 0
        %1401 = vmatprep.subr.bf16.mxu0 0
        %1402 = vmatpush1.bf16.xpose.msra.mxu0 0
        %1403 = vmatprep.subr.bf16.mxu0 0
        %1404 = vmatpush1.bf16.xpose.msra.mxu0 0
        %1405 = vmatprep.subr.bf16.mxu0 0
        %1406 = vmatpush1.bf16.xpose.msra.mxu0 0
        %1407 = vmatprep.subr.bf16.mxu0 0
        %1408 = vmatpush1.bf16.xpose.msra.mxu0 0
        %1409 = vmatprep.subr.bf16.mxu0 0
        %1410 = vmatpush1.bf16.xpose.msra.mxu0 0
        %1411 = vmatprep.subr.bf16.mxu0 0
        %1412 = vmatpush1.bf16.xpose.msra.mxu0 0
        %1413 = vmatprep.subr.bf16.mxu0 0
        %1414 = vmatpush1.bf16.xpose.msra.mxu0 0
        %1415 = vmatprep.subr.bf16.mxu0 0
        %1416 = vmatpush1.bf16.xpose.msra.mxu0 0
        %1417 = vmatprep.subr.bf16.mxu0 0
        %1418 = vmatpush1.bf16.xpose.msra.mxu0 0
        %1419 = vmatprep.subr.bf16.mxu0 0
        %1420 = vmatpush1.bf16.xpose.msra.mxu0 0
        %1421 = vmatprep.subr.bf16.mxu0 0
        %1422 = vmatpush1.bf16.xpose.msra.mxu0 0
        %1423 = vmatprep.subr.bf16.mxu0 0
        %1424 = vmatpush1.bf16.xpose.msra.mxu0 0
        %1425 = vmatprep.mubr.bf16.mxu0 0
        %1426 = vmatmul.mubr.bf16.gmra.mrb[0].mxu0 %v1388
        %v1427 = vpop.f32.mrb[0].mxu0
        %v1428 = vadd.f32 %v1086, %v1427
        %v1429 = vpop.f32.mrb[0].mxu0
        %v1430 = vpop.f32.mrb[0].mxu0
        %v1431 = vpop.f32.mrb[0].mxu0
        %1432 = vdwg.mxu0
        %1434 = vrot.lane.b32.xlu0 %v1232, 64
        %v1435 = vpop.permute.xlu0 %1434
        %v1437 = vsel %vm1239, %v1232, 0
        %v1440 = vsel %vm1239, %v1435, 0
        %1442 = vmatprep.subr.bf16.mxu0 0
        %1443 = vmatpush1.bf16.xpose.msra.mxu0 %v1440
        %1444 = vmatprep.subr.bf16.mxu0 0
        %1445 = vmatpush1.bf16.xpose.msra.mxu0 0
        %1446 = vmatprep.subr.bf16.mxu0 0
        %1447 = vmatpush1.bf16.xpose.msra.mxu0 0
        %1448 = vmatprep.subr.bf16.mxu0 0
        %1449 = vmatpush1.bf16.xpose.msra.mxu0 0
        %1450 = vmatprep.subr.bf16.mxu0 0
        %1451 = vmatpush1.bf16.xpose.msra.mxu0 0
        %1452 = vmatprep.subr.bf16.mxu0 0
        %1453 = vmatpush1.bf16.xpose.msra.mxu0 0
        %1454 = vmatprep.subr.bf16.mxu0 0
        %1455 = vmatpush1.bf16.xpose.msra.mxu0 0
        %1456 = vmatprep.subr.bf16.mxu0 0
        %1457 = vmatpush1.bf16.xpose.msra.mxu0 0
        %1458 = vmatprep.subr.bf16.mxu0 0
        %1459 = vmatpush1.bf16.xpose.msra.mxu0 0
        %1460 = vmatprep.subr.bf16.mxu0 0
        %1461 = vmatpush1.bf16.xpose.msra.mxu0 0
        %1462 = vmatprep.subr.bf16.mxu0 0
        %1463 = vmatpush1.bf16.xpose.msra.mxu0 0
        %1464 = vmatprep.subr.bf16.mxu0 0
        %1465 = vmatpush1.bf16.xpose.msra.mxu0 0
        %1466 = vmatprep.subr.bf16.mxu0 0
        %1467 = vmatpush1.bf16.xpose.msra.mxu0 0
        %1468 = vmatprep.subr.bf16.mxu0 0
        %1469 = vmatpush1.bf16.xpose.msra.mxu0 0
        %1470 = vmatprep.subr.bf16.mxu0 0
        %1471 = vmatpush1.bf16.xpose.msra.mxu0 0
        %1472 = vmatprep.subr.bf16.mxu0 0
        %1473 = vmatpush1.bf16.xpose.msra.mxu0 0
        %1474 = vmatprep.mubr.bf16.mxu0 0
        %1475 = vmatmul.mubr.bf16.gmra.mrb[0].mxu0 %v1437
        %v1476 = vpop.f32.mrb[0].mxu0
        %v1477 = vadd.f32 %v1085, %v1476
        %v1478 = vpop.f32.mrb[0].mxu0
        %v1479 = vpop.f32.mrb[0].mxu0
        %v1480 = vpop.f32.mrb[0].mxu0
        %1481 = vdwg.mxu0
        %1483 = vrot.lane.b32.xlu0 %v1233, 64
        %v1484 = vpop.permute.xlu0 %1483
        %v1486 = vsel %vm1239, %v1233, 0
        %v1489 = vsel %vm1239, %v1484, 0
        %1491 = vmatprep.subr.bf16.mxu0 0
        %1492 = vmatpush1.bf16.xpose.msra.mxu0 %v1489
        %1493 = vmatprep.subr.bf16.mxu0 0
        %1494 = vmatpush1.bf16.xpose.msra.mxu0 0
        %1495 = vmatprep.subr.bf16.mxu0 0
        %1496 = vmatpush1.bf16.xpose.msra.mxu0 0
        %1497 = vmatprep.subr.bf16.mxu0 0
        %1498 = vmatpush1.bf16.xpose.msra.mxu0 0
        %1499 = vmatprep.subr.bf16.mxu0 0
        %1500 = vmatpush1.bf16.xpose.msra.mxu0 0
        %1501 = vmatprep.subr.bf16.mxu0 0
        %1502 = vmatpush1.bf16.xpose.msra.mxu0 0
        %1503 = vmatprep.subr.bf16.mxu0 0
        %1504 = vmatpush1.bf16.xpose.msra.mxu0 0
        %1505 = vmatprep.subr.bf16.mxu0 0
        %1506 = vmatpush1.bf16.xpose.msra.mxu0 0
        %1507 = vmatprep.subr.bf16.mxu0 0
        %1508 = vmatpush1.bf16.xpose.msra.mxu0 0
        %1509 = vmatprep.subr.bf16.mxu0 0
        %1510 = vmatpush1.bf16.xpose.msra.mxu0 0
        %1511 = vmatprep.subr.bf16.mxu0 0
        %1512 = vmatpush1.bf16.xpose.msra.mxu0 0
        %1513 = vmatprep.subr.bf16.mxu0 0
        %1514 = vmatpush1.bf16.xpose.msra.mxu0 0
        %1515 = vmatprep.subr.bf16.mxu0 0
        %1516 = vmatpush1.bf16.xpose.msra.mxu0 0
        %1517 = vmatprep.subr.bf16.mxu0 0
        %1518 = vmatpush1.bf16.xpose.msra.mxu0 0
        %1519 = vmatprep.subr.bf16.mxu0 0
        %1520 = vmatpush1.bf16.xpose.msra.mxu0 0
        %1521 = vmatprep.subr.bf16.mxu0 0
        %1522 = vmatpush1.bf16.xpose.msra.mxu0 0
        %1523 = vmatprep.mubr.bf16.mxu0 0
        %1524 = vmatmul.mubr.bf16.gmra.mrb[0].mxu0 %v1486
        %v1525 = vpop.f32.mrb[0].mxu0
        %v1526 = vadd.f32 %v1086, %v1525
        %v1527 = vpop.f32.mrb[0].mxu0
        %v1528 = vpop.f32.mrb[0].mxu0
        %v1529 = vpop.f32.mrb[0].mxu0
        %1530 = vdwg.mxu0
        %1532 = vrot.lane.b32.xlu0 %v1234, 64
        %v1533 = vpop.permute.xlu0 %1532
        %v1535 = vsel %vm1239, %v1234, 0
        %v1538 = vsel %vm1239, %v1533, 0
        %1540 = vmatprep.subr.bf16.mxu0 0
        %1541 = vmatpush1.bf16.xpose.msra.mxu0 %v1538
        %1542 = vmatprep.subr.bf16.mxu0 0
        %1543 = vmatpush1.bf16.xpose.msra.mxu0 0
        %1544 = vmatprep.subr.bf16.mxu0 0
        %1545 = vmatpush1.bf16.xpose.msra.mxu0 0
        %1546 = vmatprep.subr.bf16.mxu0 0
        %1547 = vmatpush1.bf16.xpose.msra.mxu0 0
        %1548 = vmatprep.subr.bf16.mxu0 0
        %1549 = vmatpush1.bf16.xpose.msra.mxu0 0
        %1550 = vmatprep.subr.bf16.mxu0 0
        %1551 = vmatpush1.bf16.xpose.msra.mxu0 0
        %1552 = vmatprep.subr.bf16.mxu0 0
        %1553 = vmatpush1.bf16.xpose.msra.mxu0 0
        %1554 = vmatprep.subr.bf16.mxu0 0
        %1555 = vmatpush1.bf16.xpose.msra.mxu0 0
        %1556 = vmatprep.subr.bf16.mxu0 0
        %1557 = vmatpush1.bf16.xpose.msra.mxu0 0
        %1558 = vmatprep.subr.bf16.mxu0 0
        %1559 = vmatpush1.bf16.xpose.msra.mxu0 0
        %1560 = vmatprep.subr.bf16.mxu0 0
        %1561 = vmatpush1.bf16.xpose.msra.mxu0 0
        %1562 = vmatprep.subr.bf16.mxu0 0
        %1563 = vmatpush1.bf16.xpose.msra.mxu0 0
        %1564 = vmatprep.subr.bf16.mxu0 0
        %1565 = vmatpush1.bf16.xpose.msra.mxu0 0
        %1566 = vmatprep.subr.bf16.mxu0 0
        %1567 = vmatpush1.bf16.xpose.msra.mxu0 0
        %1568 = vmatprep.subr.bf16.mxu0 0
        %1569 = vmatpush1.bf16.xpose.msra.mxu0 0
        %1570 = vmatprep.subr.bf16.mxu0 0
        %1571 = vmatpush1.bf16.xpose.msra.mxu0 0
        %1572 = vmatprep.mubr.bf16.mxu0 0
        %1573 = vmatmul.mubr.bf16.gmra.mrb[0].mxu0 %v1535
        %v1574 = vpop.f32.mrb[0].mxu0
        %v1575 = vadd.f32 %v1085, %v1574
        %v1576 = vpop.f32.mrb[0].mxu0
        %v1577 = vpop.f32.mrb[0].mxu0
        %v1578 = vpop.f32.mrb[0].mxu0
        %1579 = vdwg.mxu0
        %1581 = vrot.lane.b32.xlu0 %v1235, 64
        %v1582 = vpop.permute.xlu0 %1581
        %v1584 = vsel %vm1239, %v1235, 0
        %v1587 = vsel %vm1239, %v1582, 0
        %1589 = vmatprep.subr.bf16.mxu0 0
        %1590 = vmatpush1.bf16.xpose.msra.mxu0 %v1587
        %1591 = vmatprep.subr.bf16.mxu0 0
        %1592 = vmatpush1.bf16.xpose.msra.mxu0 0
        %1593 = vmatprep.subr.bf16.mxu0 0
        %1594 = vmatpush1.bf16.xpose.msra.mxu0 0
        %1595 = vmatprep.subr.bf16.mxu0 0
        %1596 = vmatpush1.bf16.xpose.msra.mxu0 0
        %1597 = vmatprep.subr.bf16.mxu0 0
        %1598 = vmatpush1.bf16.xpose.msra.mxu0 0
        %1599 = vmatprep.subr.bf16.mxu0 0
        %1600 = vmatpush1.bf16.xpose.msra.mxu0 0
        %1601 = vmatprep.subr.bf16.mxu0 0
        %1602 = vmatpush1.bf16.xpose.msra.mxu0 0
        %1603 = vmatprep.subr.bf16.mxu0 0
        %1604 = vmatpush1.bf16.xpose.msra.mxu0 0
        %1605 = vmatprep.subr.bf16.mxu0 0
        %1606 = vmatpush1.bf16.xpose.msra.mxu0 0
        %1607 = vmatprep.subr.bf16.mxu0 0
        %1608 = vmatpush1.bf16.xpose.msra.mxu0 0
        %1609 = vmatprep.subr.bf16.mxu0 0
        %1610 = vmatpush1.bf16.xpose.msra.mxu0 0
        %1611 = vmatprep.subr.bf16.mxu0 0
        %1612 = vmatpush1.bf16.xpose.msra.mxu0 0
        %1613 = vmatprep.subr.bf16.mxu0 0
        %1614 = vmatpush1.bf16.xpose.msra.mxu0 0
        %1615 = vmatprep.subr.bf16.mxu0 0
        %1616 = vmatpush1.bf16.xpose.msra.mxu0 0
        %1617 = vmatprep.subr.bf16.mxu0 0
        %1618 = vmatpush1.bf16.xpose.msra.mxu0 0
        %1619 = vmatprep.subr.bf16.mxu0 0
        %1620 = vmatpush1.bf16.xpose.msra.mxu0 0
        %1621 = vmatprep.mubr.bf16.mxu0 0
        %1622 = vmatmul.mubr.bf16.gmra.mrb[0].mxu0 %v1584
        %v1623 = vpop.f32.mrb[0].mxu0
        %v1624 = vadd.f32 %v1086, %v1623
        %v1625 = vpop.f32.mrb[0].mxu0
        %v1626 = vpop.f32.mrb[0].mxu0
        %v1627 = vpop.f32.mrb[0].mxu0
        %1628 = vdwg.mxu0
        %v1629 = vsel %vm1239, %v1281, -inf
        %1630 = vmax.xlane.f32.xlu0 %v1629
        %v1631 = vpop.xlane.xlu0 %1630
        %v1632 = vsel %vm1239, %v1330, -inf
        %1633 = vmax.xlane.f32.xlu0 %v1632
        %v1634 = vpop.xlane.xlu0 %1633
        %v1635 = vsel %vm1239, %v1379, -inf
        %1636 = vmax.xlane.f32.xlu0 %v1635
        %v1637 = vpop.xlane.xlu0 %1636
        %v1638 = vsel %vm1239, %v1428, -inf
        %1639 = vmax.xlane.f32.xlu0 %v1638
        %v1640 = vpop.xlane.xlu0 %1639
        %v1641 = vsel %vm1239, %v1477, -inf
        %1642 = vmax.xlane.f32.xlu0 %v1641
        %v1643 = vpop.xlane.xlu0 %1642
        %v1644 = vsel %vm1239, %v1526, -inf
        %1645 = vmax.xlane.f32.xlu0 %v1644
        %v1646 = vpop.xlane.xlu0 %1645
        %v1647 = vsel %vm1239, %v1575, -inf
        %1648 = vmax.xlane.f32.xlu0 %v1647
        %v1649 = vpop.xlane.xlu0 %1648
        %v1650 = vsel %vm1239, %v1624, -inf
        %1651 = vmax.xlane.f32.xlu0 %v1650
        %v1652 = vpop.xlane.xlu0 %1651
        %v1653 = vsub.f32 %v1281, %v1631
        %v1654 = vsub.f32 %v1330, %v1634
        %v1655 = vsub.f32 %v1379, %v1637
        %v1656 = vsub.f32 %v1428, %v1640
        %v1657 = vsub.f32 %v1477, %v1643
        %v1658 = vsub.f32 %v1526, %v1646
        %v1659 = vsub.f32 %v1575, %v1649
        %v1660 = vsub.f32 %v1624, %v1652
        %v1661 = vmul.f32 %v1653, 1.442695
        %v1662 = vpow.pop %v1661
        %v1663 = vmul.f32 %v1654, 1.442695
        %v1664 = vpow.pop %v1663
        %v1665 = vmul.f32 %v1655, 1.442695
        %v1666 = vpow.pop %v1665
        %v1667 = vmul.f32 %v1656, 1.442695
        %v1668 = vpow.pop %v1667
        %v1669 = vmul.f32 %v1657, 1.442695
        %v1670 = vpow.pop %v1669
        %v1671 = vmul.f32 %v1658, 1.442695
        %v1672 = vpow.pop %v1671
        %v1673 = vmul.f32 %v1659, 1.442695
        %v1674 = vpow.pop %v1673
        %v1675 = vmul.f32 %v1660, 1.442695
        %v1676 = vpow.pop %v1675
        %v1677 = vsel %vm1239, %v1662, 0.0
        %1678 = vadd.xlane.f32.xlu0 %v1677
        %v1679 = vpop.xlane.xlu0 %1678
        %v1680 = vsel %vm1239, %v1664, 0.0
        %1681 = vadd.xlane.f32.xlu0 %v1680
        %v1682 = vpop.xlane.xlu0 %1681
        %v1683 = vsel %vm1239, %v1666, 0.0
        %1684 = vadd.xlane.f32.xlu0 %v1683
        %v1685 = vpop.xlane.xlu0 %1684
        %v1686 = vsel %vm1239, %v1668, 0.0
        %1687 = vadd.xlane.f32.xlu0 %v1686
        %v1688 = vpop.xlane.xlu0 %1687
        %v1689 = vsel %vm1239, %v1670, 0.0
        %1690 = vadd.xlane.f32.xlu0 %v1689
        %v1691 = vpop.xlane.xlu0 %1690
        %v1692 = vsel %vm1239, %v1672, 0.0
        %1693 = vadd.xlane.f32.xlu0 %v1692
        %v1694 = vpop.xlane.xlu0 %1693
        %v1695 = vsel %vm1239, %v1674, 0.0
        %1696 = vadd.xlane.f32.xlu0 %v1695
        %v1697 = vpop.xlane.xlu0 %1696
        %v1698 = vsel %vm1239, %v1676, 0.0
        %1699 = vadd.xlane.f32.xlu0 %v1698
        %v1700 = vpop.xlane.xlu0 %1699
        %v1701 = vrcp.pop %v1679
        %v1702 = vrcp.pop %v1682
        %v1703 = vrcp.pop %v1685
        %v1704 = vrcp.pop %v1688
        %v1705 = vrcp.pop %v1691
        %v1706 = vrcp.pop %v1694
        %v1707 = vrcp.pop %v1697
        %v1708 = vrcp.pop %v1700
        %v1709 = vmul.f32 %v1662, %v1701
        %v1710 = vmul.f32 %v1664, %v1702
        %v1711 = vmul.f32 %v1666, %v1703
        %v1712 = vmul.f32 %v1668, %v1704
        %v1713 = vmul.f32 %v1670, %v1705
        %v1714 = vmul.f32 %v1672, %v1706
        %v1715 = vmul.f32 %v1674, %v1707
        %v1716 = vmul.f32 %v1676, %v1708
        %v1717 = vpack.c.bf16 %v1709, %v1709
        %v1718 = vpack.c.bf16 %v1710, %v1710
        %v1719 = vpack.c.bf16 %v1711, %v1711
        %v1720 = vpack.c.bf16 %v1712, %v1712
        %v1721 = vpack.c.bf16 %v1713, %v1713
        %v1722 = vpack.c.bf16 %v1714, %v1714
        %v1723 = vpack.c.bf16 %v1715, %v1715
        %v1724 = vpack.c.bf16 %v1716, %v1716
        %1725 = vrot.lane.b32.xlu0 %v1228, 32
        %v1726 = vpop.permute.xlu0 %1725
        %v1728 = vsel %vm1239, %v1717, 0
        %vm1730 = vcmask 1043456
        %v1732 = vsel %vm1730, %v1726, 0
        %1734 = vmatprep.subr.bf16.mxu0 0
        %1735 = vmatpush1.bf16.msra.mxu0 %v1732
        %1736 = vmatprep.subr.bf16.mxu0 0
        %1737 = vmatpush1.bf16.msra.mxu0 0
        %1738 = vmatprep.subr.bf16.mxu0 0
        %1739 = vmatpush1.bf16.msra.mxu0 0
        %1740 = vmatprep.subr.bf16.mxu0 0
        %1741 = vmatpush1.bf16.msra.mxu0 0
        %1742 = vmatprep.subr.bf16.mxu0 0
        %1743 = vmatpush1.bf16.msra.mxu0 0
        %1744 = vmatprep.subr.bf16.mxu0 0
        %1745 = vmatpush1.bf16.msra.mxu0 0
        %1746 = vmatprep.subr.bf16.mxu0 0
        %1747 = vmatpush1.bf16.msra.mxu0 0
        %1748 = vmatprep.subr.bf16.mxu0 0
        %1749 = vmatpush1.bf16.msra.mxu0 0
        %1750 = vmatprep.subr.bf16.mxu0 0
        %1751 = vmatpush1.bf16.msra.mxu0 0
        %1752 = vmatprep.subr.bf16.mxu0 0
        %1753 = vmatpush1.bf16.msra.mxu0 0
        %1754 = vmatprep.subr.bf16.mxu0 0
        %1755 = vmatpush1.bf16.msra.mxu0 0
        %1756 = vmatprep.subr.bf16.mxu0 0
        %1757 = vmatpush1.bf16.msra.mxu0 0
        %1758 = vmatprep.subr.bf16.mxu0 0
        %1759 = vmatpush1.bf16.msra.mxu0 0
        %1760 = vmatprep.subr.bf16.mxu0 0
        %1761 = vmatpush1.bf16.msra.mxu0 0
        %1762 = vmatprep.subr.bf16.mxu0 0
        %1763 = vmatpush1.bf16.msra.mxu0 0
        %1764 = vmatprep.subr.bf16.mxu0 0
        %1765 = vmatpush1.bf16.msra.mxu0 0
        %1766 = vmatprep.mubr.bf16.mxu0 0
        %1767 = vmatmul.mubr.bf16.gmra.mrb[0].mxu0 %v1728
        %v1768 = vpop.f32.mrb[0].mxu0
        %v1769 = vadd.f32 0.0, %v1768
        %v1770 = vpop.f32.mrb[0].mxu0
        %v1771 = vpop.f32.mrb[0].mxu0
        %v1772 = vpop.f32.mrb[0].mxu0
        %1773 = vdwg.mxu0
        %1774 = vrot.lane.b32.xlu0 %v1229, 32
        %v1775 = vpop.permute.xlu0 %1774
        %v1777 = vsel %vm1239, %v1718, 0
        %v1780 = vsel %vm1730, %v1775, 0
        %1782 = vmatprep.subr.bf16.mxu0 0
        %1783 = vmatpush1.bf16.msra.mxu0 %v1780
        %1784 = vmatprep.subr.bf16.mxu0 0
        %1785 = vmatpush1.bf16.msra.mxu0 0
        %1786 = vmatprep.subr.bf16.mxu0 0
        %1787 = vmatpush1.bf16.msra.mxu0 0
        %1788 = vmatprep.subr.bf16.mxu0 0
        %1789 = vmatpush1.bf16.msra.mxu0 0
        %1790 = vmatprep.subr.bf16.mxu0 0
        %1791 = vmatpush1.bf16.msra.mxu0 0
        %1792 = vmatprep.subr.bf16.mxu0 0
        %1793 = vmatpush1.bf16.msra.mxu0 0
        %1794 = vmatprep.subr.bf16.mxu0 0
        %1795 = vmatpush1.bf16.msra.mxu0 0
        %1796 = vmatprep.subr.bf16.mxu0 0
        %1797 = vmatpush1.bf16.msra.mxu0 0
        %1798 = vmatprep.subr.bf16.mxu0 0
        %1799 = vmatpush1.bf16.msra.mxu0 0
        %1800 = vmatprep.subr.bf16.mxu0 0
        %1801 = vmatpush1.bf16.msra.mxu0 0
        %1802 = vmatprep.subr.bf16.mxu0 0
        %1803 = vmatpush1.bf16.msra.mxu0 0
        %1804 = vmatprep.subr.bf16.mxu0 0
        %1805 = vmatpush1.bf16.msra.mxu0 0
        %1806 = vmatprep.subr.bf16.mxu0 0
        %1807 = vmatpush1.bf16.msra.mxu0 0
        %1808 = vmatprep.subr.bf16.mxu0 0
        %1809 = vmatpush1.bf16.msra.mxu0 0
        %1810 = vmatprep.subr.bf16.mxu0 0
        %1811 = vmatpush1.bf16.msra.mxu0 0
        %1812 = vmatprep.subr.bf16.mxu0 0
        %1813 = vmatpush1.bf16.msra.mxu0 0
        %1814 = vmatprep.mubr.bf16.mxu0 0
        %1815 = vmatmul.mubr.bf16.gmra.mrb[0].mxu0 %v1777
        %v1816 = vpop.f32.mrb[0].mxu0
        %v1817 = vadd.f32 0.0, %v1816
        %v1818 = vpop.f32.mrb[0].mxu0
        %v1819 = vpop.f32.mrb[0].mxu0
        %v1820 = vpop.f32.mrb[0].mxu0
        %1821 = vdwg.mxu0
        %1822 = vrot.lane.b32.xlu0 %v1230, 32
        %v1823 = vpop.permute.xlu0 %1822
        %v1825 = vsel %vm1239, %v1719, 0
        %v1828 = vsel %vm1730, %v1823, 0
        %1830 = vmatprep.subr.bf16.mxu0 0
        %1831 = vmatpush1.bf16.msra.mxu0 %v1828
        %1832 = vmatprep.subr.bf16.mxu0 0
        %1833 = vmatpush1.bf16.msra.mxu0 0
        %1834 = vmatprep.subr.bf16.mxu0 0
        %1835 = vmatpush1.bf16.msra.mxu0 0
        %1836 = vmatprep.subr.bf16.mxu0 0
        %1837 = vmatpush1.bf16.msra.mxu0 0
        %1838 = vmatprep.subr.bf16.mxu0 0
        %1839 = vmatpush1.bf16.msra.mxu0 0
        %1840 = vmatprep.subr.bf16.mxu0 0
        %1841 = vmatpush1.bf16.msra.mxu0 0
        %1842 = vmatprep.subr.bf16.mxu0 0
        %1843 = vmatpush1.bf16.msra.mxu0 0
        %1844 = vmatprep.subr.bf16.mxu0 0
        %1845 = vmatpush1.bf16.msra.mxu0 0
        %1846 = vmatprep.subr.bf16.mxu0 0
        %1847 = vmatpush1.bf16.msra.mxu0 0
        %1848 = vmatprep.subr.bf16.mxu0 0
        %1849 = vmatpush1.bf16.msra.mxu0 0
        %1850 = vmatprep.subr.bf16.mxu0 0
        %1851 = vmatpush1.bf16.msra.mxu0 0
        %1852 = vmatprep.subr.bf16.mxu0 0
        %1853 = vmatpush1.bf16.msra.mxu0 0
        %1854 = vmatprep.subr.bf16.mxu0 0
        %1855 = vmatpush1.bf16.msra.mxu0 0
        %1856 = vmatprep.subr.bf16.mxu0 0
        %1857 = vmatpush1.bf16.msra.mxu0 0
        %1858 = vmatprep.subr.bf16.mxu0 0
        %1859 = vmatpush1.bf16.msra.mxu0 0
        %1860 = vmatprep.subr.bf16.mxu0 0
        %1861 = vmatpush1.bf16.msra.mxu0 0
        %1862 = vmatprep.mubr.bf16.mxu0 0
        %1863 = vmatmul.mubr.bf16.gmra.mrb[0].mxu0 %v1825
        %v1864 = vpop.f32.mrb[0].mxu0
        %v1865 = vadd.f32 0.0, %v1864
        %v1866 = vpop.f32.mrb[0].mxu0
        %v1867 = vpop.f32.mrb[0].mxu0
        %v1868 = vpop.f32.mrb[0].mxu0
        %1869 = vdwg.mxu0
        %1870 = vrot.lane.b32.xlu0 %v1231, 32
        %v1871 = vpop.permute.xlu0 %1870
        %v1873 = vsel %vm1239, %v1720, 0
        %v1876 = vsel %vm1730, %v1871, 0
        %1878 = vmatprep.subr.bf16.mxu0 0
        %1879 = vmatpush1.bf16.msra.mxu0 %v1876
        %1880 = vmatprep.subr.bf16.mxu0 0
        %1881 = vmatpush1.bf16.msra.mxu0 0
        %1882 = vmatprep.subr.bf16.mxu0 0
        %1883 = vmatpush1.bf16.msra.mxu0 0
        %1884 = vmatprep.subr.bf16.mxu0 0
        %1885 = vmatpush1.bf16.msra.mxu0 0
        %1886 = vmatprep.subr.bf16.mxu0 0
        %1887 = vmatpush1.bf16.msra.mxu0 0
        %1888 = vmatprep.subr.bf16.mxu0 0
        %1889 = vmatpush1.bf16.msra.mxu0 0
        %1890 = vmatprep.subr.bf16.mxu0 0
        %1891 = vmatpush1.bf16.msra.mxu0 0
        %1892 = vmatprep.subr.bf16.mxu0 0
        %1893 = vmatpush1.bf16.msra.mxu0 0
        %1894 = vmatprep.subr.bf16.mxu0 0
        %1895 = vmatpush1.bf16.msra.mxu0 0
        %1896 = vmatprep.subr.bf16.mxu0 0
        %1897 = vmatpush1.bf16.msra.mxu0 0
        %1898 = vmatprep.subr.bf16.mxu0 0
        %1899 = vmatpush1.bf16.msra.mxu0 0
        %1900 = vmatprep.subr.bf16.mxu0 0
        %1901 = vmatpush1.bf16.msra.mxu0 0
        %1902 = vmatprep.subr.bf16.mxu0 0
        %1903 = vmatpush1.bf16.msra.mxu0 0
        %1904 = vmatprep.subr.bf16.mxu0 0
        %1905 = vmatpush1.bf16.msra.mxu0 0
        %1906 = vmatprep.subr.bf16.mxu0 0
        %1907 = vmatpush1.bf16.msra.mxu0 0
        %1908 = vmatprep.subr.bf16.mxu0 0
        %1909 = vmatpush1.bf16.msra.mxu0 0
        %1910 = vmatprep.mubr.bf16.mxu0 0
        %1911 = vmatmul.mubr.bf16.gmra.mrb[0].mxu0 %v1873
        %v1912 = vpop.f32.mrb[0].mxu0
        %v1913 = vadd.f32 0.0, %v1912
        %v1914 = vpop.f32.mrb[0].mxu0
        %v1915 = vpop.f32.mrb[0].mxu0
        %v1916 = vpop.f32.mrb[0].mxu0
        %1917 = vdwg.mxu0
        %1918 = vrot.lane.b32.xlu0 %v1232, 32
        %v1919 = vpop.permute.xlu0 %1918
        %v1921 = vsel %vm1239, %v1721, 0
        %v1924 = vsel %vm1730, %v1919, 0
        %1926 = vmatprep.subr.bf16.mxu0 0
        %1927 = vmatpush1.bf16.msra.mxu0 %v1924
        %1928 = vmatprep.subr.bf16.mxu0 0
        %1929 = vmatpush1.bf16.msra.mxu0 0
        %1930 = vmatprep.subr.bf16.mxu0 0
        %1931 = vmatpush1.bf16.msra.mxu0 0
        %1932 = vmatprep.subr.bf16.mxu0 0
        %1933 = vmatpush1.bf16.msra.mxu0 0
        %1934 = vmatprep.subr.bf16.mxu0 0
        %1935 = vmatpush1.bf16.msra.mxu0 0
        %1936 = vmatprep.subr.bf16.mxu0 0
        %1937 = vmatpush1.bf16.msra.mxu0 0
        %1938 = vmatprep.subr.bf16.mxu0 0
        %1939 = vmatpush1.bf16.msra.mxu0 0
        %1940 = vmatprep.subr.bf16.mxu0 0
        %1941 = vmatpush1.bf16.msra.mxu0 0
        %1942 = vmatprep.subr.bf16.mxu0 0
        %1943 = vmatpush1.bf16.msra.mxu0 0
        %1944 = vmatprep.subr.bf16.mxu0 0
        %1945 = vmatpush1.bf16.msra.mxu0 0
        %1946 = vmatprep.subr.bf16.mxu0 0
        %1947 = vmatpush1.bf16.msra.mxu0 0
        %1948 = vmatprep.subr.bf16.mxu0 0
        %1949 = vmatpush1.bf16.msra.mxu0 0
        %1950 = vmatprep.subr.bf16.mxu0 0
        %1951 = vmatpush1.bf16.msra.mxu0 0
        %1952 = vmatprep.subr.bf16.mxu0 0
        %1953 = vmatpush1.bf16.msra.mxu0 0
        %1954 = vmatprep.subr.bf16.mxu0 0
        %1955 = vmatpush1.bf16.msra.mxu0 0
        %1956 = vmatprep.subr.bf16.mxu0 0
        %1957 = vmatpush1.bf16.msra.mxu0 0
        %1958 = vmatprep.mubr.bf16.mxu0 0
        %1959 = vmatmul.mubr.bf16.gmra.mrb[0].mxu0 %v1921
        %v1960 = vpop.f32.mrb[0].mxu0
        %v1961 = vadd.f32 0.0, %v1960
        %v1962 = vpop.f32.mrb[0].mxu0
        %v1963 = vpop.f32.mrb[0].mxu0
        %v1964 = vpop.f32.mrb[0].mxu0
        %1965 = vdwg.mxu0
        %1966 = vrot.lane.b32.xlu0 %v1233, 32
        %v1967 = vpop.permute.xlu0 %1966
        %v1969 = vsel %vm1239, %v1722, 0
        %v1972 = vsel %vm1730, %v1967, 0
        %1974 = vmatprep.subr.bf16.mxu0 0
        %1975 = vmatpush1.bf16.msra.mxu0 %v1972
        %1976 = vmatprep.subr.bf16.mxu0 0
        %1977 = vmatpush1.bf16.msra.mxu0 0
        %1978 = vmatprep.subr.bf16.mxu0 0
        %1979 = vmatpush1.bf16.msra.mxu0 0
        %1980 = vmatprep.subr.bf16.mxu0 0
        %1981 = vmatpush1.bf16.msra.mxu0 0
        %1982 = vmatprep.subr.bf16.mxu0 0
        %1983 = vmatpush1.bf16.msra.mxu0 0
        %1984 = vmatprep.subr.bf16.mxu0 0
        %1985 = vmatpush1.bf16.msra.mxu0 0
        %1986 = vmatprep.subr.bf16.mxu0 0
        %1987 = vmatpush1.bf16.msra.mxu0 0
        %1988 = vmatprep.subr.bf16.mxu0 0
        %1989 = vmatpush1.bf16.msra.mxu0 0
        %1990 = vmatprep.subr.bf16.mxu0 0
        %1991 = vmatpush1.bf16.msra.mxu0 0
        %1992 = vmatprep.subr.bf16.mxu0 0
        %1993 = vmatpush1.bf16.msra.mxu0 0
        %1994 = vmatprep.subr.bf16.mxu0 0
        %1995 = vmatpush1.bf16.msra.mxu0 0
        %1996 = vmatprep.subr.bf16.mxu0 0
        %1997 = vmatpush1.bf16.msra.mxu0 0
        %1998 = vmatprep.subr.bf16.mxu0 0
        %1999 = vmatpush1.bf16.msra.mxu0 0
        %2000 = vmatprep.subr.bf16.mxu0 0
        %2001 = vmatpush1.bf16.msra.mxu0 0
        %2002 = vmatprep.subr.bf16.mxu0 0
        %2003 = vmatpush1.bf16.msra.mxu0 0
        %2004 = vmatprep.subr.bf16.mxu0 0
        %2005 = vmatpush1.bf16.msra.mxu0 0
        %2006 = vmatprep.mubr.bf16.mxu0 0
        %2007 = vmatmul.mubr.bf16.gmra.mrb[0].mxu0 %v1969
        %v2008 = vpop.f32.mrb[0].mxu0
        %v2009 = vadd.f32 0.0, %v2008
        %v2010 = vpop.f32.mrb[0].mxu0
        %v2011 = vpop.f32.mrb[0].mxu0
        %v2012 = vpop.f32.mrb[0].mxu0
        %2013 = vdwg.mxu0
        %2014 = vrot.lane.b32.xlu0 %v1234, 32
        %v2015 = vpop.permute.xlu0 %2014
        %v2017 = vsel %vm1239, %v1723, 0
        %v2020 = vsel %vm1730, %v2015, 0
        %2022 = vmatprep.subr.bf16.mxu0 0
        %2023 = vmatpush1.bf16.msra.mxu0 %v2020
        %2024 = vmatprep.subr.bf16.mxu0 0
        %2025 = vmatpush1.bf16.msra.mxu0 0
        %2026 = vmatprep.subr.bf16.mxu0 0
        %2027 = vmatpush1.bf16.msra.mxu0 0
        %2028 = vmatprep.subr.bf16.mxu0 0
        %2029 = vmatpush1.bf16.msra.mxu0 0
        %2030 = vmatprep.subr.bf16.mxu0 0
        %2031 = vmatpush1.bf16.msra.mxu0 0
        %2032 = vmatprep.subr.bf16.mxu0 0
        %2033 = vmatpush1.bf16.msra.mxu0 0
        %2034 = vmatprep.subr.bf16.mxu0 0
        %2035 = vmatpush1.bf16.msra.mxu0 0
        %2036 = vmatprep.subr.bf16.mxu0 0
        %2037 = vmatpush1.bf16.msra.mxu0 0
        %2038 = vmatprep.subr.bf16.mxu0 0
        %2039 = vmatpush1.bf16.msra.mxu0 0
        %2040 = vmatprep.subr.bf16.mxu0 0
        %2041 = vmatpush1.bf16.msra.mxu0 0
        %2042 = vmatprep.subr.bf16.mxu0 0
        %2043 = vmatpush1.bf16.msra.mxu0 0
        %2044 = vmatprep.subr.bf16.mxu0 0
        %2045 = vmatpush1.bf16.msra.mxu0 0
        %2046 = vmatprep.subr.bf16.mxu0 0
        %2047 = vmatpush1.bf16.msra.mxu0 0
        %2048 = vmatprep.subr.bf16.mxu0 0
        %2049 = vmatpush1.bf16.msra.mxu0 0
        %2050 = vmatprep.subr.bf16.mxu0 0
        %2051 = vmatpush1.bf16.msra.mxu0 0
        %2052 = vmatprep.subr.bf16.mxu0 0
        %2053 = vmatpush1.bf16.msra.mxu0 0
        %2054 = vmatprep.mubr.bf16.mxu0 0
        %2055 = vmatmul.mubr.bf16.gmra.mrb[0].mxu0 %v2017
        %v2056 = vpop.f32.mrb[0].mxu0
        %v2057 = vadd.f32 0.0, %v2056
        %v2058 = vpop.f32.mrb[0].mxu0
        %v2059 = vpop.f32.mrb[0].mxu0
        %v2060 = vpop.f32.mrb[0].mxu0
        %2061 = vdwg.mxu0
        %2062 = vrot.lane.b32.xlu0 %v1235, 32
        %v2063 = vpop.permute.xlu0 %2062
        %v2065 = vsel %vm1239, %v1724, 0
        %v2068 = vsel %vm1730, %v2063, 0
        %2070 = vmatprep.subr.bf16.mxu0 0
        %2071 = vmatpush1.bf16.msra.mxu0 %v2068
        %2072 = vmatprep.subr.bf16.mxu0 0
        %2073 = vmatpush1.bf16.msra.mxu0 0
        %2074 = vmatprep.subr.bf16.mxu0 0
        %2075 = vmatpush1.bf16.msra.mxu0 0
        %2076 = vmatprep.subr.bf16.mxu0 0
        %2077 = vmatpush1.bf16.msra.mxu0 0
        %2078 = vmatprep.subr.bf16.mxu0 0
        %2079 = vmatpush1.bf16.msra.mxu0 0
        %2080 = vmatprep.subr.bf16.mxu0 0
        %2081 = vmatpush1.bf16.msra.mxu0 0
        %2082 = vmatprep.subr.bf16.mxu0 0
        %2083 = vmatpush1.bf16.msra.mxu0 0
        %2084 = vmatprep.subr.bf16.mxu0 0
        %2085 = vmatpush1.bf16.msra.mxu0 0
        %2086 = vmatprep.subr.bf16.mxu0 0
        %2087 = vmatpush1.bf16.msra.mxu0 0
        %2088 = vmatprep.subr.bf16.mxu0 0
        %2089 = vmatpush1.bf16.msra.mxu0 0
        %2090 = vmatprep.subr.bf16.mxu0 0
        %2091 = vmatpush1.bf16.msra.mxu0 0
        %2092 = vmatprep.subr.bf16.mxu0 0
        %2093 = vmatpush1.bf16.msra.mxu0 0
        %2094 = vmatprep.subr.bf16.mxu0 0
        %2095 = vmatpush1.bf16.msra.mxu0 0
        %2096 = vmatprep.subr.bf16.mxu0 0
        %2097 = vmatpush1.bf16.msra.mxu0 0
        %2098 = vmatprep.subr.bf16.mxu0 0
        %2099 = vmatpush1.bf16.msra.mxu0 0
        %2100 = vmatprep.subr.bf16.mxu0 0
        %2101 = vmatpush1.bf16.msra.mxu0 0
        %2102 = vmatprep.mubr.bf16.mxu0 0
        %2103 = vmatmul.mubr.bf16.gmra.mrb[0].mxu0 %v2065
        %v2104 = vpop.f32.mrb[0].mxu0
        %v2105 = vadd.f32 0.0, %v2104
        %v2106 = vpop.f32.mrb[0].mxu0
        %v2107 = vpop.f32.mrb[0].mxu0
        %v2108 = vpop.f32.mrb[0].mxu0
        %2109 = vdwg.mxu0
        %2110 = vrot.lane.b32.xlu0 %v1197, 96
        %v2111 = vpop.permute.xlu0 %2110
        %2112 = vrot.lane.b32.xlu0 %v1200, 96
        %v2113 = vpop.permute.xlu0 %2112
        %2114 = vrot.lane.b32.xlu0 %v1211, 96
        %v2115 = vpop.permute.xlu0 %2114
        %2116 = vrot.lane.b32.xlu0 %v1213, 96
        %v2117 = vpop.permute.xlu0 %2116
        %2118 = vrot.lane.b32.xlu0 %v1217, 96
        %v2119 = vpop.permute.xlu0 %2118
        %2120 = vrot.lane.b32.xlu0 %v1219, 96
        %v2121 = vpop.permute.xlu0 %2120
        %2122 = vrot.lane.b32.xlu0 %v1223, 96
        %v2123 = vpop.permute.xlu0 %2122
        %2124 = vrot.lane.b32.xlu0 %v1225, 96
        %v2125 = vpop.permute.xlu0 %2124
        %v2134 = vmul.f32 %v1769, %v2111
        %v2135 = vmul.f32 %v1817, %v2113
        %v2136 = vmul.f32 %v1865, %v2115
        %v2137 = vmul.f32 %v1913, %v2117
        %v2138 = vmul.f32 %v1961, %v2119
        %v2139 = vmul.f32 %v2009, %v2121
        %v2140 = vmul.f32 %v2057, %v2123
        %v2141 = vmul.f32 %v2105, %v2125
        %v2142 = vpack.c.bf16 %v2135, %v2134
        %v2143 = vpack.c.bf16 %v2137, %v2136
        %v2145 = vsel %vm1239, %v2143, 0
        %v2148 = vsel %vm1730, %v1204, 0
        %2150 = vmatprep.subr.bf16.mxu0 0
        %2151 = vmatpush1.bf16.msra.mxu0 %v2148
        %2152 = vmatprep.subr.bf16.mxu0 0
        %2153 = vmatpush1.bf16.msra.mxu0 0
        %2154 = vmatprep.subr.bf16.mxu0 0
        %2155 = vmatpush1.bf16.msra.mxu0 0
        %2156 = vmatprep.subr.bf16.mxu0 0
        %2157 = vmatpush1.bf16.msra.mxu0 0
        %2158 = vmatprep.subr.bf16.mxu0 0
        %2159 = vmatpush1.bf16.msra.mxu0 0
        %2160 = vmatprep.subr.bf16.mxu0 0
        %2161 = vmatpush1.bf16.msra.mxu0 0
        %2162 = vmatprep.subr.bf16.mxu0 0
        %2163 = vmatpush1.bf16.msra.mxu0 0
        %2164 = vmatprep.subr.bf16.mxu0 0
        %2165 = vmatpush1.bf16.msra.mxu0 0
        %2166 = vmatprep.subr.bf16.mxu0 0
        %2167 = vmatpush1.bf16.msra.mxu0 0
        %2168 = vmatprep.subr.bf16.mxu0 0
        %2169 = vmatpush1.bf16.msra.mxu0 0
        %2170 = vmatprep.subr.bf16.mxu0 0
        %2171 = vmatpush1.bf16.msra.mxu0 0
        %2172 = vmatprep.subr.bf16.mxu0 0
        %2173 = vmatpush1.bf16.msra.mxu0 0
        %2174 = vmatprep.subr.bf16.mxu0 0
        %2175 = vmatpush1.bf16.msra.mxu0 0
        %2176 = vmatprep.subr.bf16.mxu0 0
        %2177 = vmatpush1.bf16.msra.mxu0 0
        %2178 = vmatprep.subr.bf16.mxu0 0
        %2179 = vmatpush1.bf16.msra.mxu0 0
        %2180 = vmatprep.subr.bf16.mxu0 0
        %2181 = vmatpush1.bf16.msra.mxu0 0
        %2182 = vmatprep.mubr.bf16.mxu0 0
        %2183 = vmatmul.mubr.bf16.gmra.mrb[0].mxu0 %v2145
        %v2184 = vpop.f32.mrb[0].mxu0
        %v2185 = vadd.f32 0.0, %v2184
        %v2186 = vpop.f32.mrb[0].mxu0
        %v2187 = vpop.f32.mrb[0].mxu0
        %v2188 = vadd.f32 0.0, %v2187
        %v2189 = vpop.f32.mrb[0].mxu0
        %2190 = vdwg.mxu0
        %v2192 = vsel %vm1239, %v2142, 0
        %v2195 = vsel %vm1730, %v1203, 0
        %2197 = vmatprep.subr.bf16.mxu0 0
        %2198 = vmatpush1.bf16.msra.mxu0 %v2195
        %2199 = vmatprep.subr.bf16.mxu0 0
        %2200 = vmatpush1.bf16.msra.mxu0 0
        %2201 = vmatprep.subr.bf16.mxu0 0
        %2202 = vmatpush1.bf16.msra.mxu0 0
        %2203 = vmatprep.subr.bf16.mxu0 0
        %2204 = vmatpush1.bf16.msra.mxu0 0
        %2205 = vmatprep.subr.bf16.mxu0 0
        %2206 = vmatpush1.bf16.msra.mxu0 0
        %2207 = vmatprep.subr.bf16.mxu0 0
        %2208 = vmatpush1.bf16.msra.mxu0 0
        %2209 = vmatprep.subr.bf16.mxu0 0
        %2210 = vmatpush1.bf16.msra.mxu0 0
        %2211 = vmatprep.subr.bf16.mxu0 0
        %2212 = vmatpush1.bf16.msra.mxu0 0
        %2213 = vmatprep.subr.bf16.mxu0 0
        %2214 = vmatpush1.bf16.msra.mxu0 0
        %2215 = vmatprep.subr.bf16.mxu0 0
        %2216 = vmatpush1.bf16.msra.mxu0 0
        %2217 = vmatprep.subr.bf16.mxu0 0
        %2218 = vmatpush1.bf16.msra.mxu0 0
        %2219 = vmatprep.subr.bf16.mxu0 0
        %2220 = vmatpush1.bf16.msra.mxu0 0
        %2221 = vmatprep.subr.bf16.mxu0 0
        %2222 = vmatpush1.bf16.msra.mxu0 0
        %2223 = vmatprep.subr.bf16.mxu0 0
        %2224 = vmatpush1.bf16.msra.mxu0 0
        %2225 = vmatprep.subr.bf16.mxu0 0
        %2226 = vmatpush1.bf16.msra.mxu0 0
        %2227 = vmatprep.subr.bf16.mxu0 0
        %2228 = vmatpush1.bf16.msra.mxu0 0
        %2229 = vmatprep.mubr.bf16.mxu0 0
        %2230 = vmatmul.mubr.bf16.gmra.mrb[0].mxu0 %v2192
        %v2231 = vpop.f32.mrb[0].mxu0
        %v2232 = vadd.f32 %v2185, %v2231
        %v2233 = vpop.f32.mrb[0].mxu0
        %v2234 = vpop.f32.mrb[0].mxu0
        %v2235 = vadd.f32 %v2188, %v2234
        %v2236 = vpop.f32.mrb[0].mxu0
        %2237 = vdwg.mxu0
        %v2238 = vpack.c.bf16 %v2139, %v2138
        %v2240 = vsel %vm1239, %v2238, 0
        %v2243 = vsel %vm1730, %v1205, 0
        %2245 = vmatprep.subr.bf16.mxu0 0
        %2246 = vmatpush1.bf16.msra.mxu0 %v2243
        %2247 = vmatprep.subr.bf16.mxu0 0
        %2248 = vmatpush1.bf16.msra.mxu0 0
        %2249 = vmatprep.subr.bf16.mxu0 0
        %2250 = vmatpush1.bf16.msra.mxu0 0
        %2251 = vmatprep.subr.bf16.mxu0 0
        %2252 = vmatpush1.bf16.msra.mxu0 0
        %2253 = vmatprep.subr.bf16.mxu0 0
        %2254 = vmatpush1.bf16.msra.mxu0 0
        %2255 = vmatprep.subr.bf16.mxu0 0
        %2256 = vmatpush1.bf16.msra.mxu0 0
        %2257 = vmatprep.subr.bf16.mxu0 0
        %2258 = vmatpush1.bf16.msra.mxu0 0
        %2259 = vmatprep.subr.bf16.mxu0 0
        %2260 = vmatpush1.bf16.msra.mxu0 0
        %2261 = vmatprep.subr.bf16.mxu0 0
        %2262 = vmatpush1.bf16.msra.mxu0 0
        %2263 = vmatprep.subr.bf16.mxu0 0
        %2264 = vmatpush1.bf16.msra.mxu0 0
        %2265 = vmatprep.subr.bf16.mxu0 0
        %2266 = vmatpush1.bf16.msra.mxu0 0
        %2267 = vmatprep.subr.bf16.mxu0 0
        %2268 = vmatpush1.bf16.msra.mxu0 0
        %2269 = vmatprep.subr.bf16.mxu0 0
        %2270 = vmatpush1.bf16.msra.mxu0 0
        %2271 = vmatprep.subr.bf16.mxu0 0
        %2272 = vmatpush1.bf16.msra.mxu0 0
        %2273 = vmatprep.subr.bf16.mxu0 0
        %2274 = vmatpush1.bf16.msra.mxu0 0
        %2275 = vmatprep.subr.bf16.mxu0 0
        %2276 = vmatpush1.bf16.msra.mxu0 0
        %2277 = vmatprep.mubr.bf16.mxu0 0
        %2278 = vmatmul.mubr.bf16.gmra.mrb[0].mxu0 %v2240
        %v2279 = vpop.f32.mrb[0].mxu0
        %v2280 = vadd.f32 0.0, %v2279
        %v2281 = vpop.f32.mrb[0].mxu0
        %v2282 = vpop.f32.mrb[0].mxu0
        %v2283 = vadd.f32 0.0, %v2282
        %v2284 = vpop.f32.mrb[0].mxu0
        %2285 = vdwg.mxu0
        %v2286 = vadd.f32 %v2232, %v2280
        %v2287 = vadd.f32 %v2235, %v2283
        %v2288 = vpack.c.bf16 %v2141, %v2140
        %v2290 = vsel %vm1239, %v2288, 0
        %v2293 = vsel %vm1730, %v1206, 0
        %2295 = vmatprep.subr.bf16.mxu0 0
        %2296 = vmatpush1.bf16.msra.mxu0 %v2293
        %2297 = vmatprep.subr.bf16.mxu0 0
        %2298 = vmatpush1.bf16.msra.mxu0 0
        %2299 = vmatprep.subr.bf16.mxu0 0
        %2300 = vmatpush1.bf16.msra.mxu0 0
        %2301 = vmatprep.subr.bf16.mxu0 0
        %2302 = vmatpush1.bf16.msra.mxu0 0
        %2303 = vmatprep.subr.bf16.mxu0 0
        %2304 = vmatpush1.bf16.msra.mxu0 0
        %2305 = vmatprep.subr.bf16.mxu0 0
        %2306 = vmatpush1.bf16.msra.mxu0 0
        %2307 = vmatprep.subr.bf16.mxu0 0
        %2308 = vmatpush1.bf16.msra.mxu0 0
        %2309 = vmatprep.subr.bf16.mxu0 0
        %2310 = vmatpush1.bf16.msra.mxu0 0
        %2311 = vmatprep.subr.bf16.mxu0 0
        %2312 = vmatpush1.bf16.msra.mxu0 0
        %2313 = vmatprep.subr.bf16.mxu0 0
        %2314 = vmatpush1.bf16.msra.mxu0 0
        %2315 = vmatprep.subr.bf16.mxu0 0
        %2316 = vmatpush1.bf16.msra.mxu0 0
        %2317 = vmatprep.subr.bf16.mxu0 0
        %2318 = vmatpush1.bf16.msra.mxu0 0
        %2319 = vmatprep.subr.bf16.mxu0 0
        %2320 = vmatpush1.bf16.msra.mxu0 0
        %2321 = vmatprep.subr.bf16.mxu0 0
        %2322 = vmatpush1.bf16.msra.mxu0 0
        %2323 = vmatprep.subr.bf16.mxu0 0
        %2324 = vmatpush1.bf16.msra.mxu0 0
        %2325 = vmatprep.subr.bf16.mxu0 0
        %2326 = vmatpush1.bf16.msra.mxu0 0
        %2327 = vmatprep.mubr.bf16.mxu0 0
        %2328 = vmatmul.mubr.bf16.gmra.mrb[0].mxu0 %v2290
        %v2329 = vpop.f32.mrb[0].mxu0
        %v2330 = vadd.f32 0.0, %v2329
        %v2331 = vpop.f32.mrb[0].mxu0
        %v2332 = vpop.f32.mrb[0].mxu0
        %v2333 = vadd.f32 0.0, %v2332
        %v2334 = vpop.f32.mrb[0].mxu0
        %2335 = vdwg.mxu0
        %v2336 = vadd.f32 %v2286, %v2330
        %v2337 = vadd.f32 %v2287, %v2333
        %v2339 = vlaneseq
        %v2340 = vshrl.u32 %v2339, 7
        %v2341 = vsub.s32 0, %v2340
        %v2342 = vrot.slane %v1207, %v2341
        %v2344 = vadd.f32 %v2336, %v2342
        %v2345 = vadd.f32 %v2337, %v2342
        %v2346 = vadd.f32 %v1076, %v2344
        %v2347 = vadd.f32 %v1077, %v2345
        %v2348 = vsel %vm1095, %v2346, 0.0
        %2349 = vadd.xlane.f32.xlu0 %v2348
        %v2350 = vpop.xlane.xlu0 %2349
        %v2351 = vsel %vm1095, %v2347, 0.0
        %2352 = vadd.xlane.f32.xlu0 %v2351
        %v2353 = vpop.xlane.xlu0 %2352
        %v2354 = vmul.f32 %v2350, %v1102
        %v2355 = vmul.f32 %v2353, %v1102
        %v2356 = vsub.f32 %v2346, %v2354
        %v2357 = vsub.f32 %v2347, %v2355
        %v2358 = vmul.f32 %v2356, %v2356
        %v2359 = vmul.f32 %v2357, %v2357
        %v2360 = vsel %vm1095, %v2358, 0.0
        %2361 = vadd.xlane.f32.xlu0 %v2360
        %v2362 = vpop.xlane.xlu0 %2361
        %v2363 = vsel %vm1095, %v2359, 0.0
        %2364 = vadd.xlane.f32.xlu0 %v2363
        %v2365 = vpop.xlane.xlu0 %2364
        %v2366 = vmul.f32 %v2362, %v1102
        %v2367 = vmul.f32 %v2365, %v1102
        %v2368 = vadd.f32 %v2366, 1e-05
        %v2369 = vadd.f32 %v2367, 1e-05
        %v2370 = vrsqrt.pop %v2368
        %v2371 = vrsqrt.pop %v2369
        %v2372 = vmul.f32 %v2356, %v2370
        %v2373 = vmul.f32 %v2357, %v2371
        %v2374 = vlaneseq
        %v2375 = vshrl.u32 %v2374, 7
        %v2376 = vsub.s32 1, %v2375
        %v2377 = vrot.slane %v1093, %v2376
        %v2378 = vmul.f32 %v2372, %v2377
        %v2379 = vmul.f32 %v2373, %v2377
        %v2380 = vlaneseq
        %v2381 = vshrl.u32 %v2380, 7
        %v2382 = vsub.s32 1, %v2381
        %v2383 = vrot.slane %v1094, %v2382
        %v2384 = vadd.f32 %v2378, %v2383
        %v2385 = vadd.f32 %v2379, %v2383
        %v2386 = vpack.c.bf16 %v2385, %v2384
        %v2387 = vld [vmem:[%s904] sm:$0xf]
        %v2388 = vld [vmem:[%s904 + $0x4] sm:$0xf]
        %v2389 = vld [vmem:[%s904 + $0x8] sm:$0xf]
        %v2390 = vld [vmem:[%s904 + $0xc] sm:$0xf]
        %v2391 = vld [vmem:[%s912] sm:$0x1]
        %v2393 = vlaneseq
        %v2394 = vshrl.u32 %v2393, 7
        %v2395 = vsub.s32 0, %v2394
        %v2396 = vrot.slane %v2391, %v2395
        %v2402 = vunpack.c.l.b16 %v2387
        %v2403 = vunpack.c.l.b16 %v2388
        %v2404 = vunpack.c.l.b16 %v2389
        %v2405 = vunpack.c.l.b16 %v2390
        %v2406 = vpack.c.b16 %v2403, %v2402
        %v2407 = vpack.c.b16 %v2405, %v2404
        %v2411 = vsel %vm1095, %v2386, 0
        %2413 = vmatprep.subr.bf16.mxu0 0
        %2414 = vmatpush1.bf16.msra.mxu0 %v2406
        %2415 = vmatprep.subr.bf16.mxu0 0
        %2416 = vmatpush1.bf16.msra.mxu0 %v2407
        %2417 = vmatprep.subr.bf16.mxu0 0
        %2418 = vmatpush1.bf16.msra.mxu0 0
        %2419 = vmatprep.subr.bf16.mxu0 0
        %2420 = vmatpush1.bf16.msra.mxu0 0
        %2421 = vmatprep.subr.bf16.mxu0 0
        %2422 = vmatpush1.bf16.msra.mxu0 0
        %2423 = vmatprep.subr.bf16.mxu0 0
        %2424 = vmatpush1.bf16.msra.mxu0 0
        %2425 = vmatprep.subr.bf16.mxu0 0
        %2426 = vmatpush1.bf16.msra.mxu0 0
        %2427 = vmatprep.subr.bf16.mxu0 0
        %2428 = vmatpush1.bf16.msra.mxu0 0
        %2429 = vmatprep.subr.bf16.mxu0 0
        %2430 = vmatpush1.bf16.msra.mxu0 0
        %2431 = vmatprep.subr.bf16.mxu0 0
        %2432 = vmatpush1.bf16.msra.mxu0 0
        %2433 = vmatprep.subr.bf16.mxu0 0
        %2434 = vmatpush1.bf16.msra.mxu0 0
        %2435 = vmatprep.subr.bf16.mxu0 0
        %2436 = vmatpush1.bf16.msra.mxu0 0
        %2437 = vmatprep.subr.bf16.mxu0 0
        %2438 = vmatpush1.bf16.msra.mxu0 0
        %2439 = vmatprep.subr.bf16.mxu0 0
        %2440 = vmatpush1.bf16.msra.mxu0 0
        %2441 = vmatprep.subr.bf16.mxu0 0
        %2442 = vmatpush1.bf16.msra.mxu0 0
        %2443 = vmatprep.subr.bf16.mxu0 0
        %2444 = vmatpush1.bf16.msra.mxu0 0
        %2445 = vmatprep.mubr.bf16.mxu0 0
        %2446 = vmatmul.mubr.bf16.gmra.mrb[0].mxu0 %v2411
        %v2447 = vpop.f32.mrb[0].mxu0
        %v2448 = vadd.f32 %v2396, %v2447
        %v2449 = vpop.f32.mrb[0].mxu0
        %v2450 = vpop.f32.mrb[0].mxu0
        %v2451 = vadd.f32 %v2396, %v2450
        %v2452 = vpop.f32.mrb[0].mxu0
        %2453 = vdwg.mxu0
        %v2454 = vld [vmem:[%s1057] sm:$0xf]
        %v2455 = vld [vmem:[%s1057 + $0x4] sm:$0xf]
        %v2456 = vld [vmem:[%s1057 + $0x8] sm:$0xf]
        %v2457 = vld [vmem:[%s1057 + $0xc] sm:$0xf]
        %v2458 = vld [vmem:[%s920] sm:$0x1]
        %v2460 = vlaneseq
        %v2461 = vshrl.u32 %v2460, 7
        %v2462 = vsub.s32 0, %v2461
        %v2463 = vrot.slane %v2458, %v2462
        %v2469 = vunpack.c.l.b16 %v2454
        %v2470 = vunpack.c.l.b16 %v2455
        %v2471 = vunpack.c.l.b16 %v2456
        %v2472 = vunpack.c.l.b16 %v2457
        %v2473 = vpack.c.b16 %v2470, %v2469
        %v2474 = vpack.c.b16 %v2472, %v2471
        %v2478 = vsel %vm1095, %v1080, 0
        %2480 = vmatprep.subr.bf16.mxu0 0
        %2481 = vmatpush1.bf16.msra.mxu0 %v2473
        %2482 = vmatprep.subr.bf16.mxu0 0
        %2483 = vmatpush1.bf16.msra.mxu0 %v2474
        %2484 = vmatprep.subr.bf16.mxu0 0
        %2485 = vmatpush1.bf16.msra.mxu0 0
        %2486 = vmatprep.subr.bf16.mxu0 0
        %2487 = vmatpush1.bf16.msra.mxu0 0
        %2488 = vmatprep.subr.bf16.mxu0 0
        %2489 = vmatpush1.bf16.msra.mxu0 0
        %2490 = vmatprep.subr.bf16.mxu0 0
        %2491 = vmatpush1.bf16.msra.mxu0 0
        %2492 = vmatprep.subr.bf16.mxu0 0
        %2493 = vmatpush1.bf16.msra.mxu0 0
        %2494 = vmatprep.subr.bf16.mxu0 0
        %2495 = vmatpush1.bf16.msra.mxu0 0
        %2496 = vmatprep.subr.bf16.mxu0 0
        %2497 = vmatpush1.bf16.msra.mxu0 0
        %2498 = vmatprep.subr.bf16.mxu0 0
        %2499 = vmatpush1.bf16.msra.mxu0 0
        %2500 = vmatprep.subr.bf16.mxu0 0
        %2501 = vmatpush1.bf16.msra.mxu0 0
        %2502 = vmatprep.subr.bf16.mxu0 0
        %2503 = vmatpush1.bf16.msra.mxu0 0
        %2504 = vmatprep.subr.bf16.mxu0 0
        %2505 = vmatpush1.bf16.msra.mxu0 0
        %2506 = vmatprep.subr.bf16.mxu0 0
        %2507 = vmatpush1.bf16.msra.mxu0 0
        %2508 = vmatprep.subr.bf16.mxu0 0
        %2509 = vmatpush1.bf16.msra.mxu0 0
        %2510 = vmatprep.subr.bf16.mxu0 0
        %2511 = vmatpush1.bf16.msra.mxu0 0
        %2512 = vmatprep.mubr.bf16.mxu0 0
        %2513 = vmatmul.mubr.bf16.gmra.mrb[0].mxu0 %v2478
        %v2514 = vpop.f32.mrb[0].mxu0
        %v2515 = vadd.f32 %v2463, %v2514
        %v2516 = vpop.f32.mrb[0].mxu0
        %v2517 = vpop.f32.mrb[0].mxu0
        %v2518 = vadd.f32 %v2463, %v2517
        %v2519 = vpop.f32.mrb[0].mxu0
        %2520 = vdwg.mxu0
        %v2521 = vld [vmem:[%s929] sm:$0xf]
        %v2522 = vld [vmem:[%s929 + $0x4] sm:$0xf]
        %v2523 = vld [vmem:[%s929 + $0x8] sm:$0xf]
        %v2524 = vld [vmem:[%s929 + $0xc] sm:$0xf]
        %v2525 = vld [vmem:[%s1060] sm:$0x1]
        %2528 = vrot.lane.b32.xlu0 %v2448, 120
        %v2529 = vpop.permute.xlu0 %2528
        %2530 = vrot.lane.b32.xlu0 %v2451, 120
        %v2531 = vpop.permute.xlu0 %2530
        %2534 = vrot.lane.b32.xlu0 %v2448, 112
        %v2535 = vpop.permute.xlu0 %2534
        %2536 = vrot.lane.b32.xlu0 %v2451, 112
        %v2537 = vpop.permute.xlu0 %2536
        %2540 = vrot.lane.b32.xlu0 %v2448, 104
        %v2541 = vpop.permute.xlu0 %2540
        %2542 = vrot.lane.b32.xlu0 %v2451, 104
        %v2543 = vpop.permute.xlu0 %2542
        %v2546 = vpack.c.bf16 %v2448, %v2448
        %v2547 = vpack.c.bf16 %v2451, %v2451
        %v2548 = vpack.c.bf16 %v2529, %v2529
        %v2549 = vpack.c.bf16 %v2531, %v2531
        %v2550 = vpack.c.bf16 %v2535, %v2535
        %v2551 = vpack.c.bf16 %v2537, %v2537
        %v2552 = vpack.c.bf16 %v2541, %v2541
        %v2553 = vpack.c.bf16 %v2543, %v2543
        %2556 = vrot.lane.b32.xlu0 %v2515, 120
        %v2557 = vpop.permute.xlu0 %2556
        %2558 = vrot.lane.b32.xlu0 %v2518, 120
        %v2559 = vpop.permute.xlu0 %2558
        %2562 = vrot.lane.b32.xlu0 %v2515, 112
        %v2563 = vpop.permute.xlu0 %2562
        %2564 = vrot.lane.b32.xlu0 %v2518, 112
        %v2565 = vpop.permute.xlu0 %2564
        %2568 = vrot.lane.b32.xlu0 %v2515, 104
        %v2569 = vpop.permute.xlu0 %2568
        %2570 = vrot.lane.b32.xlu0 %v2518, 104
        %v2571 = vpop.permute.xlu0 %2570
        %v2574 = vpack.c.bf16 %v2515, %v2515
        %v2575 = vpack.c.bf16 %v2518, %v2518
        %v2576 = vpack.c.bf16 %v2557, %v2557
        %v2577 = vpack.c.bf16 %v2559, %v2559
        %v2578 = vpack.c.bf16 %v2563, %v2563
        %v2579 = vpack.c.bf16 %v2565, %v2565
        %v2580 = vpack.c.bf16 %v2569, %v2569
        %v2581 = vpack.c.bf16 %v2571, %v2571
        %v2583 = vsel %vm1239, %v2546, 0
        %v2586 = vsel %vm1239, %v2574, 0
        %2588 = vmatprep.subr.bf16.mxu0 0
        %2589 = vmatpush1.bf16.xpose.msra.mxu0 %v2586
        %2590 = vmatprep.subr.bf16.mxu0 0
        %2591 = vmatpush1.bf16.xpose.msra.mxu0 0
        %2592 = vmatprep.subr.bf16.mxu0 0
        %2593 = vmatpush1.bf16.xpose.msra.mxu0 0
        %2594 = vmatprep.subr.bf16.mxu0 0
        %2595 = vmatpush1.bf16.xpose.msra.mxu0 0
        %2596 = vmatprep.subr.bf16.mxu0 0
        %2597 = vmatpush1.bf16.xpose.msra.mxu0 0
        %2598 = vmatprep.subr.bf16.mxu0 0
        %2599 = vmatpush1.bf16.xpose.msra.mxu0 0
        %2600 = vmatprep.subr.bf16.mxu0 0
        %2601 = vmatpush1.bf16.xpose.msra.mxu0 0
        %2602 = vmatprep.subr.bf16.mxu0 0
        %2603 = vmatpush1.bf16.xpose.msra.mxu0 0
        %2604 = vmatprep.subr.bf16.mxu0 0
        %2605 = vmatpush1.bf16.xpose.msra.mxu0 0
        %2606 = vmatprep.subr.bf16.mxu0 0
        %2607 = vmatpush1.bf16.xpose.msra.mxu0 0
        %2608 = vmatprep.subr.bf16.mxu0 0
        %2609 = vmatpush1.bf16.xpose.msra.mxu0 0
        %2610 = vmatprep.subr.bf16.mxu0 0
        %2611 = vmatpush1.bf16.xpose.msra.mxu0 0
        %2612 = vmatprep.subr.bf16.mxu0 0
        %2613 = vmatpush1.bf16.xpose.msra.mxu0 0
        %2614 = vmatprep.subr.bf16.mxu0 0
        %2615 = vmatpush1.bf16.xpose.msra.mxu0 0
        %2616 = vmatprep.subr.bf16.mxu0 0
        %2617 = vmatpush1.bf16.xpose.msra.mxu0 0
        %2618 = vmatprep.subr.bf16.mxu0 0
        %2619 = vmatpush1.bf16.xpose.msra.mxu0 0
        %2620 = vmatprep.mubr.bf16.mxu0 0
        %2621 = vmatmul.mubr.bf16.gmra.mrb[0].mxu0 %v2583
        %v2622 = vpop.f32.mrb[0].mxu0
        %v2623 = vadd.f32 %v1091, %v2622
        %v2624 = vpop.f32.mrb[0].mxu0
        %v2625 = vpop.f32.mrb[0].mxu0
        %v2626 = vpop.f32.mrb[0].mxu0
        %2627 = vdwg.mxu0
        %v2629 = vsel %vm1239, %v2547, 0
        %v2632 = vsel %vm1239, %v2575, 0
        %2634 = vmatprep.subr.bf16.mxu0 0
        %2635 = vmatpush1.bf16.xpose.msra.mxu0 %v2632
        %2636 = vmatprep.subr.bf16.mxu0 0
        %2637 = vmatpush1.bf16.xpose.msra.mxu0 0
        %2638 = vmatprep.subr.bf16.mxu0 0
        %2639 = vmatpush1.bf16.xpose.msra.mxu0 0
        %2640 = vmatprep.subr.bf16.mxu0 0
        %2641 = vmatpush1.bf16.xpose.msra.mxu0 0
        %2642 = vmatprep.subr.bf16.mxu0 0
        %2643 = vmatpush1.bf16.xpose.msra.mxu0 0
        %2644 = vmatprep.subr.bf16.mxu0 0
        %2645 = vmatpush1.bf16.xpose.msra.mxu0 0
        %2646 = vmatprep.subr.bf16.mxu0 0
        %2647 = vmatpush1.bf16.xpose.msra.mxu0 0
        %2648 = vmatprep.subr.bf16.mxu0 0
        %2649 = vmatpush1.bf16.xpose.msra.mxu0 0
        %2650 = vmatprep.subr.bf16.mxu0 0
        %2651 = vmatpush1.bf16.xpose.msra.mxu0 0
        %2652 = vmatprep.subr.bf16.mxu0 0
        %2653 = vmatpush1.bf16.xpose.msra.mxu0 0
        %2654 = vmatprep.subr.bf16.mxu0 0
        %2655 = vmatpush1.bf16.xpose.msra.mxu0 0
        %2656 = vmatprep.subr.bf16.mxu0 0
        %2657 = vmatpush1.bf16.xpose.msra.mxu0 0
        %2658 = vmatprep.subr.bf16.mxu0 0
        %2659 = vmatpush1.bf16.xpose.msra.mxu0 0
        %2660 = vmatprep.subr.bf16.mxu0 0
        %2661 = vmatpush1.bf16.xpose.msra.mxu0 0
        %2662 = vmatprep.subr.bf16.mxu0 0
        %2663 = vmatpush1.bf16.xpose.msra.mxu0 0
        %2664 = vmatprep.subr.bf16.mxu0 0
        %2665 = vmatpush1.bf16.xpose.msra.mxu0 0
        %2666 = vmatprep.mubr.bf16.mxu0 0
        %2667 = vmatmul.mubr.bf16.gmra.mrb[0].mxu0 %v2629
        %v2668 = vpop.f32.mrb[0].mxu0
        %v2669 = vadd.f32 %v1092, %v2668
        %v2670 = vpop.f32.mrb[0].mxu0
        %v2671 = vpop.f32.mrb[0].mxu0
        %v2672 = vpop.f32.mrb[0].mxu0
        %2673 = vdwg.mxu0
        %v2675 = vsel %vm1239, %v2548, 0
        %v2678 = vsel %vm1239, %v2576, 0
        %2680 = vmatprep.subr.bf16.mxu0 0
        %2681 = vmatpush1.bf16.xpose.msra.mxu0 %v2678
        %2682 = vmatprep.subr.bf16.mxu0 0
        %2683 = vmatpush1.bf16.xpose.msra.mxu0 0
        %2684 = vmatprep.subr.bf16.mxu0 0
        %2685 = vmatpush1.bf16.xpose.msra.mxu0 0
        %2686 = vmatprep.subr.bf16.mxu0 0
        %2687 = vmatpush1.bf16.xpose.msra.mxu0 0
        %2688 = vmatprep.subr.bf16.mxu0 0
        %2689 = vmatpush1.bf16.xpose.msra.mxu0 0
        %2690 = vmatprep.subr.bf16.mxu0 0
        %2691 = vmatpush1.bf16.xpose.msra.mxu0 0
        %2692 = vmatprep.subr.bf16.mxu0 0
        %2693 = vmatpush1.bf16.xpose.msra.mxu0 0
        %2694 = vmatprep.subr.bf16.mxu0 0
        %2695 = vmatpush1.bf16.xpose.msra.mxu0 0
        %2696 = vmatprep.subr.bf16.mxu0 0
        %2697 = vmatpush1.bf16.xpose.msra.mxu0 0
        %2698 = vmatprep.subr.bf16.mxu0 0
        %2699 = vmatpush1.bf16.xpose.msra.mxu0 0
        %2700 = vmatprep.subr.bf16.mxu0 0
        %2701 = vmatpush1.bf16.xpose.msra.mxu0 0
        %2702 = vmatprep.subr.bf16.mxu0 0
        %2703 = vmatpush1.bf16.xpose.msra.mxu0 0
        %2704 = vmatprep.subr.bf16.mxu0 0
        %2705 = vmatpush1.bf16.xpose.msra.mxu0 0
        %2706 = vmatprep.subr.bf16.mxu0 0
        %2707 = vmatpush1.bf16.xpose.msra.mxu0 0
        %2708 = vmatprep.subr.bf16.mxu0 0
        %2709 = vmatpush1.bf16.xpose.msra.mxu0 0
        %2710 = vmatprep.subr.bf16.mxu0 0
        %2711 = vmatpush1.bf16.xpose.msra.mxu0 0
        %2712 = vmatprep.mubr.bf16.mxu0 0
        %2713 = vmatmul.mubr.bf16.gmra.mrb[0].mxu0 %v2675
        %v2714 = vpop.f32.mrb[0].mxu0
        %v2715 = vadd.f32 %v1091, %v2714
        %v2716 = vpop.f32.mrb[0].mxu0
        %v2717 = vpop.f32.mrb[0].mxu0
        %v2718 = vpop.f32.mrb[0].mxu0
        %2719 = vdwg.mxu0
        %v2721 = vsel %vm1239, %v2549, 0
        %v2724 = vsel %vm1239, %v2577, 0
        %2726 = vmatprep.subr.bf16.mxu0 0
        %2727 = vmatpush1.bf16.xpose.msra.mxu0 %v2724
        %2728 = vmatprep.subr.bf16.mxu0 0
        %2729 = vmatpush1.bf16.xpose.msra.mxu0 0
        %2730 = vmatprep.subr.bf16.mxu0 0
        %2731 = vmatpush1.bf16.xpose.msra.mxu0 0
        %2732 = vmatprep.subr.bf16.mxu0 0
        %2733 = vmatpush1.bf16.xpose.msra.mxu0 0
        %2734 = vmatprep.subr.bf16.mxu0 0
        %2735 = vmatpush1.bf16.xpose.msra.mxu0 0
        %2736 = vmatprep.subr.bf16.mxu0 0
        %2737 = vmatpush1.bf16.xpose.msra.mxu0 0
        %2738 = vmatprep.subr.bf16.mxu0 0
        %2739 = vmatpush1.bf16.xpose.msra.mxu0 0
        %2740 = vmatprep.subr.bf16.mxu0 0
        %2741 = vmatpush1.bf16.xpose.msra.mxu0 0
        %2742 = vmatprep.subr.bf16.mxu0 0
        %2743 = vmatpush1.bf16.xpose.msra.mxu0 0
        %2744 = vmatprep.subr.bf16.mxu0 0
        %2745 = vmatpush1.bf16.xpose.msra.mxu0 0
        %2746 = vmatprep.subr.bf16.mxu0 0
        %2747 = vmatpush1.bf16.xpose.msra.mxu0 0
        %2748 = vmatprep.subr.bf16.mxu0 0
        %2749 = vmatpush1.bf16.xpose.msra.mxu0 0
        %2750 = vmatprep.subr.bf16.mxu0 0
        %2751 = vmatpush1.bf16.xpose.msra.mxu0 0
        %2752 = vmatprep.subr.bf16.mxu0 0
        %2753 = vmatpush1.bf16.xpose.msra.mxu0 0
        %2754 = vmatprep.subr.bf16.mxu0 0
        %2755 = vmatpush1.bf16.xpose.msra.mxu0 0
        %2756 = vmatprep.subr.bf16.mxu0 0
        %2757 = vmatpush1.bf16.xpose.msra.mxu0 0
        %2758 = vmatprep.mubr.bf16.mxu0 0
        %2759 = vmatmul.mubr.bf16.gmra.mrb[0].mxu0 %v2721
        %v2760 = vpop.f32.mrb[0].mxu0
        %v2761 = vadd.f32 %v1092, %v2760
        %v2762 = vpop.f32.mrb[0].mxu0
        %v2763 = vpop.f32.mrb[0].mxu0
        %v2764 = vpop.f32.mrb[0].mxu0
        %2765 = vdwg.mxu0
        %v2767 = vsel %vm1239, %v2550, 0
        %v2770 = vsel %vm1239, %v2578, 0
        %2772 = vmatprep.subr.bf16.mxu0 0
        %2773 = vmatpush1.bf16.xpose.msra.mxu0 %v2770
        %2774 = vmatprep.subr.bf16.mxu0 0
        %2775 = vmatpush1.bf16.xpose.msra.mxu0 0
        %2776 = vmatprep.subr.bf16.mxu0 0
        %2777 = vmatpush1.bf16.xpose.msra.mxu0 0
        %2778 = vmatprep.subr.bf16.mxu0 0
        %2779 = vmatpush1.bf16.xpose.msra.mxu0 0
        %2780 = vmatprep.subr.bf16.mxu0 0
        %2781 = vmatpush1.bf16.xpose.msra.mxu0 0
        %2782 = vmatprep.subr.bf16.mxu0 0
        %2783 = vmatpush1.bf16.xpose.msra.mxu0 0
        %2784 = vmatprep.subr.bf16.mxu0 0
        %2785 = vmatpush1.bf16.xpose.msra.mxu0 0
        %2786 = vmatprep.subr.bf16.mxu0 0
        %2787 = vmatpush1.bf16.xpose.msra.mxu0 0
        %2788 = vmatprep.subr.bf16.mxu0 0
        %2789 = vmatpush1.bf16.xpose.msra.mxu0 0
        %2790 = vmatprep.subr.bf16.mxu0 0
        %2791 = vmatpush1.bf16.xpose.msra.mxu0 0
        %2792 = vmatprep.subr.bf16.mxu0 0
        %2793 = vmatpush1.bf16.xpose.msra.mxu0 0
        %2794 = vmatprep.subr.bf16.mxu0 0
        %2795 = vmatpush1.bf16.xpose.msra.mxu0 0
        %2796 = vmatprep.subr.bf16.mxu0 0
        %2797 = vmatpush1.bf16.xpose.msra.mxu0 0
        %2798 = vmatprep.subr.bf16.mxu0 0
        %2799 = vmatpush1.bf16.xpose.msra.mxu0 0
        %2800 = vmatprep.subr.bf16.mxu0 0
        %2801 = vmatpush1.bf16.xpose.msra.mxu0 0
        %2802 = vmatprep.subr.bf16.mxu0 0
        %2803 = vmatpush1.bf16.xpose.msra.mxu0 0
        %2804 = vmatprep.mubr.bf16.mxu0 0
        %2805 = vmatmul.mubr.bf16.gmra.mrb[0].mxu0 %v2767
        %v2806 = vpop.f32.mrb[0].mxu0
        %v2807 = vadd.f32 %v1091, %v2806
        %v2808 = vpop.f32.mrb[0].mxu0
        %v2809 = vpop.f32.mrb[0].mxu0
        %v2810 = vpop.f32.mrb[0].mxu0
        %2811 = vdwg.mxu0
        %v2813 = vsel %vm1239, %v2551, 0
        %v2816 = vsel %vm1239, %v2579, 0
        %2818 = vmatprep.subr.bf16.mxu0 0
        %2819 = vmatpush1.bf16.xpose.msra.mxu0 %v2816
        %2820 = vmatprep.subr.bf16.mxu0 0
        %2821 = vmatpush1.bf16.xpose.msra.mxu0 0
        %2822 = vmatprep.subr.bf16.mxu0 0
        %2823 = vmatpush1.bf16.xpose.msra.mxu0 0
        %2824 = vmatprep.subr.bf16.mxu0 0
        %2825 = vmatpush1.bf16.xpose.msra.mxu0 0
        %2826 = vmatprep.subr.bf16.mxu0 0
        %2827 = vmatpush1.bf16.xpose.msra.mxu0 0
        %2828 = vmatprep.subr.bf16.mxu0 0
        %2829 = vmatpush1.bf16.xpose.msra.mxu0 0
        %2830 = vmatprep.subr.bf16.mxu0 0
        %2831 = vmatpush1.bf16.xpose.msra.mxu0 0
        %2832 = vmatprep.subr.bf16.mxu0 0
        %2833 = vmatpush1.bf16.xpose.msra.mxu0 0
        %2834 = vmatprep.subr.bf16.mxu0 0
        %2835 = vmatpush1.bf16.xpose.msra.mxu0 0
        %2836 = vmatprep.subr.bf16.mxu0 0
        %2837 = vmatpush1.bf16.xpose.msra.mxu0 0
        %2838 = vmatprep.subr.bf16.mxu0 0
        %2839 = vmatpush1.bf16.xpose.msra.mxu0 0
        %2840 = vmatprep.subr.bf16.mxu0 0
        %2841 = vmatpush1.bf16.xpose.msra.mxu0 0
        %2842 = vmatprep.subr.bf16.mxu0 0
        %2843 = vmatpush1.bf16.xpose.msra.mxu0 0
        %2844 = vmatprep.subr.bf16.mxu0 0
        %2845 = vmatpush1.bf16.xpose.msra.mxu0 0
        %2846 = vmatprep.subr.bf16.mxu0 0
        %2847 = vmatpush1.bf16.xpose.msra.mxu0 0
        %2848 = vmatprep.subr.bf16.mxu0 0
        %2849 = vmatpush1.bf16.xpose.msra.mxu0 0
        %2850 = vmatprep.mubr.bf16.mxu0 0
        %2851 = vmatmul.mubr.bf16.gmra.mrb[0].mxu0 %v2813
        %v2852 = vpop.f32.mrb[0].mxu0
        %v2853 = vadd.f32 %v1092, %v2852
        %v2854 = vpop.f32.mrb[0].mxu0
        %v2855 = vpop.f32.mrb[0].mxu0
        %v2856 = vpop.f32.mrb[0].mxu0
        %2857 = vdwg.mxu0
        %v2859 = vsel %vm1239, %v2552, 0
        %v2862 = vsel %vm1239, %v2580, 0
        %2864 = vmatprep.subr.bf16.mxu0 0
        %2865 = vmatpush1.bf16.xpose.msra.mxu0 %v2862
        %2866 = vmatprep.subr.bf16.mxu0 0
        %2867 = vmatpush1.bf16.xpose.msra.mxu0 0
        %2868 = vmatprep.subr.bf16.mxu0 0
        %2869 = vmatpush1.bf16.xpose.msra.mxu0 0
        %2870 = vmatprep.subr.bf16.mxu0 0
        %2871 = vmatpush1.bf16.xpose.msra.mxu0 0
        %2872 = vmatprep.subr.bf16.mxu0 0
        %2873 = vmatpush1.bf16.xpose.msra.mxu0 0
        %2874 = vmatprep.subr.bf16.mxu0 0
        %2875 = vmatpush1.bf16.xpose.msra.mxu0 0
        %2876 = vmatprep.subr.bf16.mxu0 0
        %2877 = vmatpush1.bf16.xpose.msra.mxu0 0
        %2878 = vmatprep.subr.bf16.mxu0 0
        %2879 = vmatpush1.bf16.xpose.msra.mxu0 0
        %2880 = vmatprep.subr.bf16.mxu0 0
        %2881 = vmatpush1.bf16.xpose.msra.mxu0 0
        %2882 = vmatprep.subr.bf16.mxu0 0
        %2883 = vmatpush1.bf16.xpose.msra.mxu0 0
        %2884 = vmatprep.subr.bf16.mxu0 0
        %2885 = vmatpush1.bf16.xpose.msra.mxu0 0
        %2886 = vmatprep.subr.bf16.mxu0 0
        %2887 = vmatpush1.bf16.xpose.msra.mxu0 0
        %2888 = vmatprep.subr.bf16.mxu0 0
        %2889 = vmatpush1.bf16.xpose.msra.mxu0 0
        %2890 = vmatprep.subr.bf16.mxu0 0
        %2891 = vmatpush1.bf16.xpose.msra.mxu0 0
        %2892 = vmatprep.subr.bf16.mxu0 0
        %2893 = vmatpush1.bf16.xpose.msra.mxu0 0
        %2894 = vmatprep.subr.bf16.mxu0 0
        %2895 = vmatpush1.bf16.xpose.msra.mxu0 0
        %2896 = vmatprep.mubr.bf16.mxu0 0
        %2897 = vmatmul.mubr.bf16.gmra.mrb[0].mxu0 %v2859
        %v2898 = vpop.f32.mrb[0].mxu0
        %v2899 = vadd.f32 %v1091, %v2898
        %v2900 = vpop.f32.mrb[0].mxu0
        %v2901 = vpop.f32.mrb[0].mxu0
        %v2902 = vpop.f32.mrb[0].mxu0
        %2903 = vdwg.mxu0
        %v2905 = vsel %vm1239, %v2553, 0
        %v2908 = vsel %vm1239, %v2581, 0
        %2910 = vmatprep.subr.bf16.mxu0 0
        %2911 = vmatpush1.bf16.xpose.msra.mxu0 %v2908
        %2912 = vmatprep.subr.bf16.mxu0 0
        %2913 = vmatpush1.bf16.xpose.msra.mxu0 0
        %2914 = vmatprep.subr.bf16.mxu0 0
        %2915 = vmatpush1.bf16.xpose.msra.mxu0 0
        %2916 = vmatprep.subr.bf16.mxu0 0
        %2917 = vmatpush1.bf16.xpose.msra.mxu0 0
        %2918 = vmatprep.subr.bf16.mxu0 0
        %2919 = vmatpush1.bf16.xpose.msra.mxu0 0
        %2920 = vmatprep.subr.bf16.mxu0 0
        %2921 = vmatpush1.bf16.xpose.msra.mxu0 0
        %2922 = vmatprep.subr.bf16.mxu0 0
        %2923 = vmatpush1.bf16.xpose.msra.mxu0 0
        %2924 = vmatprep.subr.bf16.mxu0 0
        %2925 = vmatpush1.bf16.xpose.msra.mxu0 0
        %2926 = vmatprep.subr.bf16.mxu0 0
        %2927 = vmatpush1.bf16.xpose.msra.mxu0 0
        %2928 = vmatprep.subr.bf16.mxu0 0
        %2929 = vmatpush1.bf16.xpose.msra.mxu0 0
        %2930 = vmatprep.subr.bf16.mxu0 0
        %2931 = vmatpush1.bf16.xpose.msra.mxu0 0
        %2932 = vmatprep.subr.bf16.mxu0 0
        %2933 = vmatpush1.bf16.xpose.msra.mxu0 0
        %2934 = vmatprep.subr.bf16.mxu0 0
        %2935 = vmatpush1.bf16.xpose.msra.mxu0 0
        %2936 = vmatprep.subr.bf16.mxu0 0
        %2937 = vmatpush1.bf16.xpose.msra.mxu0 0
        %2938 = vmatprep.subr.bf16.mxu0 0
        %2939 = vmatpush1.bf16.xpose.msra.mxu0 0
        %2940 = vmatprep.subr.bf16.mxu0 0
        %2941 = vmatpush1.bf16.xpose.msra.mxu0 0
        %2942 = vmatprep.mubr.bf16.mxu0 0
        %2943 = vmatmul.mubr.bf16.gmra.mrb[0].mxu0 %v2905
        %v2944 = vpop.f32.mrb[0].mxu0
        %v2945 = vadd.f32 %v1092, %v2944
        %v2946 = vpop.f32.mrb[0].mxu0
        %v2947 = vpop.f32.mrb[0].mxu0
        %v2948 = vpop.f32.mrb[0].mxu0
        %2949 = vdwg.mxu0
        %v2950 = vsel %vm1239, %v2623, -inf
        %2951 = vmax.xlane.f32.xlu0 %v2950
        %v2952 = vpop.xlane.xlu0 %2951
        %v2953 = vsel %vm1239, %v2669, -inf
        %2954 = vmax.xlane.f32.xlu0 %v2953
        %v2955 = vpop.xlane.xlu0 %2954
        %v2956 = vsel %vm1239, %v2715, -inf
        %2957 = vmax.xlane.f32.xlu0 %v2956
        %v2958 = vpop.xlane.xlu0 %2957
        %v2959 = vsel %vm1239, %v2761, -inf
        %2960 = vmax.xlane.f32.xlu0 %v2959
        %v2961 = vpop.xlane.xlu0 %2960
        %v2962 = vsel %vm1239, %v2807, -inf
        %2963 = vmax.xlane.f32.xlu0 %v2962
        %v2964 = vpop.xlane.xlu0 %2963
        %v2965 = vsel %vm1239, %v2853, -inf
        %2966 = vmax.xlane.f32.xlu0 %v2965
        %v2967 = vpop.xlane.xlu0 %2966
        %v2968 = vsel %vm1239, %v2899, -inf
        %2969 = vmax.xlane.f32.xlu0 %v2968
        %v2970 = vpop.xlane.xlu0 %2969
        %v2971 = vsel %vm1239, %v2945, -inf
        %2972 = vmax.xlane.f32.xlu0 %v2971
        %v2973 = vpop.xlane.xlu0 %2972
        %v2974 = vsub.f32 %v2623, %v2952
        %v2975 = vsub.f32 %v2669, %v2955
        %v2976 = vsub.f32 %v2715, %v2958
        %v2977 = vsub.f32 %v2761, %v2961
        %v2978 = vsub.f32 %v2807, %v2964
        %v2979 = vsub.f32 %v2853, %v2967
        %v2980 = vsub.f32 %v2899, %v2970
        %v2981 = vsub.f32 %v2945, %v2973
        %v2982 = vmul.f32 %v2974, 1.442695
        %v2983 = vpow.pop %v2982
        %v2984 = vmul.f32 %v2975, 1.442695
        %v2985 = vpow.pop %v2984
        %v2986 = vmul.f32 %v2976, 1.442695
        %v2987 = vpow.pop %v2986
        %v2988 = vmul.f32 %v2977, 1.442695
        %v2989 = vpow.pop %v2988
        %v2990 = vmul.f32 %v2978, 1.442695
        %v2991 = vpow.pop %v2990
        %v2992 = vmul.f32 %v2979, 1.442695
        %v2993 = vpow.pop %v2992
        %v2994 = vmul.f32 %v2980, 1.442695
        %v2995 = vpow.pop %v2994
        %v2996 = vmul.f32 %v2981, 1.442695
        %v2997 = vpow.pop %v2996
        %v2998 = vsel %vm1239, %v2983, 0.0
        %2999 = vadd.xlane.f32.xlu0 %v2998
        %v3000 = vpop.xlane.xlu0 %2999
        %v3001 = vsel %vm1239, %v2985, 0.0
        %3002 = vadd.xlane.f32.xlu0 %v3001
        %v3003 = vpop.xlane.xlu0 %3002
        %v3004 = vsel %vm1239, %v2987, 0.0
        %3005 = vadd.xlane.f32.xlu0 %v3004
        %v3006 = vpop.xlane.xlu0 %3005
        %v3007 = vsel %vm1239, %v2989, 0.0
        %3008 = vadd.xlane.f32.xlu0 %v3007
        %v3009 = vpop.xlane.xlu0 %3008
        %v3010 = vsel %vm1239, %v2991, 0.0
        %3011 = vadd.xlane.f32.xlu0 %v3010
        %v3012 = vpop.xlane.xlu0 %3011
        %v3013 = vsel %vm1239, %v2993, 0.0
        %3014 = vadd.xlane.f32.xlu0 %v3013
        %v3015 = vpop.xlane.xlu0 %3014
        %v3016 = vsel %vm1239, %v2995, 0.0
        %3017 = vadd.xlane.f32.xlu0 %v3016
        %v3018 = vpop.xlane.xlu0 %3017
        %v3019 = vsel %vm1239, %v2997, 0.0
        %3020 = vadd.xlane.f32.xlu0 %v3019
        %v3021 = vpop.xlane.xlu0 %3020
        %v3022 = vrcp.pop %v3000
        %v3023 = vrcp.pop %v3003
        %v3024 = vrcp.pop %v3006
        %v3025 = vrcp.pop %v3009
        %v3026 = vrcp.pop %v3012
        %v3027 = vrcp.pop %v3015
        %v3028 = vrcp.pop %v3018
        %v3029 = vrcp.pop %v3021
        %v3030 = vmul.f32 %v2983, %v3022
        %v3031 = vmul.f32 %v2985, %v3023
        %v3032 = vmul.f32 %v2987, %v3024
        %v3033 = vmul.f32 %v2989, %v3025
        %v3034 = vmul.f32 %v2991, %v3026
        %v3035 = vmul.f32 %v2993, %v3027
        %v3036 = vmul.f32 %v2995, %v3028
        %v3037 = vmul.f32 %v2997, %v3029
        %v3038 = vpack.c.bf16 %v3030, %v3030
        %v3039 = vpack.c.bf16 %v3031, %v3031
        %v3040 = vpack.c.bf16 %v3032, %v3032
        %v3041 = vpack.c.bf16 %v3033, %v3033
        %v3042 = vpack.c.bf16 %v3034, %v3034
        %v3043 = vpack.c.bf16 %v3035, %v3035
        %v3044 = vpack.c.bf16 %v3036, %v3036
        %v3045 = vpack.c.bf16 %v3037, %v3037
        %3047 = vrot.lane.b32.xlu0 %v2574, 96
        %v3048 = vpop.permute.xlu0 %3047
        %v3050 = vsel %vm1239, %v3038, 0
        %v3053 = vsel %vm1730, %v3048, 0
        %3055 = vmatprep.subr.bf16.mxu0 0
        %3056 = vmatpush1.bf16.msra.mxu0 %v3053
        %3057 = vmatprep.subr.bf16.mxu0 0
        %3058 = vmatpush1.bf16.msra.mxu0 0
        %3059 = vmatprep.subr.bf16.mxu0 0
        %3060 = vmatpush1.bf16.msra.mxu0 0
        %3061 = vmatprep.subr.bf16.mxu0 0
        %3062 = vmatpush1.bf16.msra.mxu0 0
        %3063 = vmatprep.subr.bf16.mxu0 0
        %3064 = vmatpush1.bf16.msra.mxu0 0
        %3065 = vmatprep.subr.bf16.mxu0 0
        %3066 = vmatpush1.bf16.msra.mxu0 0
        %3067 = vmatprep.subr.bf16.mxu0 0
        %3068 = vmatpush1.bf16.msra.mxu0 0
        %3069 = vmatprep.subr.bf16.mxu0 0
        %3070 = vmatpush1.bf16.msra.mxu0 0
        %3071 = vmatprep.subr.bf16.mxu0 0
        %3072 = vmatpush1.bf16.msra.mxu0 0
        %3073 = vmatprep.subr.bf16.mxu0 0
        %3074 = vmatpush1.bf16.msra.mxu0 0
        %3075 = vmatprep.subr.bf16.mxu0 0
        %3076 = vmatpush1.bf16.msra.mxu0 0
        %3077 = vmatprep.subr.bf16.mxu0 0
        %3078 = vmatpush1.bf16.msra.mxu0 0
        %3079 = vmatprep.subr.bf16.mxu0 0
        %3080 = vmatpush1.bf16.msra.mxu0 0
        %3081 = vmatprep.subr.bf16.mxu0 0
        %3082 = vmatpush1.bf16.msra.mxu0 0
        %3083 = vmatprep.subr.bf16.mxu0 0
        %3084 = vmatpush1.bf16.msra.mxu0 0
        %3085 = vmatprep.subr.bf16.mxu0 0
        %3086 = vmatpush1.bf16.msra.mxu0 0
        %3087 = vmatprep.mubr.bf16.mxu0 0
        %3088 = vmatmul.mubr.bf16.gmra.mrb[0].mxu0 %v3050
        %v3089 = vpop.f32.mrb[0].mxu0
        %v3090 = vadd.f32 0.0, %v3089
        %v3091 = vpop.f32.mrb[0].mxu0
        %v3092 = vpop.f32.mrb[0].mxu0
        %v3093 = vpop.f32.mrb[0].mxu0
        %3094 = vdwg.mxu0
        %3096 = vrot.lane.b32.xlu0 %v2575, 96
        %v3097 = vpop.permute.xlu0 %3096
        %v3099 = vsel %vm1239, %v3039, 0
        %v3102 = vsel %vm1730, %v3097, 0
        %3104 = vmatprep.subr.bf16.mxu0 0
        %3105 = vmatpush1.bf16.msra.mxu0 %v3102
        %3106 = vmatprep.subr.bf16.mxu0 0
        %3107 = vmatpush1.bf16.msra.mxu0 0
        %3108 = vmatprep.subr.bf16.mxu0 0
        %3109 = vmatpush1.bf16.msra.mxu0 0
        %3110 = vmatprep.subr.bf16.mxu0 0
        %3111 = vmatpush1.bf16.msra.mxu0 0
        %3112 = vmatprep.subr.bf16.mxu0 0
        %3113 = vmatpush1.bf16.msra.mxu0 0
        %3114 = vmatprep.subr.bf16.mxu0 0
        %3115 = vmatpush1.bf16.msra.mxu0 0
        %3116 = vmatprep.subr.bf16.mxu0 0
        %3117 = vmatpush1.bf16.msra.mxu0 0
        %3118 = vmatprep.subr.bf16.mxu0 0
        %3119 = vmatpush1.bf16.msra.mxu0 0
        %3120 = vmatprep.subr.bf16.mxu0 0
        %3121 = vmatpush1.bf16.msra.mxu0 0
        %3122 = vmatprep.subr.bf16.mxu0 0
        %3123 = vmatpush1.bf16.msra.mxu0 0
        %3124 = vmatprep.subr.bf16.mxu0 0
        %3125 = vmatpush1.bf16.msra.mxu0 0
        %3126 = vmatprep.subr.bf16.mxu0 0
        %3127 = vmatpush1.bf16.msra.mxu0 0
        %3128 = vmatprep.subr.bf16.mxu0 0
        %3129 = vmatpush1.bf16.msra.mxu0 0
        %3130 = vmatprep.subr.bf16.mxu0 0
        %3131 = vmatpush1.bf16.msra.mxu0 0
        %3132 = vmatprep.subr.bf16.mxu0 0
        %3133 = vmatpush1.bf16.msra.mxu0 0
        %3134 = vmatprep.subr.bf16.mxu0 0
        %3135 = vmatpush1.bf16.msra.mxu0 0
        %3136 = vmatprep.mubr.bf16.mxu0 0
        %3137 = vmatmul.mubr.bf16.gmra.mrb[0].mxu0 %v3099
        %v3138 = vpop.f32.mrb[0].mxu0
        %v3139 = vadd.f32 0.0, %v3138
        %v3140 = vpop.f32.mrb[0].mxu0
        %v3141 = vpop.f32.mrb[0].mxu0
        %v3142 = vpop.f32.mrb[0].mxu0
        %3143 = vdwg.mxu0
        %3145 = vrot.lane.b32.xlu0 %v2576, 96
        %v3146 = vpop.permute.xlu0 %3145
        %v3148 = vsel %vm1239, %v3040, 0
        %v3151 = vsel %vm1730, %v3146, 0
        %3153 = vmatprep.subr.bf16.mxu0 0
        %3154 = vmatpush1.bf16.msra.mxu0 %v3151
        %3155 = vmatprep.subr.bf16.mxu0 0
        %3156 = vmatpush1.bf16.msra.mxu0 0
        %3157 = vmatprep.subr.bf16.mxu0 0
        %3158 = vmatpush1.bf16.msra.mxu0 0
        %3159 = vmatprep.subr.bf16.mxu0 0
        %3160 = vmatpush1.bf16.msra.mxu0 0
        %3161 = vmatprep.subr.bf16.mxu0 0
        %3162 = vmatpush1.bf16.msra.mxu0 0
        %3163 = vmatprep.subr.bf16.mxu0 0
        %3164 = vmatpush1.bf16.msra.mxu0 0
        %3165 = vmatprep.subr.bf16.mxu0 0
        %3166 = vmatpush1.bf16.msra.mxu0 0
        %3167 = vmatprep.subr.bf16.mxu0 0
        %3168 = vmatpush1.bf16.msra.mxu0 0
        %3169 = vmatprep.subr.bf16.mxu0 0
        %3170 = vmatpush1.bf16.msra.mxu0 0
        %3171 = vmatprep.subr.bf16.mxu0 0
        %3172 = vmatpush1.bf16.msra.mxu0 0
        %3173 = vmatprep.subr.bf16.mxu0 0
        %3174 = vmatpush1.bf16.msra.mxu0 0
        %3175 = vmatprep.subr.bf16.mxu0 0
        %3176 = vmatpush1.bf16.msra.mxu0 0
        %3177 = vmatprep.subr.bf16.mxu0 0
        %3178 = vmatpush1.bf16.msra.mxu0 0
        %3179 = vmatprep.subr.bf16.mxu0 0
        %3180 = vmatpush1.bf16.msra.mxu0 0
        %3181 = vmatprep.subr.bf16.mxu0 0
        %3182 = vmatpush1.bf16.msra.mxu0 0
        %3183 = vmatprep.subr.bf16.mxu0 0
        %3184 = vmatpush1.bf16.msra.mxu0 0
        %3185 = vmatprep.mubr.bf16.mxu0 0
        %3186 = vmatmul.mubr.bf16.gmra.mrb[0].mxu0 %v3148
        %v3187 = vpop.f32.mrb[0].mxu0
        %v3188 = vadd.f32 0.0, %v3187
        %v3189 = vpop.f32.mrb[0].mxu0
        %v3190 = vpop.f32.mrb[0].mxu0
        %v3191 = vpop.f32.mrb[0].mxu0
        %3192 = vdwg.mxu0
        %3194 = vrot.lane.b32.xlu0 %v2577, 96
        %v3195 = vpop.permute.xlu0 %3194
        %v3197 = vsel %vm1239, %v3041, 0
        %v3200 = vsel %vm1730, %v3195, 0
        %3202 = vmatprep.subr.bf16.mxu0 0
        %3203 = vmatpush1.bf16.msra.mxu0 %v3200
        %3204 = vmatprep.subr.bf16.mxu0 0
        %3205 = vmatpush1.bf16.msra.mxu0 0
        %3206 = vmatprep.subr.bf16.mxu0 0
        %3207 = vmatpush1.bf16.msra.mxu0 0
        %3208 = vmatprep.subr.bf16.mxu0 0
        %3209 = vmatpush1.bf16.msra.mxu0 0
        %3210 = vmatprep.subr.bf16.mxu0 0
        %3211 = vmatpush1.bf16.msra.mxu0 0
        %3212 = vmatprep.subr.bf16.mxu0 0
        %3213 = vmatpush1.bf16.msra.mxu0 0
        %3214 = vmatprep.subr.bf16.mxu0 0
        %3215 = vmatpush1.bf16.msra.mxu0 0
        %3216 = vmatprep.subr.bf16.mxu0 0
        %3217 = vmatpush1.bf16.msra.mxu0 0
        %3218 = vmatprep.subr.bf16.mxu0 0
        %3219 = vmatpush1.bf16.msra.mxu0 0
        %3220 = vmatprep.subr.bf16.mxu0 0
        %3221 = vmatpush1.bf16.msra.mxu0 0
        %3222 = vmatprep.subr.bf16.mxu0 0
        %3223 = vmatpush1.bf16.msra.mxu0 0
        %3224 = vmatprep.subr.bf16.mxu0 0
        %3225 = vmatpush1.bf16.msra.mxu0 0
        %3226 = vmatprep.subr.bf16.mxu0 0
        %3227 = vmatpush1.bf16.msra.mxu0 0
        %3228 = vmatprep.subr.bf16.mxu0 0
        %3229 = vmatpush1.bf16.msra.mxu0 0
        %3230 = vmatprep.subr.bf16.mxu0 0
        %3231 = vmatpush1.bf16.msra.mxu0 0
        %3232 = vmatprep.subr.bf16.mxu0 0
        %3233 = vmatpush1.bf16.msra.mxu0 0
        %3234 = vmatprep.mubr.bf16.mxu0 0
        %3235 = vmatmul.mubr.bf16.gmra.mrb[0].mxu0 %v3197
        %v3236 = vpop.f32.mrb[0].mxu0
        %v3237 = vadd.f32 0.0, %v3236
        %v3238 = vpop.f32.mrb[0].mxu0
        %v3239 = vpop.f32.mrb[0].mxu0
        %v3240 = vpop.f32.mrb[0].mxu0
        %3241 = vdwg.mxu0
        %3243 = vrot.lane.b32.xlu0 %v2578, 96
        %v3244 = vpop.permute.xlu0 %3243
        %v3246 = vsel %vm1239, %v3042, 0
        %v3249 = vsel %vm1730, %v3244, 0
        %3251 = vmatprep.subr.bf16.mxu0 0
        %3252 = vmatpush1.bf16.msra.mxu0 %v3249
        %3253 = vmatprep.subr.bf16.mxu0 0
        %3254 = vmatpush1.bf16.msra.mxu0 0
        %3255 = vmatprep.subr.bf16.mxu0 0
        %3256 = vmatpush1.bf16.msra.mxu0 0
        %3257 = vmatprep.subr.bf16.mxu0 0
        %3258 = vmatpush1.bf16.msra.mxu0 0
        %3259 = vmatprep.subr.bf16.mxu0 0
        %3260 = vmatpush1.bf16.msra.mxu0 0
        %3261 = vmatprep.subr.bf16.mxu0 0
        %3262 = vmatpush1.bf16.msra.mxu0 0
        %3263 = vmatprep.subr.bf16.mxu0 0
        %3264 = vmatpush1.bf16.msra.mxu0 0
        %3265 = vmatprep.subr.bf16.mxu0 0
        %3266 = vmatpush1.bf16.msra.mxu0 0
        %3267 = vmatprep.subr.bf16.mxu0 0
        %3268 = vmatpush1.bf16.msra.mxu0 0
        %3269 = vmatprep.subr.bf16.mxu0 0
        %3270 = vmatpush1.bf16.msra.mxu0 0
        %3271 = vmatprep.subr.bf16.mxu0 0
        %3272 = vmatpush1.bf16.msra.mxu0 0
        %3273 = vmatprep.subr.bf16.mxu0 0
        %3274 = vmatpush1.bf16.msra.mxu0 0
        %3275 = vmatprep.subr.bf16.mxu0 0
        %3276 = vmatpush1.bf16.msra.mxu0 0
        %3277 = vmatprep.subr.bf16.mxu0 0
        %3278 = vmatpush1.bf16.msra.mxu0 0
        %3279 = vmatprep.subr.bf16.mxu0 0
        %3280 = vmatpush1.bf16.msra.mxu0 0
        %3281 = vmatprep.subr.bf16.mxu0 0
        %3282 = vmatpush1.bf16.msra.mxu0 0
        %3283 = vmatprep.mubr.bf16.mxu0 0
        %3284 = vmatmul.mubr.bf16.gmra.mrb[0].mxu0 %v3246
        %v3285 = vpop.f32.mrb[0].mxu0
        %v3286 = vadd.f32 0.0, %v3285
        %v3287 = vpop.f32.mrb[0].mxu0
        %v3288 = vpop.f32.mrb[0].mxu0
        %v3289 = vpop.f32.mrb[0].mxu0
        %3290 = vdwg.mxu0
        %3292 = vrot.lane.b32.xlu0 %v2579, 96
        %v3293 = vpop.permute.xlu0 %3292
        %v3295 = vsel %vm1239, %v3043, 0
        %v3298 = vsel %vm1730, %v3293, 0
        %3300 = vmatprep.subr.bf16.mxu0 0
        %3301 = vmatpush1.bf16.msra.mxu0 %v3298
        %3302 = vmatprep.subr.bf16.mxu0 0
        %3303 = vmatpush1.bf16.msra.mxu0 0
        %3304 = vmatprep.subr.bf16.mxu0 0
        %3305 = vmatpush1.bf16.msra.mxu0 0
        %3306 = vmatprep.subr.bf16.mxu0 0
        %3307 = vmatpush1.bf16.msra.mxu0 0
        %3308 = vmatprep.subr.bf16.mxu0 0
        %3309 = vmatpush1.bf16.msra.mxu0 0
        %3310 = vmatprep.subr.bf16.mxu0 0
        %3311 = vmatpush1.bf16.msra.mxu0 0
        %3312 = vmatprep.subr.bf16.mxu0 0
        %3313 = vmatpush1.bf16.msra.mxu0 0
        %3314 = vmatprep.subr.bf16.mxu0 0
        %3315 = vmatpush1.bf16.msra.mxu0 0
        %3316 = vmatprep.subr.bf16.mxu0 0
        %3317 = vmatpush1.bf16.msra.mxu0 0
        %3318 = vmatprep.subr.bf16.mxu0 0
        %3319 = vmatpush1.bf16.msra.mxu0 0
        %3320 = vmatprep.subr.bf16.mxu0 0
        %3321 = vmatpush1.bf16.msra.mxu0 0
        %3322 = vmatprep.subr.bf16.mxu0 0
        %3323 = vmatpush1.bf16.msra.mxu0 0
        %3324 = vmatprep.subr.bf16.mxu0 0
        %3325 = vmatpush1.bf16.msra.mxu0 0
        %3326 = vmatprep.subr.bf16.mxu0 0
        %3327 = vmatpush1.bf16.msra.mxu0 0
        %3328 = vmatprep.subr.bf16.mxu0 0
        %3329 = vmatpush1.bf16.msra.mxu0 0
        %3330 = vmatprep.subr.bf16.mxu0 0
        %3331 = vmatpush1.bf16.msra.mxu0 0
        %3332 = vmatprep.mubr.bf16.mxu0 0
        %3333 = vmatmul.mubr.bf16.gmra.mrb[0].mxu0 %v3295
        %v3334 = vpop.f32.mrb[0].mxu0
        %v3335 = vadd.f32 0.0, %v3334
        %v3336 = vpop.f32.mrb[0].mxu0
        %v3337 = vpop.f32.mrb[0].mxu0
        %v3338 = vpop.f32.mrb[0].mxu0
        %3339 = vdwg.mxu0
        %3341 = vrot.lane.b32.xlu0 %v2580, 96
        %v3342 = vpop.permute.xlu0 %3341
        %v3344 = vsel %vm1239, %v3044, 0
        %v3347 = vsel %vm1730, %v3342, 0
        %3349 = vmatprep.subr.bf16.mxu0 0
        %3350 = vmatpush1.bf16.msra.mxu0 %v3347
        %3351 = vmatprep.subr.bf16.mxu0 0
        %3352 = vmatpush1.bf16.msra.mxu0 0
        %3353 = vmatprep.subr.bf16.mxu0 0
        %3354 = vmatpush1.bf16.msra.mxu0 0
        %3355 = vmatprep.subr.bf16.mxu0 0
        %3356 = vmatpush1.bf16.msra.mxu0 0
        %3357 = vmatprep.subr.bf16.mxu0 0
        %3358 = vmatpush1.bf16.msra.mxu0 0
        %3359 = vmatprep.subr.bf16.mxu0 0
        %3360 = vmatpush1.bf16.msra.mxu0 0
        %3361 = vmatprep.subr.bf16.mxu0 0
        %3362 = vmatpush1.bf16.msra.mxu0 0
        %3363 = vmatprep.subr.bf16.mxu0 0
        %3364 = vmatpush1.bf16.msra.mxu0 0
        %3365 = vmatprep.subr.bf16.mxu0 0
        %3366 = vmatpush1.bf16.msra.mxu0 0
        %3367 = vmatprep.subr.bf16.mxu0 0
        %3368 = vmatpush1.bf16.msra.mxu0 0
        %3369 = vmatprep.subr.bf16.mxu0 0
        %3370 = vmatpush1.bf16.msra.mxu0 0
        %3371 = vmatprep.subr.bf16.mxu0 0
        %3372 = vmatpush1.bf16.msra.mxu0 0
        %3373 = vmatprep.subr.bf16.mxu0 0
        %3374 = vmatpush1.bf16.msra.mxu0 0
        %3375 = vmatprep.subr.bf16.mxu0 0
        %3376 = vmatpush1.bf16.msra.mxu0 0
        %3377 = vmatprep.subr.bf16.mxu0 0
        %3378 = vmatpush1.bf16.msra.mxu0 0
        %3379 = vmatprep.subr.bf16.mxu0 0
        %3380 = vmatpush1.bf16.msra.mxu0 0
        %3381 = vmatprep.mubr.bf16.mxu0 0
        %3382 = vmatmul.mubr.bf16.gmra.mrb[0].mxu0 %v3344
        %v3383 = vpop.f32.mrb[0].mxu0
        %v3384 = vadd.f32 0.0, %v3383
        %v3385 = vpop.f32.mrb[0].mxu0
        %v3386 = vpop.f32.mrb[0].mxu0
        %v3387 = vpop.f32.mrb[0].mxu0
        %3388 = vdwg.mxu0
        %3390 = vrot.lane.b32.xlu0 %v2581, 96
        %v3391 = vpop.permute.xlu0 %3390
        %v3393 = vsel %vm1239, %v3045, 0
        %v3396 = vsel %vm1730, %v3391, 0
        %3398 = vmatprep.subr.bf16.mxu0 0
        %3399 = vmatpush1.bf16.msra.mxu0 %v3396
        %3400 = vmatprep.subr.bf16.mxu0 0
        %3401 = vmatpush1.bf16.msra.mxu0 0
        %3402 = vmatprep.subr.bf16.mxu0 0
        %3403 = vmatpush1.bf16.msra.mxu0 0
        %3404 = vmatprep.subr.bf16.mxu0 0
        %3405 = vmatpush1.bf16.msra.mxu0 0
        %3406 = vmatprep.subr.bf16.mxu0 0
        %3407 = vmatpush1.bf16.msra.mxu0 0
        %3408 = vmatprep.subr.bf16.mxu0 0
        %3409 = vmatpush1.bf16.msra.mxu0 0
        %3410 = vmatprep.subr.bf16.mxu0 0
        %3411 = vmatpush1.bf16.msra.mxu0 0
        %3412 = vmatprep.subr.bf16.mxu0 0
        %3413 = vmatpush1.bf16.msra.mxu0 0
        %3414 = vmatprep.subr.bf16.mxu0 0
        %3415 = vmatpush1.bf16.msra.mxu0 0
        %3416 = vmatprep.subr.bf16.mxu0 0
        %3417 = vmatpush1.bf16.msra.mxu0 0
        %3418 = vmatprep.subr.bf16.mxu0 0
        %3419 = vmatpush1.bf16.msra.mxu0 0
        %3420 = vmatprep.subr.bf16.mxu0 0
        %3421 = vmatpush1.bf16.msra.mxu0 0
        %3422 = vmatprep.subr.bf16.mxu0 0
        %3423 = vmatpush1.bf16.msra.mxu0 0
        %3424 = vmatprep.subr.bf16.mxu0 0
        %3425 = vmatpush1.bf16.msra.mxu0 0
        %3426 = vmatprep.subr.bf16.mxu0 0
        %3427 = vmatpush1.bf16.msra.mxu0 0
        %3428 = vmatprep.subr.bf16.mxu0 0
        %3429 = vmatpush1.bf16.msra.mxu0 0
        %3430 = vmatprep.mubr.bf16.mxu0 0
        %3431 = vmatmul.mubr.bf16.gmra.mrb[0].mxu0 %v3393
        %v3432 = vpop.f32.mrb[0].mxu0
        %v3433 = vadd.f32 0.0, %v3432
        %v3434 = vpop.f32.mrb[0].mxu0
        %v3435 = vpop.f32.mrb[0].mxu0
        %v3436 = vpop.f32.mrb[0].mxu0
        %3437 = vdwg.mxu0
        %3438 = vrot.lane.b32.xlu0 %v2448, 96
        %v3439 = vpop.permute.xlu0 %3438
        %3440 = vrot.lane.b32.xlu0 %v2451, 96
        %v3441 = vpop.permute.xlu0 %3440
        %3442 = vrot.lane.b32.xlu0 %v2529, 96
        %v3443 = vpop.permute.xlu0 %3442
        %3444 = vrot.lane.b32.xlu0 %v2531, 96
        %v3445 = vpop.permute.xlu0 %3444
        %3446 = vrot.lane.b32.xlu0 %v2535, 96
        %v3447 = vpop.permute.xlu0 %3446
        %3448 = vrot.lane.b32.xlu0 %v2537, 96
        %v3449 = vpop.permute.xlu0 %3448
        %3450 = vrot.lane.b32.xlu0 %v2541, 96
        %v3451 = vpop.permute.xlu0 %3450
        %3452 = vrot.lane.b32.xlu0 %v2543, 96
        %v3453 = vpop.permute.xlu0 %3452
        %v3462 = vmul.f32 %v3090, %v3439
        %v3463 = vmul.f32 %v3139, %v3441
        %v3464 = vmul.f32 %v3188, %v3443
        %v3465 = vmul.f32 %v3237, %v3445
        %v3466 = vmul.f32 %v3286, %v3447
        %v3467 = vmul.f32 %v3335, %v3449
        %v3468 = vmul.f32 %v3384, %v3451
        %v3469 = vmul.f32 %v3433, %v3453
        %v3470 = vpack.c.bf16 %v3463, %v3462
        %v3471 = vpack.c.bf16 %v3465, %v3464
        %v3473 = vsel %vm1239, %v3471, 0
        %v3476 = vsel %vm1730, %v2522, 0
        %3478 = vmatprep.subr.bf16.mxu0 0
        %3479 = vmatpush1.bf16.msra.mxu0 %v3476
        %3480 = vmatprep.subr.bf16.mxu0 0
        %3481 = vmatpush1.bf16.msra.mxu0 0
        %3482 = vmatprep.subr.bf16.mxu0 0
        %3483 = vmatpush1.bf16.msra.mxu0 0
        %3484 = vmatprep.subr.bf16.mxu0 0
        %3485 = vmatpush1.bf16.msra.mxu0 0
        %3486 = vmatprep.subr.bf16.mxu0 0
        %3487 = vmatpush1.bf16.msra.mxu0 0
        %3488 = vmatprep.subr.bf16.mxu0 0
        %3489 = vmatpush1.bf16.msra.mxu0 0
        %3490 = vmatprep.subr.bf16.mxu0 0
        %3491 = vmatpush1.bf16.msra.mxu0 0
        %3492 = vmatprep.subr.bf16.mxu0 0
        %3493 = vmatpush1.bf16.msra.mxu0 0
        %3494 = vmatprep.subr.bf16.mxu0 0
        %3495 = vmatpush1.bf16.msra.mxu0 0
        %3496 = vmatprep.subr.bf16.mxu0 0
        %3497 = vmatpush1.bf16.msra.mxu0 0
        %3498 = vmatprep.subr.bf16.mxu0 0
        %3499 = vmatpush1.bf16.msra.mxu0 0
        %3500 = vmatprep.subr.bf16.mxu0 0
        %3501 = vmatpush1.bf16.msra.mxu0 0
        %3502 = vmatprep.subr.bf16.mxu0 0
        %3503 = vmatpush1.bf16.msra.mxu0 0
        %3504 = vmatprep.subr.bf16.mxu0 0
        %3505 = vmatpush1.bf16.msra.mxu0 0
        %3506 = vmatprep.subr.bf16.mxu0 0
        %3507 = vmatpush1.bf16.msra.mxu0 0
        %3508 = vmatprep.subr.bf16.mxu0 0
        %3509 = vmatpush1.bf16.msra.mxu0 0
        %3510 = vmatprep.mubr.bf16.mxu0 0
        %3511 = vmatmul.mubr.bf16.gmra.mrb[0].mxu0 %v3473
        %v3512 = vpop.f32.mrb[0].mxu0
        %v3513 = vadd.f32 0.0, %v3512
        %v3514 = vpop.f32.mrb[0].mxu0
        %v3515 = vpop.f32.mrb[0].mxu0
        %v3516 = vadd.f32 0.0, %v3515
        %v3517 = vpop.f32.mrb[0].mxu0
        %3518 = vdwg.mxu0
        %v3520 = vsel %vm1239, %v3470, 0
        %v3523 = vsel %vm1730, %v2521, 0
        %3525 = vmatprep.subr.bf16.mxu0 0
        %3526 = vmatpush1.bf16.msra.mxu0 %v3523
        %3527 = vmatprep.subr.bf16.mxu0 0
        %3528 = vmatpush1.bf16.msra.mxu0 0
        %3529 = vmatprep.subr.bf16.mxu0 0
        %3530 = vmatpush1.bf16.msra.mxu0 0
        %3531 = vmatprep.subr.bf16.mxu0 0
        %3532 = vmatpush1.bf16.msra.mxu0 0
        %3533 = vmatprep.subr.bf16.mxu0 0
        %3534 = vmatpush1.bf16.msra.mxu0 0
        %3535 = vmatprep.subr.bf16.mxu0 0
        %3536 = vmatpush1.bf16.msra.mxu0 0
        %3537 = vmatprep.subr.bf16.mxu0 0
        %3538 = vmatpush1.bf16.msra.mxu0 0
        %3539 = vmatprep.subr.bf16.mxu0 0
        %3540 = vmatpush1.bf16.msra.mxu0 0
        %3541 = vmatprep.subr.bf16.mxu0 0
        %3542 = vmatpush1.bf16.msra.mxu0 0
        %3543 = vmatprep.subr.bf16.mxu0 0
        %3544 = vmatpush1.bf16.msra.mxu0 0
        %3545 = vmatprep.subr.bf16.mxu0 0
        %3546 = vmatpush1.bf16.msra.mxu0 0
        %3547 = vmatprep.subr.bf16.mxu0 0
        %3548 = vmatpush1.bf16.msra.mxu0 0
        %3549 = vmatprep.subr.bf16.mxu0 0
        %3550 = vmatpush1.bf16.msra.mxu0 0
        %3551 = vmatprep.subr.bf16.mxu0 0
        %3552 = vmatpush1.bf16.msra.mxu0 0
        %3553 = vmatprep.subr.bf16.mxu0 0
        %3554 = vmatpush1.bf16.msra.mxu0 0
        %3555 = vmatprep.subr.bf16.mxu0 0
        %3556 = vmatpush1.bf16.msra.mxu0 0
        %3557 = vmatprep.mubr.bf16.mxu0 0
        %3558 = vmatmul.mubr.bf16.gmra.mrb[0].mxu0 %v3520
        %v3559 = vpop.f32.mrb[0].mxu0
        %v3560 = vadd.f32 %v3513, %v3559
        %v3561 = vpop.f32.mrb[0].mxu0
        %v3562 = vpop.f32.mrb[0].mxu0
        %v3563 = vadd.f32 %v3516, %v3562
        %v3564 = vpop.f32.mrb[0].mxu0
        %3565 = vdwg.mxu0
        %v3566 = vpack.c.bf16 %v3467, %v3466
        %v3568 = vsel %vm1239, %v3566, 0
        %v3571 = vsel %vm1730, %v2523, 0
        %3573 = vmatprep.subr.bf16.mxu0 0
        %3574 = vmatpush1.bf16.msra.mxu0 %v3571
        %3575 = vmatprep.subr.bf16.mxu0 0
        %3576 = vmatpush1.bf16.msra.mxu0 0
        %3577 = vmatprep.subr.bf16.mxu0 0
        %3578 = vmatpush1.bf16.msra.mxu0 0
        %3579 = vmatprep.subr.bf16.mxu0 0
        %3580 = vmatpush1.bf16.msra.mxu0 0
        %3581 = vmatprep.subr.bf16.mxu0 0
        %3582 = vmatpush1.bf16.msra.mxu0 0
        %3583 = vmatprep.subr.bf16.mxu0 0
        %3584 = vmatpush1.bf16.msra.mxu0 0
        %3585 = vmatprep.subr.bf16.mxu0 0
        %3586 = vmatpush1.bf16.msra.mxu0 0
        %3587 = vmatprep.subr.bf16.mxu0 0
        %3588 = vmatpush1.bf16.msra.mxu0 0
        %3589 = vmatprep.subr.bf16.mxu0 0
        %3590 = vmatpush1.bf16.msra.mxu0 0
        %3591 = vmatprep.subr.bf16.mxu0 0
        %3592 = vmatpush1.bf16.msra.mxu0 0
        %3593 = vmatprep.subr.bf16.mxu0 0
        %3594 = vmatpush1.bf16.msra.mxu0 0
        %3595 = vmatprep.subr.bf16.mxu0 0
        %3596 = vmatpush1.bf16.msra.mxu0 0
        %3597 = vmatprep.subr.bf16.mxu0 0
        %3598 = vmatpush1.bf16.msra.mxu0 0
        %3599 = vmatprep.subr.bf16.mxu0 0
        %3600 = vmatpush1.bf16.msra.mxu0 0
        %3601 = vmatprep.subr.bf16.mxu0 0
        %3602 = vmatpush1.bf16.msra.mxu0 0
        %3603 = vmatprep.subr.bf16.mxu0 0
        %3604 = vmatpush1.bf16.msra.mxu0 0
        %3605 = vmatprep.mubr.bf16.mxu0 0
        %3606 = vmatmul.mubr.bf16.gmra.mrb[0].mxu0 %v3568
        %v3607 = vpop.f32.mrb[0].mxu0
        %v3608 = vadd.f32 0.0, %v3607
        %v3609 = vpop.f32.mrb[0].mxu0
        %v3610 = vpop.f32.mrb[0].mxu0
        %v3611 = vadd.f32 0.0, %v3610
        %v3612 = vpop.f32.mrb[0].mxu0
        %3613 = vdwg.mxu0
        %v3614 = vadd.f32 %v3560, %v3608
        %v3615 = vadd.f32 %v3563, %v3611
        %v3616 = vpack.c.bf16 %v3469, %v3468
        %v3618 = vsel %vm1239, %v3616, 0
        %v3621 = vsel %vm1730, %v2524, 0
        %3623 = vmatprep.subr.bf16.mxu0 0
        %3624 = vmatpush1.bf16.msra.mxu0 %v3621
        %3625 = vmatprep.subr.bf16.mxu0 0
        %3626 = vmatpush1.bf16.msra.mxu0 0
        %3627 = vmatprep.subr.bf16.mxu0 0
        %3628 = vmatpush1.bf16.msra.mxu0 0
        %3629 = vmatprep.subr.bf16.mxu0 0
        %3630 = vmatpush1.bf16.msra.mxu0 0
        %3631 = vmatprep.subr.bf16.mxu0 0
        %3632 = vmatpush1.bf16.msra.mxu0 0
        %3633 = vmatprep.subr.bf16.mxu0 0
        %3634 = vmatpush1.bf16.msra.mxu0 0
        %3635 = vmatprep.subr.bf16.mxu0 0
        %3636 = vmatpush1.bf16.msra.mxu0 0
        %3637 = vmatprep.subr.bf16.mxu0 0
        %3638 = vmatpush1.bf16.msra.mxu0 0
        %3639 = vmatprep.subr.bf16.mxu0 0
        %3640 = vmatpush1.bf16.msra.mxu0 0
        %3641 = vmatprep.subr.bf16.mxu0 0
        %3642 = vmatpush1.bf16.msra.mxu0 0
        %3643 = vmatprep.subr.bf16.mxu0 0
        %3644 = vmatpush1.bf16.msra.mxu0 0
        %3645 = vmatprep.subr.bf16.mxu0 0
        %3646 = vmatpush1.bf16.msra.mxu0 0
        %3647 = vmatprep.subr.bf16.mxu0 0
        %3648 = vmatpush1.bf16.msra.mxu0 0
        %3649 = vmatprep.subr.bf16.mxu0 0
        %3650 = vmatpush1.bf16.msra.mxu0 0
        %3651 = vmatprep.subr.bf16.mxu0 0
        %3652 = vmatpush1.bf16.msra.mxu0 0
        %3653 = vmatprep.subr.bf16.mxu0 0
        %3654 = vmatpush1.bf16.msra.mxu0 0
        %3655 = vmatprep.mubr.bf16.mxu0 0
        %3656 = vmatmul.mubr.bf16.gmra.mrb[0].mxu0 %v3618
        %v3657 = vpop.f32.mrb[0].mxu0
        %v3658 = vadd.f32 0.0, %v3657
        %v3659 = vpop.f32.mrb[0].mxu0
        %v3660 = vpop.f32.mrb[0].mxu0
        %v3661 = vadd.f32 0.0, %v3660
        %v3662 = vpop.f32.mrb[0].mxu0
        %3663 = vdwg.mxu0
        %v3664 = vadd.f32 %v3614, %v3658
        %v3665 = vadd.f32 %v3615, %v3661
        %v3667 = vlaneseq
        %v3668 = vshrl.u32 %v3667, 7
        %v3669 = vsub.s32 0, %v3668
        %v3670 = vrot.slane %v2525, %v3669
        %v3672 = vadd.f32 %v3664, %v3670
        %v3673 = vadd.f32 %v3665, %v3670
        %v3674 = vadd.f32 %v2346, %v3672
        %v3675 = vadd.f32 %v2347, %v3673
        %v3676 = vsel %vm1095, %v3674, 0.0
        %3677 = vadd.xlane.f32.xlu0 %v3676
        %v3678 = vpop.xlane.xlu0 %3677
        %v3679 = vsel %vm1095, %v3675, 0.0
        %3680 = vadd.xlane.f32.xlu0 %v3679
        %v3681 = vpop.xlane.xlu0 %3680
        %v3682 = vmul.f32 %v3678, %v1102
        %v3683 = vmul.f32 %v3681, %v1102
        %v3684 = vsub.f32 %v3674, %v3682
        %v3685 = vsub.f32 %v3675, %v3683
        %v3686 = vmul.f32 %v3684, %v3684
        %v3687 = vmul.f32 %v3685, %v3685
        %v3688 = vsel %vm1095, %v3686, 0.0
        %3689 = vadd.xlane.f32.xlu0 %v3688
        %v3690 = vpop.xlane.xlu0 %3689
        %v3691 = vsel %vm1095, %v3687, 0.0
        %3692 = vadd.xlane.f32.xlu0 %v3691
        %v3693 = vpop.xlane.xlu0 %3692
        %v3694 = vmul.f32 %v3690, %v1102
        %v3695 = vmul.f32 %v3693, %v1102
        %v3696 = vadd.f32 %v3694, 1e-05
        %v3697 = vadd.f32 %v3695, 1e-05
        %v3698 = vrsqrt.pop %v3696
        %v3699 = vrsqrt.pop %v3697
        %v3700 = vmul.f32 %v3684, %v3698
        %v3701 = vmul.f32 %v3685, %v3699
        %v3702 = vlaneseq
        %v3703 = vshrl.u32 %v3702, 7
        %v3704 = vsub.s32 2, %v3703
        %v3705 = vrot.slane %v1093, %v3704
        %v3706 = vmul.f32 %v3700, %v3705
        %v3707 = vmul.f32 %v3701, %v3705
        %v3708 = vlaneseq
        %v3709 = vshrl.u32 %v3708, 7
        %v3710 = vsub.s32 2, %v3709
        %v3711 = vrot.slane %v1094, %v3710
        %v3712 = vadd.f32 %v3706, %v3711
        %v3713 = vadd.f32 %v3707, %v3711
        %v3714 = vld [vmem:[%s1064] sm:$0x1f]
        %v3715 = vld [vmem:[%s938] sm:$0xf]
        %v3716 = vld [vmem:[%s938 + $0x4] sm:$0xf]
        %v3717 = vld [vmem:[%s938 + $0x8] sm:$0xf]
        %v3718 = vld [vmem:[%s938 + $0xc] sm:$0xf]
        %v3719 = vtanh.pop %v3712
        %v3720 = vtanh.pop %v3713
        %vm3721 = vcmp.ge.f32.partialorder %v3719, -1.0
        %vm3722 = vcmp.ge.f32.partialorder %v3720, -1.0
        %vm3723 = vcmp.lt.f32.partialorder %v3719, -0.71428573
        %vm3724 = vcmp.lt.f32.partialorder %v3720, -0.71428573
        %vm3725 = vmand %vm3721, %vm3723
        %vm3726 = vmand %vm3722, %vm3724
        %v3727 = vsel %vm3725, 1, 0
        %v3728 = vsel %vm3726, 1, 0
        %v3729 = vcvt.s32.f32 %v3727
        %v3730 = vcvt.s32.f32 %v3728
        %vm3731 = vcmp.ge.f32.partialorder %v3719, -0.71428573
        %vm3732 = vcmp.ge.f32.partialorder %v3720, -0.71428573
        %vm3733 = vcmp.lt.f32.partialorder %v3719, -0.42857143
        %vm3734 = vcmp.lt.f32.partialorder %v3720, -0.42857143
        %vm3735 = vmand %vm3731, %vm3733
        %vm3736 = vmand %vm3732, %vm3734
        %v3737 = vsel %vm3735, 1, 0
        %v3738 = vsel %vm3736, 1, 0
        %v3739 = vcvt.s32.f32 %v3737
        %v3740 = vcvt.s32.f32 %v3738
        %vm3741 = vcmp.ge.f32.partialorder %v3719, -0.42857143
        %vm3742 = vcmp.ge.f32.partialorder %v3720, -0.42857143
        %vm3743 = vcmp.lt.f32.partialorder %v3719, -0.14285715
        %vm3744 = vcmp.lt.f32.partialorder %v3720, -0.14285715
        %vm3745 = vmand %vm3741, %vm3743
        %vm3746 = vmand %vm3742, %vm3744
        %v3747 = vsel %vm3745, 1, 0
        %v3748 = vsel %vm3746, 1, 0
        %v3749 = vcvt.s32.f32 %v3747
        %v3750 = vcvt.s32.f32 %v3748
        %vm3751 = vcmp.ge.f32.partialorder %v3719, -0.14285715
        %vm3752 = vcmp.ge.f32.partialorder %v3720, -0.14285715
        %vm3753 = vcmp.lt.f32.partialorder %v3719, 0.14285715
        %vm3754 = vcmp.lt.f32.partialorder %v3720, 0.14285715
        %vm3755 = vmand %vm3751, %vm3753
        %vm3756 = vmand %vm3752, %vm3754
        %v3757 = vsel %vm3755, 1, 0
        %v3758 = vsel %vm3756, 1, 0
        %v3759 = vcvt.s32.f32 %v3757
        %v3760 = vcvt.s32.f32 %v3758
        %vm3761 = vcmp.ge.f32.partialorder %v3719, 0.14285715
        %vm3762 = vcmp.ge.f32.partialorder %v3720, 0.14285715
        %vm3763 = vcmp.lt.f32.partialorder %v3719, 0.42857143
        %vm3764 = vcmp.lt.f32.partialorder %v3720, 0.42857143
        %vm3765 = vmand %vm3761, %vm3763
        %vm3766 = vmand %vm3762, %vm3764
        %v3767 = vsel %vm3765, 1, 0
        %v3768 = vsel %vm3766, 1, 0
        %v3769 = vcvt.s32.f32 %v3767
        %v3770 = vcvt.s32.f32 %v3768
        %v3771 = vsub.f32 %v3719, -1.0
        %v3772 = vsub.f32 %v3720, -1.0
        %v3773 = vmul.f32 %v3771, 3.5
        %v3774 = vmul.f32 %v3772, 3.5
        %v3775 = vmul.f32 %v3773, %v3729
        %v3776 = vmul.f32 %v3774, %v3730
        %v3777 = vsub.f32 -0.42857143, %v3719
        %v3778 = vsub.f32 -0.42857143, %v3720
        %v3779 = vmul.f32 %v3777, 3.5
        %v3780 = vmul.f32 %v3778, 3.5
        %v3781 = vmul.f32 %v3779, %v3739
        %v3782 = vmul.f32 %v3780, %v3740
        %v3783 = vadd.f32 %v3775, %v3781
        %v3784 = vadd.f32 %v3776, %v3782
        %v3785 = vsub.f32 %v3719, -0.71428573
        %v3786 = vsub.f32 %v3720, -0.71428573
        %v3787 = vmul.f32 %v3785, 3.5
        %v3788 = vmul.f32 %v3786, 3.5
        %v3789 = vmul.f32 %v3787, %v3739
        %v3790 = vmul.f32 %v3788, %v3740
        %v3791 = vsub.f32 -0.14285715, %v3719
        %v3792 = vsub.f32 -0.14285715, %v3720
        %v3793 = vmul.f32 %v3791, 3.5
        %v3794 = vmul.f32 %v3792, 3.5
        %v3795 = vmul.f32 %v3793, %v3749
        %v3796 = vmul.f32 %v3794, %v3750
        %v3797 = vadd.f32 %v3789, %v3795
        %v3798 = vadd.f32 %v3790, %v3796
        %v3799 = vsub.f32 %v3719, -0.42857143
        %v3800 = vsub.f32 %v3720, -0.42857143
        %v3801 = vmul.f32 %v3799, 3.5
        %v3802 = vmul.f32 %v3800, 3.5
        %v3803 = vmul.f32 %v3801, %v3749
        %v3804 = vmul.f32 %v3802, %v3750
        %v3805 = vsub.f32 0.14285715, %v3719
        %v3806 = vsub.f32 0.14285715, %v3720
        %v3807 = vmul.f32 %v3805, 3.5
        %v3808 = vmul.f32 %v3806, 3.5
        %v3809 = vmul.f32 %v3807, %v3759
        %v3810 = vmul.f32 %v3808, %v3760
        %v3811 = vadd.f32 %v3803, %v3809
        %v3812 = vadd.f32 %v3804, %v3810
        %v3813 = vsub.f32 %v3719, -0.14285715
        %v3814 = vsub.f32 %v3720, -0.14285715
        %v3815 = vmul.f32 %v3813, 3.5
        %v3816 = vmul.f32 %v3814, 3.5
        %v3817 = vmul.f32 %v3815, %v3759
        %v3818 = vmul.f32 %v3816, %v3760
        %v3819 = vsub.f32 0.42857143, %v3719
        %v3820 = vsub.f32 0.42857143, %v3720
        %v3821 = vmul.f32 %v3819, 3.5
        %v3822 = vmul.f32 %v3820, 3.5
        %v3823 = vmul.f32 %v3821, %v3769
        %v3824 = vmul.f32 %v3822, %v3770
        %v3825 = vadd.f32 %v3817, %v3823
        %v3826 = vadd.f32 %v3818, %v3824
        %v3827 = vmul.f32 %v3771, 1.75
        %v3828 = vmul.f32 %v3772, 1.75
        %v3829 = vmul.f32 %v3827, %v3783
        %v3830 = vmul.f32 %v3828, %v3784
        %v3831 = vmul.f32 %v3791, 1.75
        %v3832 = vmul.f32 %v3792, 1.75
        %v3833 = vmul.f32 %v3831, %v3797
        %v3834 = vmul.f32 %v3832, %v3798
        %v3835 = vadd.f32 %v3829, %v3833
        %v3836 = vadd.f32 %v3830, %v3834
        %v3837 = vmul.f32 %v3785, 1.75
        %v3838 = vmul.f32 %v3786, 1.75
        %v3839 = vmul.f32 %v3837, %v3797
        %v3840 = vmul.f32 %v3838, %v3798
        %v3841 = vmul.f32 %v3805, 1.75
        %v3842 = vmul.f32 %v3806, 1.75
        %v3843 = vmul.f32 %v3841, %v3811
        %v3844 = vmul.f32 %v3842, %v3812
        %v3845 = vadd.f32 %v3839, %v3843
        %v3846 = vadd.f32 %v3840, %v3844
        %v3847 = vmul.f32 %v3799, 1.75
        %v3848 = vmul.f32 %v3800, 1.75
        %v3849 = vmul.f32 %v3847, %v3811
        %v3850 = vmul.f32 %v3848, %v3812
        %v3851 = vmul.f32 %v3819, 1.75
        %v3852 = vmul.f32 %v3820, 1.75
        %v3853 = vmul.f32 %v3851, %v3825
        %v3854 = vmul.f32 %v3852, %v3826
        %v3855 = vadd.f32 %v3849, %v3853
        %v3856 = vadd.f32 %v3850, %v3854
        %v3857 = vmul.f32 %v3771, 1.1666666
        %v3858 = vmul.f32 %v3772, 1.1666666
        %v3859 = vmul.f32 %v3857, %v3835
        %v3860 = vmul.f32 %v3858, %v3836
        %v3861 = vmul.f32 %v3805, 1.1666666
        %v3862 = vmul.f32 %v3806, 1.1666666
        %v3863 = vmul.f32 %v3861, %v3845
        %v3864 = vmul.f32 %v3862, %v3846
        %v3865 = vadd.f32 %v3859, %v3863
        %v3866 = vadd.f32 %v3860, %v3864
        %v3867 = vmul.f32 %v3785, 1.1666666
        %v3868 = vmul.f32 %v3786, 1.1666666
        %v3869 = vmul.f32 %v3867, %v3845
        %v3870 = vmul.f32 %v3868, %v3846
        %v3871 = vmul.f32 %v3819, 1.1666666
        %v3872 = vmul.f32 %v3820, 1.1666666
        %v3873 = vmul.f32 %v3871, %v3855
        %v3874 = vmul.f32 %v3872, %v3856
        %v3875 = vadd.f32 %v3869, %v3873
        %v3876 = vadd.f32 %v3870, %v3874
        %v3877 = vlaneseq
        %v3878 = vshrl.u32 %v3877, 7
        %v3879 = vsub.s32 0, %v3878
        %v3880 = vrot.slane %v3714, %v3879
        %v3881 = vmul.f32 %v3865, %v3880
        %v3882 = vmul.f32 %v3866, %v3880
        %v3883 = vlaneseq
        %v3884 = vshrl.u32 %v3883, 7
        %v3885 = vsub.s32 1, %v3884
        %v3886 = vrot.slane %v3714, %v3885
        %v3887 = vmul.f32 %v3875, %v3886
        %v3888 = vmul.f32 %v3876, %v3886
        %v3889 = vadd.f32 %v3881, %v3887
        %v3890 = vadd.f32 %v3882, %v3888
        %v3891 = vpack.c.bf16 %v3890, %v3889
        %v3896 = vunpack.c.l.b16 %v3715
        %v3897 = vunpack.c.l.b16 %v3716
        %v3898 = vunpack.c.l.b16 %v3717
        %v3899 = vunpack.c.l.b16 %v3718
        %v3900 = vpack.c.b16 %v3897, %v3896
        %v3901 = vpack.c.b16 %v3899, %v3898
        %v3905 = vsel %vm1095, %v3891, 0
        %3907 = vmatprep.subr.bf16.mxu0 0
        %3908 = vmatpush1.bf16.msra.mxu0 %v3900
        %3909 = vmatprep.subr.bf16.mxu0 0
        %3910 = vmatpush1.bf16.msra.mxu0 %v3901
        %3911 = vmatprep.subr.bf16.mxu0 0
        %3912 = vmatpush1.bf16.msra.mxu0 0
        %3913 = vmatprep.subr.bf16.mxu0 0
        %3914 = vmatpush1.bf16.msra.mxu0 0
        %3915 = vmatprep.subr.bf16.mxu0 0
        %3916 = vmatpush1.bf16.msra.mxu0 0
        %3917 = vmatprep.subr.bf16.mxu0 0
        %3918 = vmatpush1.bf16.msra.mxu0 0
        %3919 = vmatprep.subr.bf16.mxu0 0
        %3920 = vmatpush1.bf16.msra.mxu0 0
        %3921 = vmatprep.subr.bf16.mxu0 0
        %3922 = vmatpush1.bf16.msra.mxu0 0
        %3923 = vmatprep.subr.bf16.mxu0 0
        %3924 = vmatpush1.bf16.msra.mxu0 0
        %3925 = vmatprep.subr.bf16.mxu0 0
        %3926 = vmatpush1.bf16.msra.mxu0 0
        %3927 = vmatprep.subr.bf16.mxu0 0
        %3928 = vmatpush1.bf16.msra.mxu0 0
        %3929 = vmatprep.subr.bf16.mxu0 0
        %3930 = vmatpush1.bf16.msra.mxu0 0
        %3931 = vmatprep.subr.bf16.mxu0 0
        %3932 = vmatpush1.bf16.msra.mxu0 0
        %3933 = vmatprep.subr.bf16.mxu0 0
        %3934 = vmatpush1.bf16.msra.mxu0 0
        %3935 = vmatprep.subr.bf16.mxu0 0
        %3936 = vmatpush1.bf16.msra.mxu0 0
        %3937 = vmatprep.subr.bf16.mxu0 0
        %3938 = vmatpush1.bf16.msra.mxu0 0
        %3939 = vmatprep.mubr.bf16.mxu0 0
        %3940 = vmatmul.mubr.bf16.gmra.mrb[0].mxu0 %v3905
        %v3941 = vpop.f32.mrb[0].mxu0
        %v3942 = vadd.f32 0.0, %v3941
        %v3943 = vpop.f32.mrb[0].mxu0
        %v3944 = vpop.f32.mrb[0].mxu0
        %v3945 = vadd.f32 0.0, %v3944
        %v3946 = vpop.f32.mrb[0].mxu0
        %3947 = vdwg.mxu0
        %v3948 = vadd.f32 %v3674, %v3942
        %v3949 = vadd.f32 %v3675, %v3945
        %v3950 = vsel %vm1095, %v3948, 0.0
        %3951 = vadd.xlane.f32.xlu0 %v3950
        %v3952 = vpop.xlane.xlu0 %3951
        %v3953 = vsel %vm1095, %v3949, 0.0
        %3954 = vadd.xlane.f32.xlu0 %v3953
        %v3955 = vpop.xlane.xlu0 %3954
        %v3956 = vmul.f32 %v3952, %v1102
        %v3957 = vmul.f32 %v3955, %v1102
        %v3958 = vsub.f32 %v3948, %v3956
        %v3959 = vsub.f32 %v3949, %v3957
        %v3960 = vmul.f32 %v3958, %v3958
        %v3961 = vmul.f32 %v3959, %v3959
        %v3962 = vsel %vm1095, %v3960, 0.0
        %3963 = vadd.xlane.f32.xlu0 %v3962
        %v3964 = vpop.xlane.xlu0 %3963
        %v3965 = vsel %vm1095, %v3961, 0.0
        %3966 = vadd.xlane.f32.xlu0 %v3965
        %v3967 = vpop.xlane.xlu0 %3966
        %v3968 = vmul.f32 %v3964, %v1102
        %v3969 = vmul.f32 %v3967, %v1102
        %v3970 = vadd.f32 %v3968, 1e-05
        %v3971 = vadd.f32 %v3969, 1e-05
        %v3972 = vrsqrt.pop %v3970
        %v3973 = vrsqrt.pop %v3971
        %v3974 = vmul.f32 %v3958, %v3972
        %v3975 = vmul.f32 %v3959, %v3973
        %v3976 = vlaneseq
        %v3977 = vshrl.u32 %v3976, 7
        %v3978 = vsub.s32 3, %v3977
        %v3979 = vrot.slane %v1093, %v3978
        %v3980 = vmul.f32 %v3974, %v3979
        %v3981 = vmul.f32 %v3975, %v3979
        %v3982 = vlaneseq
        %v3983 = vshrl.u32 %v3982, 7
        %v3984 = vsub.s32 3, %v3983
        %v3985 = vrot.slane %v1094, %v3984
        %v3986 = vadd.f32 %v3980, %v3985
        %v3987 = vadd.f32 %v3981, %v3985
        %3988 = vst.msk [vmem:[#allocation20] sm:$0xff] %vm1095, %v3986
        %3989 = vst.msk [vmem:[#allocation20 + $0x8] sm:$0xff] %vm1095, %v3987
        // Predicated region
        $region153: #{tpu_custom_call.1} parent=91 // pred_check
          %p3990 = pneg %p531
        $region154: #{tpu_custom_call.1} parent=91 // pred_check_branch
          %3992 = sbr.rel (%p3990) target = $region156
        $region155: #{tpu_custom_call.1} parent=91 // pred_region
          %s3993 = smul.u32 2, %s37
          %s3995 = ssub.s32 256, 256
          %3996 = vsyncadd [#allocation4], %s3995
          %s3997 = smul.addr %s3993, 128
          %s3998 = scalar_lea.hbm %s18, %s3997
          %s3999 = sshll.u32 [#allocation20], 4
          %s4000 = int_to_ptr.vmem [resolvable:$true] %s3999
          %4005 = dma.vmem_to_hbm [thread:$0]  %s4000, 256, %s3998, [#allocation4], 128, 128, 8
        $region156: #{tpu_custom_call.1} parent=91 // pred_fallthru
          _
        // Predicated region
        $region157: #{tpu_custom_call.1} parent=91 // pred_check
          %p4006 = pneg %p531
        $region158: #{tpu_custom_call.1} parent=91 // pred_check_branch
          %4008 = sbr.rel (%p4006) target = $region160
        $region159: #{tpu_custom_call.1} parent=91 // pred_region
          %4009 = dma.done [#allocation4], 256
        $region160: #{tpu_custom_call.1} parent=91 // pred_fallthru
          _
      $region92: #{tpu_custom_call.1} parent=5 // pred_fallthru
        _
      %p4010 = scmp.le.s32.totalorder 2, %s28
      // Predicated region
      $region161: #{tpu_custom_call.1} parent=5 // pred_check
        %p4011 = pneg %p4010
      $region162: #{tpu_custom_call.1} parent=5 // pred_check_branch
        %4013 = sbr.rel (%p4011) target = $region164
      $region163: #{tpu_custom_call.1} parent=5 // pred_region
        %s4014 = ssub.s32 %s28, 2
      $region164: #{tpu_custom_call.1} parent=5 // pred_fallthru
        _
    $region6: #{tpu_custom_call.1} parent=1 // loop_footer
      %s32 = sadd.s32 1, %s28
    $region7: #{tpu_custom_call.1} parent=1 // loop_footer_branch
      %27 = sbr.rel target = $region3
    $region8: #{tpu_custom_call.1} parent=1 // loop_exit
      _
    %4015 = vsyncpa [#allocation3], 1
    %s4016 = scalar_lea.sflag [#allocation3], 1
    %4017 = vsyncpa %s4016, 1
    %4018 = vsyncpa [#allocation6], 1
    %4019 = vsyncpa [#allocation9], 1
    %4020 = vsyncpa [#allocation4], 1
    %s4021 = scalar_lea.sflag [#allocation4], 1
    %4022 = vsyncpa %s4021, 1

</llo_original>
